<compile_context>
chip_gen: v6e
topology: v6e:2x2x1
jax: 0.10.0
libtpu: 0.0.40
codegen_flags: <defaults>
</compile_context>

<pallas_src>
import functools
import math

import jax
import jax.numpy as jnp
from jax import lax
from jax.experimental import pallas as pl
from jax.experimental.pallas import tpu as pltpu

_SQRT2 = 1.4142135623730951
_LN_EPS = 1e-5                    # PyTorch nn.LayerNorm default
_MAX_TM = 256                     # row tile for projection / LN kernels
_MAX_TM_FF = 512                  # larger FF row tile amortizes streaming 8*D^2 weights
_MAX_TH = 512                     # hidden tile when FF weights must be streamed (v7x, big D)


# ----------------------------------------------------------------------------- helpers
def _round_up(x, m):
    return (x + m - 1) // m * m


def _vmem_limit_bytes():
    """Generation-aware scoped-VMEM budget (v5e/v6e: 128 MiB, v7x: 64 MiB per TC)."""
    cap = None
    try:
        info = pltpu.get_tpu_info()
        for name in ("vmem_capacity_bytes", "vmem_bytes", "vmem_size_bytes"):
            cap = getattr(info, name, None)
            if cap:
                break
    except Exception:
        cap = None
    if not cap:
        cap = 64 * 1024 * 1024          # conservative default (v7x per-core VMEM)
    return int(cap) * 13 // 16          # leave headroom for compiler-internal scratch


_VMEM_LIMIT = _vmem_limit_bytes()


def _probe_single_buffer():
    # Decide at import time (before any jit tracing) whether Buffered(1) specs
    # are available -> no post-trace global mutation (previous review concern).
    if not hasattr(pl, "Buffered"):
        return False
    try:
        pl.BlockSpec((8, 128), lambda i: (0, 0), pipeline_mode=pl.Buffered(1))
        return True
    except Exception:
        return False


_SINGLE_BUFFER = _probe_single_buffer()


def _invariant_spec(shape, index_map):
    """Grid-invariant operands (weights / biases): double-buffering them is pure
    VMEM waste, so request a single buffer when supported."""
    if _SINGLE_BUFFER:
        return pl.BlockSpec(shape, index_map, pipeline_mode=pl.Buffered(1))
    return pl.BlockSpec(shape, index_map)


def _smem_scalar_spec():
    # Whole (tiny) array placed in SMEM; used for the ReZero resweight scalar.
    return pl.BlockSpec(memory_space=pltpu.MemorySpace.SMEM)


def _compiler_params(semantics):
    return pltpu.CompilerParams(dimension_semantics=semantics,
                                vmem_limit_bytes=_VMEM_LIMIT)


def _gelu_exact(x):
    # PyTorch nn.GELU() default = exact erf-based GELU (keep math in f32).
    return 0.5 * x * (1.0 + lax.erf(x / _SQRT2))


def _layernorm_f32(x, gamma, beta):
    x = x.astype(jnp.float32)
    mu = jnp.mean(x, axis=-1, keepdims=True)
    xc = x - mu
    var = jnp.mean(xc * xc, axis=-1, keepdims=True)
    return xc * lax.rsqrt(var + _LN_EPS) * gamma + beta


def _mxu_dot(a, b):
    # bf16 MXU inputs, f32 accumulation.
    return jnp.dot(a.astype(jnp.bfloat16), b.astype(jnp.bfloat16),
                   preferred_element_type=jnp.float32)


def _row_tile(rows, max_tm=_MAX_TM):
    # Multiple of 16 (bf16 sublane pack); shrinks for tiny inputs.
    return min(max_tm, _round_up(rows, 16))


def _hidden_tile(h, max_th=_MAX_TH):
    if h <= max_th:
        return h
    for th in range(max_th, 127, -128):      # multiple of 128 that divides H
        if h % th == 0:
            return th
    return h                                  # fallback: no H tiling


# ----------------------------------------------------------------------------- linear kernels
def _linear_kernel(x_ref, w_ref, b_ref, o_ref):
    y = _mxu_dot(x_ref[...], w_ref[...]) + b_ref[...]
    o_ref[...] = y.astype(o_ref.dtype)


def linear(x2d, w, b, out_dtype=None):
    rows, din = x2d.shape
    dout = w.shape[1]
    if out_dtype is None:
        out_dtype = x2d.dtype
    tm = _row_tile(rows)
    return pl.pallas_call(
        _linear_kernel,
        out_shape=jax.ShapeDtypeStruct((rows, dout), out_dtype),
        grid_spec=pltpu.PrefetchScalarGridSpec(
            num_scalar_prefetch=0,
            grid=(pl.cdiv(rows, tm),),
            in_specs=[
                pl.BlockSpec((tm, din), lambda i: (i, 0)),
                _invariant_spec((din, dout), lambda i: (0, 0)),
                _invariant_spec((1, dout), lambda i: (0, 0)),
            ],
            out_specs=pl.BlockSpec((tm, dout), lambda i: (i, 0)),
        ),
        compiler_params=_compiler_params(("parallel",)),
    )(x2d, w, b.reshape(1, dout))


def _ln_linear_kernel(x_ref, g_ref, bln_ref, w_ref, b_ref, o_ref):
    # LayerNorm fused into the projection: the normalized activation is never
    # materialized in HBM.
    xn = _layernorm_f32(x_ref[...], g_ref[...], bln_ref[...])
    y = _mxu_dot(xn, w_ref[...]) + b_ref[...]
    o_ref[...] = y.astype(o_ref.dtype)


def ln_linear(x2d, gamma, beta, w, b, out_dtype=None):
    rows, din = x2d.shape
    dout = w.shape[1]
    if out_dtype is None:
        out_dtype = x2d.dtype
    tm = _row_tile(rows)
    return pl.pallas_call(
        _ln_linear_kernel,
        out_shape=jax.ShapeDtypeStruct((rows, dout), out_dtype),
        grid_spec=pltpu.PrefetchScalarGridSpec(
            num_scalar_prefetch=0,
            grid=(pl.cdiv(rows, tm),),
            in_specs=[
                pl.BlockSpec((tm, din), lambda i: (i, 0)),
                _invariant_spec((1, din), lambda i: (0, 0)),
                _invariant_spec((1, din), lambda i: (0, 0)),
                _invariant_spec((din, dout), lambda i: (0, 0)),
                _invariant_spec((1, dout), lambda i: (0, 0)),
            ],
            out_specs=pl.BlockSpec((tm, dout), lambda i: (i, 0)),
        ),
        compiler_params=_compiler_params(("parallel",)),
    )(x2d, gamma.reshape(1, din), beta.reshape(1, din), w, b.reshape(1, dout))


def _linear_residual_kernel(x_ref, w_ref, b_ref, res_ref, rw_ref, o_ref):
    y = _mxu_dot(x_ref[...], w_ref[...]) + b_ref[...]
    # Fused ReZero residual: res + rw * (x @ W + b)   (residual dropout = identity).
    o_ref[...] = (res_ref[...].astype(jnp.float32) + rw_ref[0] * y).astype(o_ref.dtype)


def linear_residual(x2d, w, b, res2d, rw):
    rows, din = x2d.shape
    dout = w.shape[1]
    tm = _row_tile(rows)
    return pl.pallas_call(
        _linear_residual_kernel,
        out_shape=jax.ShapeDtypeStruct((rows, dout), res2d.dtype),
        grid_spec=pltpu.PrefetchScalarGridSpec(
            num_scalar_prefetch=0,
            grid=(pl.cdiv(rows, tm),),
            in_specs=[
                pl.BlockSpec((tm, din), lambda i: (i, 0)),
                _invariant_spec((din, dout), lambda i: (0, 0)),
                _invariant_spec((1, dout), lambda i: (0, 0)),
                pl.BlockSpec((tm, dout), lambda i: (i, 0)),
                _smem_scalar_spec(),
            ],
            out_specs=pl.BlockSpec((tm, dout), lambda i: (i, 0)),
        ),
        compiler_params=_compiler_params(("parallel",)),
    )(x2d, w, b.reshape(1, dout), res2d, rw)


# ----------------------------------------------------------------------------- attention core
def _mha_heads(q_cols, kv_cols, o_ref, *, heads, dk, q_off, k_off, v_off, causal, scale):
    # One grid step handles a whole batch element: every head is a static lane
    # slice of the fused projection block (no HBM transposes), feeding 2-D MXU
    # matmuls; head outputs are written back as contiguous lane slices so the
    # concat-over-heads (B,S,D) layout is produced in place.
    # TODO(synk): flash-style Sk tiling (online softmax) for long sequences.
    for hh in range(heads):
        q = q_cols[0, :, q_off + hh * dk:q_off + (hh + 1) * dk].astype(jnp.bfloat16)
        k = kv_cols[0, :, k_off + hh * dk:k_off + (hh + 1) * dk].astype(jnp.bfloat16)
        v = kv_cols[0, :, v_off + hh * dk:v_off + (hh + 1) * dk].astype(jnp.bfloat16)
        s = lax.dot_general(q, k, (((1,), (1,)), ((), ())),
                            preferred_element_type=jnp.float32) * scale        # (Sq, Sk)
        if causal:
            row = lax.broadcasted_iota(jnp.int32, s.shape, 0)
            col = lax.broadcasted_iota(jnp.int32, s.shape, 1)
            s = jnp.where(col <= row, s, -1e30)
        m = jnp.max(s, axis=-1, keepdims=True)
        p = jnp.exp(s - m)
        inv = pl.reciprocal(jnp.sum(p, axis=-1, keepdims=True), approx=True)
        p = p * inv
        # softmax dropout: inference semantics -> identity.
        o = jnp.dot(p.astype(jnp.bfloat16), v, preferred_element_type=jnp.float32)
        o_ref[0, :, hh * dk:(hh + 1) * dk] = o.astype(o_ref.dtype)


def _self_attn_kernel(qkv_ref, o_ref, *, heads, dk, scale):
    d = heads * dk
    _mha_heads(qkv_ref, qkv_ref, o_ref, heads=heads, dk=dk,
               q_off=0, k_off=d, v_off=2 * d, causal=True, scale=scale)


def _cross_attn_kernel(q_ref, kv_ref, o_ref, *, heads, dk, scale):
    d = heads * dk
    _mha_heads(q_ref, kv_ref, o_ref, heads=heads, dk=dk,
               q_off=0, k_off=0, v_off=d, causal=False, scale=scale)


def self_attention_core(qkv3, heads):
    """qkv3: (B, S, 3D) fused projection [Q | K | V]; returns (B, S, D)."""
    b, s, d3 = qkv3.shape
    d = d3 // 3
    dk = d // heads
    kernel = functools.partial(_self_attn_kernel, heads=heads, dk=dk,
                               scale=1.0 / math.sqrt(dk))
    return pl.pallas_call(
        kernel,
        out_shape=jax.ShapeDtypeStruct((b, s, d), qkv3.dtype),
        grid_spec=pltpu.PrefetchScalarGridSpec(
            num_scalar_prefetch=0,
            grid=(b,),
            in_specs=[pl.BlockSpec((1, s, d3), lambda i: (i, 0, 0))],
            out_specs=pl.BlockSpec((1, s, d), lambda i: (i, 0, 0)),
        ),
        compiler_params=_compiler_params(("parallel",)),
    )(qkv3)


def cross_attention_core(q3, kv3, heads):
    """q3: (B, Sq, D); kv3: (B, Sk, 2D) fused [K | V]; returns (B, Sq, D)."""
    b, sq, d = q3.shape
    sk = kv3.shape[1]
    dk = d // heads
    kernel = functools.partial(_cross_attn_kernel, heads=heads, dk=dk,
                               scale=1.0 / math.sqrt(dk))
    return pl.pallas_call(
        kernel,
        out_shape=jax.ShapeDtypeStruct((b, sq, d), q3.dtype),
        grid_spec=pltpu.PrefetchScalarGridSpec(
            num_scalar_prefetch=0,
            grid=(b,),
            in_specs=[
                pl.BlockSpec((1, sq, d), lambda i: (i, 0, 0)),
                pl.BlockSpec((1, sk, 2 * d), lambda i: (i, 0, 0)),
            ],
            out_specs=pl.BlockSpec((1, sq, d), lambda i: (i, 0, 0)),
        ),
        compiler_params=_compiler_params(("parallel",)),
    )(q3, kv3)


# ----------------------------------------------------------------------------- fused feed-forward
def _ff_kernel(x_ref, g_ref, bln_ref, w1_ref, b1_ref, w2_ref, b2_ref, rw_ref,
               o_ref, acc_ref):
    j = pl.program_id(1)                  # hidden-dim tile (reduction of 2nd matmul)

    @pl.when(j == 0)
    def _():
        acc_ref[...] = jnp.zeros_like(acc_ref)

    # LayerNorm fused in (recomputed per hidden tile - cheap VPU work vs matmuls).
    xn = _layernorm_f32(x_ref[...], g_ref[...], bln_ref[...])
    h = _gelu_exact(_mxu_dot(xn, w1_ref[...]) + b1_ref[...])          # (tm, th) f32
    # FF dropout between the two linears: inference semantics -> identity.
    # GELU output is deliberately cast to bf16 for the 2nd MXU matmul (f32 accumulate).
    acc_ref[...] += _mxu_dot(h, w2_ref[...])                          # (tm, D)

    @pl.when(j == pl.num_programs(1) - 1)
    def _():
        y = _gelu_exact(acc_ref[...] + b2_ref[...])
        # Fused ReZero residual: x + rw * gelu(...)
        o_ref[...] = (x_ref[...].astype(jnp.float32) + rw_ref[0] * y).astype(o_ref.dtype)


def feed_forward(x2d, gamma, beta, w1, b1, w2, b2, rw):
    """x2d: [rows, D]; w1: [D, 4D] bf16; w2: [4D, D] bf16; rw: (1,) f32."""
    rows, d = x2d.shape
    h = w1.shape[1]
    tm = _row_tile(rows, _MAX_TM_FF)
    # Keep w1/w2 fully VMEM-resident when they fit the generation's budget
    # (v5e/v6e 128 MiB: typical d_model fits); otherwise stream the hidden dim as
    # a trailing reduction axis with an f32 VMEM accumulator (v7x 64 MiB path).
    w_bytes = 2 * d * h * jnp.dtype(w1.dtype).itemsize
    resident = w_bytes <= _VMEM_LIMIT // 2
    th = h if resident else _hidden_tile(h)
    wspec = _invariant_spec if th == h else pl.BlockSpec
    return pl.pallas_call(
        _ff_kernel,
        out_shape=jax.ShapeDtypeStruct((rows, d), x2d.dtype),
        grid_spec=pltpu.PrefetchScalarGridSpec(
            num_scalar_prefetch=0,
            grid=(pl.cdiv(rows, tm), h // th),          # rows parallel, hidden reduction last
            in_specs=[
                pl.BlockSpec((tm, d), lambda i, j: (i, 0)),          # x row tile (also residual)
                _invariant_spec((1, d), lambda i, j: (0, 0)),        # LN gamma
                _invariant_spec((1, d), lambda i, j: (0, 0)),        # LN beta
                wspec((d, th), lambda i, j: (0, j)),                 # w1 hidden slice
                wspec((1, th), lambda i, j: (0, j)),                 # b1 hidden slice
                wspec((th, d), lambda i, j: (j, 0)),                 # w2 hidden slice
                _invariant_spec((1, d), lambda i, j: (0, 0)),        # b2
                _smem_scalar_spec(),                                 # resweight (SMEM scalar)
            ],
            out_specs=pl.BlockSpec((tm, d), lambda i, j: (i, 0)),
            scratch_shapes=[pltpu.VMEM((tm, d), jnp.float32)],       # f32 accumulator
        ),
        compiler_params=_compiler_params(("parallel", "arbitrary")),
    )(x2d, gamma.reshape(1, d), beta.reshape(1, d),
      w1, b1.reshape(1, h), w2, b2.reshape(1, d), rw)


# ----------------------------------------------------------------------------- decoder orchestration
def _self_attention_sublayer(x, p, heads):
    b, s, d = x.shape
    x2 = x.reshape(b * s, d)
    # LN fused into the single fused-QKV projection (one matmul, one activation pass).
    qkv = ln_linear(x2, p["ln_g"], p["ln_b"], p["w_qkv"], p["b_qkv"],
                    out_dtype=jnp.bfloat16)
    attn = self_attention_core(qkv.reshape(b, s, 3 * d), heads)
    out = linear_residual(attn.reshape(b * s, d), p["wo"], p["bo"], x2, p["rw"])
    return out.reshape(b, s, d)


def _cross_attention_sublayer(x, memory, p, heads):
    b, sq, d = x.shape
    sk = memory.shape[1]
    x2 = x.reshape(b * sq, d)
    q = ln_linear(x2, p["ln_g"], p["ln_b"], p["wq"], p["bq"], out_dtype=jnp.bfloat16)
    kv = linear(memory.reshape(b * sk, d), p["w_kv"], p["b_kv"], out_dtype=jnp.bfloat16)
    attn = cross_attention_core(q.reshape(b, sq, d), kv.reshape(b, sk, 2 * d), heads)
    out = linear_residual(attn.reshape(b * sq, d), p["wo"], p["bo"], x2, p["rw"])
    return out.reshape(b, sq, d)


def _ff_sublayer(x, p):
    b, s, d = x.shape
    x2 = x.reshape(b * s, d)
    out = feed_forward(x2, p["ln_g"], p["ln_b"], p["w1"], p["b1"], p["w2"], p["b2"],
                       p["rw"])
    return out.reshape(b, s, d)


@functools.partial(jax.jit, static_argnames=("heads", "num_cls"))
def decoder_forward(x, memory, params, heads, num_cls):
    for lp in params["layers"]:
        x = _self_attention_sublayer(x, lp["sa"], heads)
        x = _cross_attention_sublayer(x, memory, lp["ca"], heads)
        x = _ff_sublayer(x, lp["ff"])
    b, s, d = x.shape
    logits = linear(x.reshape(b * s, d), params["wg"], params["bg"], out_dtype=x.dtype)
    logits = logits[:, :num_cls].reshape(b, s, num_cls)    # drop lane padding of the generator
    return x, logits


# ----------------------------------------------------------------------------- parameter preparation
def _prep_params(params, heads, num_cls):
    """Torch-style f32 params -> kernel layout: fused QKV / KV weight concats,
    bf16 weights (f32 biases / LN / resweight), lane-padded generator weight."""
    wdt = jnp.bfloat16
    layers = []
    for lp in params["layers"]:
        sa, ca, ff = lp["self_attn"], lp["cross_attn"], lp["ff"]
        layers.append(dict(
            sa=dict(
                w_qkv=jnp.concatenate([sa["wq"], sa["wk"], sa["wv"]], axis=1).astype(wdt),
                b_qkv=jnp.concatenate([sa["bq"], sa["bk"], sa["bv"]]),
                wo=sa["wo"].astype(wdt), bo=sa["bo"],
                ln_g=lp["sa_ln_g"], ln_b=lp["sa_ln_b"],
                rw=jnp.reshape(lp["sa_rw"], (1,)).astype(jnp.float32),
            ),
            ca=dict(
                wq=ca["wq"].astype(wdt), bq=ca["bq"],
                w_kv=jnp.concatenate([ca["wk"], ca["wv"]], axis=1).astype(wdt),
                b_kv=jnp.concatenate([ca["bk"], ca["bv"]]),
                wo=ca["wo"].astype(wdt), bo=ca["bo"],
                ln_g=lp["ca_ln_g"], ln_b=lp["ca_ln_b"],
                rw=jnp.reshape(lp["ca_rw"], (1,)).astype(jnp.float32),
            ),
            ff=dict(
                w1=ff["w1"].astype(wdt), b1=ff["b1"],
                w2=ff["w2"].astype(wdt), b2=ff["b2"],
                ln_g=lp["ff_ln_g"], ln_b=lp["ff_ln_b"],
                rw=jnp.reshape(lp["ff_rw"], (1,)).astype(jnp.float32),
            ),
        ))
    dout_p = _round_up(num_cls, 128)        # lane-dense generator stores
    wg = jnp.pad(params["wg"], ((0, 0), (0, dout_p - num_cls))).astype(wdt)
    bg = jnp.pad(params["bg"], (0, dout_p - num_cls))
    return dict(layers=layers, wg=wg, bg=bg)


# ----------------------------------------------------------------------------- pure-JAX reference
def _ref_layernorm(x, g, b):
    mu = jnp.mean(x, -1, keepdims=True)
    var = jnp.mean((x - mu) ** 2, -1, keepdims=True)
    return (x - mu) / jnp.sqrt(var + _LN_EPS) * g + b


def _ref_attention(q_in, k_in, v_in, p, heads, causal):
    b, sq, d = q_in.shape
    sk = k_in.shape[1]
    dk = d // heads
    q = (q_in @ p["wq"] + p["bq"]).reshape(b, sq, heads, dk)
    k = (k_in @ p["wk"] + p["bk"]).reshape(b, sk, heads, dk)
    v = (v_in @ p["wv"] + p["bv"]).reshape(b, sk, heads, dk)
    s = jnp.einsum("bphd,bqhd->bhpq", q, k) / math.sqrt(dk)
    if causal:
        mask = jnp.tril(jnp.ones((sq, sk), bool))
        s = jnp.where(mask[None, None], s, -jnp.inf)
    a = jax.nn.softmax(s, axis=-1)
    o = jnp.einsum("bhpq,bqhd->bhpd", a, v)
    o = o.transpose(0, 2, 1, 3).reshape(b, sq, d)
    return o @ p["wo"] + p["bo"]


def _ref_ff(x, fp):
    h = jax.nn.gelu(x @ fp["w1"] + fp["b1"], approximate=False)
    return jax.nn.gelu(h @ fp["w2"] + fp["b2"], approximate=False)


def _ref_decoder(x, memory, params, heads):
    for lp in params["layers"]:
        xn = _ref_layernorm(x, lp["sa_ln_g"], lp["sa_ln_b"])
        x = x + lp["sa_rw"] * _ref_attention(xn, xn, xn, lp["self_attn"], heads, True)
        xn = _ref_layernorm(x, lp["ca_ln_g"], lp["ca_ln_b"])
        x = x + lp["ca_rw"] * _ref_attention(xn, memory, memory, lp["cross_attn"], heads, False)
        xn = _ref_layernorm(x, lp["ff_ln_g"], lp["ff_ln_b"])
        x = x + lp["ff_rw"] * _ref_ff(xn, lp["ff"])
    logits = x @ params["wg"] + params["bg"]
    return x, logits


# ----------------------------------------------------------------------------- synthetic params
def _linear_params(key, fan_in, fan_out):
    k1, k2 = jax.random.split(key)
    bound = 1.0 / math.sqrt(fan_in)
    w = jax.random.uniform(k1, (fan_in, fan_out), jnp.float32, -bound, bound)
    b = jax.random.uniform(k2, (fan_out,), jnp.float32, -bound, bound)
    return w, b


def _attn_params(key, d):
    ks = jax.random.split(key, 4)
    wq, bq = _linear_params(ks[0], d, d)
    wk, bk = _linear_params(ks[1], d, d)
    wv, bv = _linear_params(ks[2], d, d)
    wo, bo = _linear_params(ks[3], d, d)
    return dict(wq=wq, bq=bq, wk=wk, bk=bk, wv=wv, bv=bv, wo=wo, bo=bo)


def _layer_params(key, d):
    ks = jax.random.split(key, 4)
    w1, b1 = _linear_params(ks[2], d, 4 * d)
    w2, b2 = _linear_params(ks[3], 4 * d, d)
    ones, zeros = jnp.ones((d,), jnp.float32), jnp.zeros((d,), jnp.float32)
    return dict(
        self_attn=_attn_params(ks[0], d),
        cross_attn=_attn_params(ks[1], d),
        ff=dict(w1=w1, b1=b1, w2=w2, b2=b2),
        sa_ln_g=ones, sa_ln_b=zeros,
        ca_ln_g=ones, ca_ln_b=zeros,
        ff_ln_g=ones, ff_ln_b=zeros,
        # PyTorch initializes resweight to 0 (ReZero); nonzero here so every
        # sublayer kernel actually contributes to the tested output.
        sa_rw=jnp.float32(0.5), ca_rw=jnp.float32(0.5), ff_rw=jnp.float32(0.5),
    )


# ----------------------------------------------------------------------------- demo / check
if __name__ == "__main__":
    n_layer, d_model, heads, num_cls = 2, 32, 4, 10
    batch, seq_len, mem_len = 2, 8, 16

    key = jax.random.PRNGKey(0)
    kx, km, kp = jax.random.split(key, 3)
    x = jax.random.normal(kx, (batch, seq_len, d_model), jnp.float32)
    memory = jax.random.normal(km, (batch, mem_len, d_model), jnp.float32)

    lkeys = jax.random.split(kp, n_layer + 1)
    params = dict(layers=[_layer_params(lkeys[i], d_model) for i in range(n_layer)])
    params["wg"], params["bg"] = _linear_params(lkeys[-1], d_model, num_cls)

    dev_params = _prep_params(params, heads, num_cls)      # bf16 weights, fused concats (done once)
    x_out, logits = decoder_forward(x, memory, dev_params, heads=heads, num_cls=num_cls)
    jax.block_until_ready((x_out, logits))

    x_ref, logits_ref = _ref_decoder(x, memory, params, heads)
    assert x_out.shape == (batch, seq_len, d_model)
    assert logits.shape == (batch, seq_len, num_cls)
    # bf16 MXU inputs + approx reciprocal vs the exact f32 reference -> loose but
    # meaningful tolerance (structural bugs produce O(1) errors).
    assert jnp.allclose(x_out, x_ref, atol=4e-2, rtol=4e-2), "decoder output mismatch"
    assert jnp.allclose(logits, logits_ref, atol=4e-2, rtol=4e-2), "generator logits mismatch"

    print("KERNEL_OK")
</pallas_src>

<mosaic_0001>
module attributes {stable_mosaic.version = 11 : i64} {
  func.func @_self_attn_kernel(%arg0: i32, %arg1: memref<1x8x96xbf16, #tpu.memory_space<vmem>>, %arg2: memref<1x8x32xbf16, #tpu.memory_space<vmem>>) attributes {dimension_semantics = [#tpu.dimension_semantics<parallel>], iteration_bounds = array<i64: 2>, scalar_prefetch = 0 : i64, scratch_operands = 0 : i64, tpu.core_type = #tpu.core_type<tc>, window_params = [{transform_indices = @transform_0, window_bounds = array<i64: 1, 8, 96>}, {transform_indices = @transform_1, window_bounds = array<i64: 1, 8, 32>}]} {
    %c0 = arith.constant 0 : index
    %c0_0 = arith.constant 0 : index
    %c0_1 = arith.constant 0 : index
    %0 = vector.load %arg1[%c0, %c0_0, %c0_1] : memref<1x8x96xbf16, #tpu.memory_space<vmem>>, vector<1x8x8xbf16>
    %1 = vector.shape_cast %0 : vector<1x8x8xbf16> to vector<8x8xbf16>
    %c0_2 = arith.constant 0 : index
    %c0_3 = arith.constant 0 : index
    %c32 = arith.constant 32 : index
    %2 = vector.load %arg1[%c0_2, %c0_3, %c32] : memref<1x8x96xbf16, #tpu.memory_space<vmem>>, vector<1x8x8xbf16>
    %3 = vector.shape_cast %2 : vector<1x8x8xbf16> to vector<8x8xbf16>
    %c0_4 = arith.constant 0 : index
    %c0_5 = arith.constant 0 : index
    %c64 = arith.constant 64 : index
    %4 = vector.load %arg1[%c0_4, %c0_5, %c64] : memref<1x8x96xbf16, #tpu.memory_space<vmem>>, vector<1x8x8xbf16>
    %5 = vector.shape_cast %4 : vector<1x8x8xbf16> to vector<8x8xbf16>
    %cst = arith.constant dense<0.000000e+00> : vector<8x8xf32>
    %6 = tpu.matmul %1, %3, %cst {dimension_numbers = #tpu.dot_dimension_numbers<[1], [1], [0], [0], [0, 0, 1, 0], [], []>} : vector<8x8xbf16>, vector<8x8xbf16>, vector<8x8xf32> -> vector<8x8xf32>
    %cst_6 = arith.constant 0.353553385 : f32
    %7 = vector.broadcast %cst_6 : f32 to vector<8x8xf32>
    %8 = arith.mulf %6, %7 : vector<8x8xf32>
    %9 = tpu.iota {dimensions = array<i32: 0>} : vector<8x8xi32>
    %10 = tpu.iota {dimensions = array<i32: 1>} : vector<8x8xi32>
    %11 = arith.cmpi sle, %10, %9 : vector<8x8xi32>
    %cst_7 = arith.constant -1.000000e+30 : f32
    %12 = vector.broadcast %cst_7 : f32 to vector<8x8xf32>
    %13 = arith.select %11, %8, %12 : vector<8x8xi1>, vector<8x8xf32>
    %cst_8 = arith.constant dense<0xFF800000> : vector<8xf32>
    %14 = vector.multi_reduction <maximumf>, %13, %cst_8 [1] : vector<8x8xf32> to vector<8xf32>
    %15 = vector.shape_cast %14 : vector<8xf32> to vector<8x1xf32>
    %16 = vector.broadcast %15 : vector<8x1xf32> to vector<8x8xf32>
    %17 = arith.subf %13, %16 : vector<8x8xf32>
    %18 = math.exp %17 : vector<8x8xf32>
    %cst_9 = arith.constant dense<0.000000e+00> : vector<8xf32>
    %19 = vector.multi_reduction <add>, %18, %cst_9 [1] : vector<8x8xf32> to vector<8xf32>
    %20 = vector.shape_cast %19 : vector<8xf32> to vector<8x1xf32>
    %21 = tpu.reciprocal %20 {approx = true} : vector<8x1xf32> -> vector<8x1xf32>
    %22 = vector.broadcast %21 : vector<8x1xf32> to vector<8x8xf32>
    %23 = arith.mulf %18, %22 : vector<8x8xf32>
    %24 = arith.truncf %23 : vector<8x8xf32> to vector<8x8xbf16>
    %cst_10 = arith.constant dense<0.000000e+00> : vector<8x8xf32>
    %25 = tpu.matmul %24, %5, %cst_10 {dimension_numbers = #tpu.dot_dimension_numbers<[1], [0], [0], [1], [0, 0, 1, 1], [], []>} : vector<8x8xbf16>, vector<8x8xbf16>, vector<8x8xf32> -> vector<8x8xf32>
    %26 = arith.truncf %25 : vector<8x8xf32> to vector<8x8xbf16>
    %c0_11 = arith.constant 0 : index
    %c0_12 = arith.constant 0 : index
    %c0_13 = arith.constant 0 : index
    %27 = vector.load %arg2[%c0_11, %c0_12, %c0_13] : memref<1x8x32xbf16, #tpu.memory_space<vmem>>, vector<1x8x8xbf16>
    %28 = vector.shape_cast %27 : vector<1x8x8xbf16> to vector<8x8xbf16>
    %29 = vector.shape_cast %26 : vector<8x8xbf16> to vector<1x8x8xbf16>
    tpu.vector_store %arg2[%c0_11, %c0_12, %c0_13], %29 {strides = array<i32>} : memref<1x8x32xbf16, #tpu.memory_space<vmem>>, vector<1x8x8xbf16>,
    %c0_14 = arith.constant 0 : index
    %c0_15 = arith.constant 0 : index
    %c8 = arith.constant 8 : index
    %30 = vector.load %arg1[%c0_14, %c0_15, %c8] : memref<1x8x96xbf16, #tpu.memory_space<vmem>>, vector<1x8x8xbf16>
    %31 = vector.shape_cast %30 : vector<1x8x8xbf16> to vector<8x8xbf16>
    %c0_16 = arith.constant 0 : index
    %c0_17 = arith.constant 0 : index
    %c40 = arith.constant 40 : index
    %32 = vector.load %arg1[%c0_16, %c0_17, %c40] : memref<1x8x96xbf16, #tpu.memory_space<vmem>>, vector<1x8x8xbf16>
    %33 = vector.shape_cast %32 : vector<1x8x8xbf16> to vector<8x8xbf16>
    %c0_18 = arith.constant 0 : index
    %c0_19 = arith.constant 0 : index
    %c72 = arith.constant 72 : index
    %34 = vector.load %arg1[%c0_18, %c0_19, %c72] : memref<1x8x96xbf16, #tpu.memory_space<vmem>>, vector<1x8x8xbf16>
    %35 = vector.shape_cast %34 : vector<1x8x8xbf16> to vector<8x8xbf16>
    %cst_20 = arith.constant dense<0.000000e+00> : vector<8x8xf32>
    %36 = tpu.matmul %31, %33, %cst_20 {dimension_numbers = #tpu.dot_dimension_numbers<[1], [1], [0], [0], [0, 0, 1, 0], [], []>} : vector<8x8xbf16>, vector<8x8xbf16>, vector<8x8xf32> -> vector<8x8xf32>
    %cst_21 = arith.constant 0.353553385 : f32
    %37 = vector.broadcast %cst_21 : f32 to vector<8x8xf32>
    %38 = arith.mulf %36, %37 : vector<8x8xf32>
    %39 = tpu.iota {dimensions = array<i32: 0>} : vector<8x8xi32>
    %40 = tpu.iota {dimensions = array<i32: 1>} : vector<8x8xi32>
    %41 = arith.cmpi sle, %40, %39 : vector<8x8xi32>
    %cst_22 = arith.constant -1.000000e+30 : f32
    %42 = vector.broadcast %cst_22 : f32 to vector<8x8xf32>
    %43 = arith.select %41, %38, %42 : vector<8x8xi1>, vector<8x8xf32>
    %cst_23 = arith.constant dense<0xFF800000> : vector<8xf32>
    %44 = vector.multi_reduction <maximumf>, %43, %cst_23 [1] : vector<8x8xf32> to vector<8xf32>
    %45 = vector.shape_cast %44 : vector<8xf32> to vector<8x1xf32>
    %46 = vector.broadcast %45 : vector<8x1xf32> to vector<8x8xf32>
    %47 = arith.subf %43, %46 : vector<8x8xf32>
    %48 = math.exp %47 : vector<8x8xf32>
    %cst_24 = arith.constant dense<0.000000e+00> : vector<8xf32>
    %49 = vector.multi_reduction <add>, %48, %cst_24 [1] : vector<8x8xf32> to vector<8xf32>
    %50 = vector.shape_cast %49 : vector<8xf32> to vector<8x1xf32>
    %51 = tpu.reciprocal %50 {approx = true} : vector<8x1xf32> -> vector<8x1xf32>
    %52 = vector.broadcast %51 : vector<8x1xf32> to vector<8x8xf32>
    %53 = arith.mulf %48, %52 : vector<8x8xf32>
    %54 = arith.truncf %53 : vector<8x8xf32> to vector<8x8xbf16>
    %cst_25 = arith.constant dense<0.000000e+00> : vector<8x8xf32>
    %55 = tpu.matmul %54, %35, %cst_25 {dimension_numbers = #tpu.dot_dimension_numbers<[1], [0], [0], [1], [0, 0, 1, 1], [], []>} : vector<8x8xbf16>, vector<8x8xbf16>, vector<8x8xf32> -> vector<8x8xf32>
    %56 = arith.truncf %55 : vector<8x8xf32> to vector<8x8xbf16>
    %c0_26 = arith.constant 0 : index
    %c0_27 = arith.constant 0 : index
    %c8_28 = arith.constant 8 : index
    %57 = vector.load %arg2[%c0_26, %c0_27, %c8_28] : memref<1x8x32xbf16, #tpu.memory_space<vmem>>, vector<1x8x8xbf16>
    %58 = vector.shape_cast %57 : vector<1x8x8xbf16> to vector<8x8xbf16>
    %59 = vector.shape_cast %56 : vector<8x8xbf16> to vector<1x8x8xbf16>
    tpu.vector_store %arg2[%c0_26, %c0_27, %c8_28], %59 {strides = array<i32>} : memref<1x8x32xbf16, #tpu.memory_space<vmem>>, vector<1x8x8xbf16>,
    %c0_29 = arith.constant 0 : index
    %c0_30 = arith.constant 0 : index
    %c16 = arith.constant 16 : index
    %60 = vector.load %arg1[%c0_29, %c0_30, %c16] : memref<1x8x96xbf16, #tpu.memory_space<vmem>>, vector<1x8x8xbf16>
    %61 = vector.shape_cast %60 : vector<1x8x8xbf16> to vector<8x8xbf16>
    %c0_31 = arith.constant 0 : index
    %c0_32 = arith.constant 0 : index
    %c48 = arith.constant 48 : index
    %62 = vector.load %arg1[%c0_31, %c0_32, %c48] : memref<1x8x96xbf16, #tpu.memory_space<vmem>>, vector<1x8x8xbf16>
    %63 = vector.shape_cast %62 : vector<1x8x8xbf16> to vector<8x8xbf16>
    %c0_33 = arith.constant 0 : index
    %c0_34 = arith.constant 0 : index
    %c80 = arith.constant 80 : index
    %64 = vector.load %arg1[%c0_33, %c0_34, %c80] : memref<1x8x96xbf16, #tpu.memory_space<vmem>>, vector<1x8x8xbf16>
    %65 = vector.shape_cast %64 : vector<1x8x8xbf16> to vector<8x8xbf16>
    %cst_35 = arith.constant dense<0.000000e+00> : vector<8x8xf32>
    %66 = tpu.matmul %61, %63, %cst_35 {dimension_numbers = #tpu.dot_dimension_numbers<[1], [1], [0], [0], [0, 0, 1, 0], [], []>} : vector<8x8xbf16>, vector<8x8xbf16>, vector<8x8xf32> -> vector<8x8xf32>
    %cst_36 = arith.constant 0.353553385 : f32
    %67 = vector.broadcast %cst_36 : f32 to vector<8x8xf32>
    %68 = arith.mulf %66, %67 : vector<8x8xf32>
    %69 = tpu.iota {dimensions = array<i32: 0>} : vector<8x8xi32>
    %70 = tpu.iota {dimensions = array<i32: 1>} : vector<8x8xi32>
    %71 = arith.cmpi sle, %70, %69 : vector<8x8xi32>
    %cst_37 = arith.constant -1.000000e+30 : f32
    %72 = vector.broadcast %cst_37 : f32 to vector<8x8xf32>
    %73 = arith.select %71, %68, %72 : vector<8x8xi1>, vector<8x8xf32>
    %cst_38 = arith.constant dense<0xFF800000> : vector<8xf32>
    %74 = vector.multi_reduction <maximumf>, %73, %cst_38 [1] : vector<8x8xf32> to vector<8xf32>
    %75 = vector.shape_cast %74 : vector<8xf32> to vector<8x1xf32>
    %76 = vector.broadcast %75 : vector<8x1xf32> to vector<8x8xf32>
    %77 = arith.subf %73, %76 : vector<8x8xf32>
    %78 = math.exp %77 : vector<8x8xf32>
    %cst_39 = arith.constant dense<0.000000e+00> : vector<8xf32>
    %79 = vector.multi_reduction <add>, %78, %cst_39 [1] : vector<8x8xf32> to vector<8xf32>
    %80 = vector.shape_cast %79 : vector<8xf32> to vector<8x1xf32>
    %81 = tpu.reciprocal %80 {approx = true} : vector<8x1xf32> -> vector<8x1xf32>
    %82 = vector.broadcast %81 : vector<8x1xf32> to vector<8x8xf32>
    %83 = arith.mulf %78, %82 : vector<8x8xf32>
    %84 = arith.truncf %83 : vector<8x8xf32> to vector<8x8xbf16>
    %cst_40 = arith.constant dense<0.000000e+00> : vector<8x8xf32>
    %85 = tpu.matmul %84, %65, %cst_40 {dimension_numbers = #tpu.dot_dimension_numbers<[1], [0], [0], [1], [0, 0, 1, 1], [], []>} : vector<8x8xbf16>, vector<8x8xbf16>, vector<8x8xf32> -> vector<8x8xf32>
    %86 = arith.truncf %85 : vector<8x8xf32> to vector<8x8xbf16>
    %c0_41 = arith.constant 0 : index
    %c0_42 = arith.constant 0 : index
    %c16_43 = arith.constant 16 : index
    %87 = vector.load %arg2[%c0_41, %c0_42, %c16_43] : memref<1x8x32xbf16, #tpu.memory_space<vmem>>, vector<1x8x8xbf16>
    %88 = vector.shape_cast %87 : vector<1x8x8xbf16> to vector<8x8xbf16>
    %89 = vector.shape_cast %86 : vector<8x8xbf16> to vector<1x8x8xbf16>
    tpu.vector_store %arg2[%c0_41, %c0_42, %c16_43], %89 {strides = array<i32>} : memref<1x8x32xbf16, #tpu.memory_space<vmem>>, vector<1x8x8xbf16>,
    %c0_44 = arith.constant 0 : index
    %c0_45 = arith.constant 0 : index
    %c24 = arith.constant 24 : index
    %90 = vector.load %arg1[%c0_44, %c0_45, %c24] : memref<1x8x96xbf16, #tpu.memory_space<vmem>>, vector<1x8x8xbf16>
    %91 = vector.shape_cast %90 : vector<1x8x8xbf16> to vector<8x8xbf16>
    %c0_46 = arith.constant 0 : index
    %c0_47 = arith.constant 0 : index
    %c56 = arith.constant 56 : index
    %92 = vector.load %arg1[%c0_46, %c0_47, %c56] : memref<1x8x96xbf16, #tpu.memory_space<vmem>>, vector<1x8x8xbf16>
    %93 = vector.shape_cast %92 : vector<1x8x8xbf16> to vector<8x8xbf16>
    %c0_48 = arith.constant 0 : index
    %c0_49 = arith.constant 0 : index
    %c88 = arith.constant 88 : index
    %94 = vector.load %arg1[%c0_48, %c0_49, %c88] : memref<1x8x96xbf16, #tpu.memory_space<vmem>>, vector<1x8x8xbf16>
    %95 = vector.shape_cast %94 : vector<1x8x8xbf16> to vector<8x8xbf16>
    %cst_50 = arith.constant dense<0.000000e+00> : vector<8x8xf32>
    %96 = tpu.matmul %91, %93, %cst_50 {dimension_numbers = #tpu.dot_dimension_numbers<[1], [1], [0], [0], [0, 0, 1, 0], [], []>} : vector<8x8xbf16>, vector<8x8xbf16>, vector<8x8xf32> -> vector<8x8xf32>
    %cst_51 = arith.constant 0.353553385 : f32
    %97 = vector.broadcast %cst_51 : f32 to vector<8x8xf32>
    %98 = arith.mulf %96, %97 : vector<8x8xf32>
    %99 = tpu.iota {dimensions = array<i32: 0>} : vector<8x8xi32>
    %100 = tpu.iota {dimensions = array<i32: 1>} : vector<8x8xi32>
    %101 = arith.cmpi sle, %100, %99 : vector<8x8xi32>
    %cst_52 = arith.constant -1.000000e+30 : f32
    %102 = vector.broadcast %cst_52 : f32 to vector<8x8xf32>
    %103 = arith.select %101, %98, %102 : vector<8x8xi1>, vector<8x8xf32>
    %cst_53 = arith.constant dense<0xFF800000> : vector<8xf32>
    %104 = vector.multi_reduction <maximumf>, %103, %cst_53 [1] : vector<8x8xf32> to vector<8xf32>
    %105 = vector.shape_cast %104 : vector<8xf32> to vector<8x1xf32>
    %106 = vector.broadcast %105 : vector<8x1xf32> to vector<8x8xf32>
    %107 = arith.subf %103, %106 : vector<8x8xf32>
    %108 = math.exp %107 : vector<8x8xf32>
    %cst_54 = arith.constant dense<0.000000e+00> : vector<8xf32>
    %109 = vector.multi_reduction <add>, %108, %cst_54 [1] : vector<8x8xf32> to vector<8xf32>
    %110 = vector.shape_cast %109 : vector<8xf32> to vector<8x1xf32>
    %111 = tpu.reciprocal %110 {approx = true} : vector<8x1xf32> -> vector<8x1xf32>
    %112 = vector.broadcast %111 : vector<8x1xf32> to vector<8x8xf32>
    %113 = arith.mulf %108, %112 : vector<8x8xf32>
    %114 = arith.truncf %113 : vector<8x8xf32> to vector<8x8xbf16>
    %cst_55 = arith.constant dense<0.000000e+00> : vector<8x8xf32>
    %115 = tpu.matmul %114, %95, %cst_55 {dimension_numbers = #tpu.dot_dimension_numbers<[1], [0], [0], [1], [0, 0, 1, 1], [], []>} : vector<8x8xbf16>, vector<8x8xbf16>, vector<8x8xf32> -> vector<8x8xf32>
    %116 = arith.truncf %115 : vector<8x8xf32> to vector<8x8xbf16>
    %c0_56 = arith.constant 0 : index
    %c0_57 = arith.constant 0 : index
    %c24_58 = arith.constant 24 : index
    %117 = vector.load %arg2[%c0_56, %c0_57, %c24_58] : memref<1x8x32xbf16, #tpu.memory_space<vmem>>, vector<1x8x8xbf16>
    %118 = vector.shape_cast %117 : vector<1x8x8xbf16> to vector<8x8xbf16>
    %119 = vector.shape_cast %116 : vector<8x8xbf16> to vector<1x8x8xbf16>
    tpu.vector_store %arg2[%c0_56, %c0_57, %c24_58], %119 {strides = array<i32>} : memref<1x8x32xbf16, #tpu.memory_space<vmem>>, vector<1x8x8xbf16>,
    return
  }
  func.func @transform_0(%arg0: i32) -> (i32, i32, i32) {
    %c0_i32 = arith.constant 0 : i32
    %c0_i32_0 = arith.constant 0 : i32
    %c0_i32_1 = arith.constant 0 : i32
    return %arg0, %c0_i32, %c0_i32_0 : i32, i32, i32
  }
  func.func @transform_1(%arg0: i32) -> (i32, i32, i32) {
    %c0_i32 = arith.constant 0 : i32
    %c0_i32_0 = arith.constant 0 : i32
    %c0_i32_1 = arith.constant 0 : i32
    return %arg0, %c0_i32, %c0_i32_0 : i32, i32, i32
  }
}

module attributes {stable_mosaic.version = 11 : i64} {
  func.func @_ln_linear_kernel(%arg0: i32, %arg1: memref<16x32xf32, #tpu.memory_space<vmem>>, %arg2: memref<1x32xf32, #tpu.memory_space<vmem>>, %arg3: memref<1x32xf32, #tpu.memory_space<vmem>>, %arg4: memref<32x96xbf16, #tpu.memory_space<vmem>>, %arg5: memref<1x96xf32, #tpu.memory_space<vmem>>, %arg6: memref<16x96xbf16, #tpu.memory_space<vmem>>) attributes {dimension_semantics = [#tpu.dimension_semantics<parallel>], iteration_bounds = array<i64: 1>, scalar_prefetch = 0 : i64, scratch_operands = 0 : i64, tpu.core_type = #tpu.core_type<tc>, window_params = [{transform_indices = @transform_0, window_bounds = array<i64: 16, 32>}, {pipeline_mode = #tpu.pipeline_mode<synchronous>, transform_indices = @transform_1, window_bounds = array<i64: 1, 32>}, {pipeline_mode = #tpu.pipeline_mode<synchronous>, transform_indices = @transform_2, window_bounds = array<i64: 1, 32>}, {pipeline_mode = #tpu.pipeline_mode<synchronous>, transform_indices = @transform_3, window_bounds = array<i64: 32, 96>}, {pipeline_mode = #tpu.pipeline_mode<synchronous>, transform_indices = @transform_4, window_bounds = array<i64: 1, 96>}, {transform_indices = @transform_5, window_bounds = array<i64: 16, 96>}]} {
    %c0 = arith.constant 0 : index
    %c0_0 = arith.constant 0 : index
    %0 = vector.load %arg1[%c0, %c0_0] : memref<16x32xf32, #tpu.memory_space<vmem>>, vector<16x32xf32>
    %c0_1 = arith.constant 0 : index
    %c0_2 = arith.constant 0 : index
    %1 = vector.load %arg2[%c0_1, %c0_2] : memref<1x32xf32, #tpu.memory_space<vmem>>, vector<1x32xf32>
    %c0_3 = arith.constant 0 : index
    %c0_4 = arith.constant 0 : index
    %2 = vector.load %arg3[%c0_3, %c0_4] : memref<1x32xf32, #tpu.memory_space<vmem>>, vector<1x32xf32>
    %cst = arith.constant dense<0.000000e+00> : vector<16xf32>
    %3 = vector.multi_reduction <add>, %0, %cst [1] : vector<16x32xf32> to vector<16xf32>
    %4 = vector.shape_cast %3 : vector<16xf32> to vector<16x1xf32>
    %cst_5 = arith.constant 3.200000e+01 : f32
    %5 = vector.broadcast %cst_5 : f32 to vector<16x1xf32>
    %6 = arith.divf %4, %5 : vector<16x1xf32>
    %7 = vector.broadcast %6 : vector<16x1xf32> to vector<16x32xf32>
    %8 = arith.subf %0, %7 : vector<16x32xf32>
    %9 = arith.mulf %8, %8 : vector<16x32xf32>
    %cst_6 = arith.constant dense<0.000000e+00> : vector<16xf32>
    %10 = vector.multi_reduction <add>, %9, %cst_6 [1] : vector<16x32xf32> to vector<16xf32>
    %11 = vector.shape_cast %10 : vector<16xf32> to vector<16x1xf32>
    %cst_7 = arith.constant 3.200000e+01 : f32
    %12 = vector.broadcast %cst_7 : f32 to vector<16x1xf32>
    %13 = arith.divf %11, %12 : vector<16x1xf32>
    %cst_8 = arith.constant 9.99999974E-6 : f32
    %14 = vector.broadcast %cst_8 : f32 to vector<16x1xf32>
    %15 = arith.addf %13, %14 : vector<16x1xf32>
    %16 = math.rsqrt %15 : vector<16x1xf32>
    %17 = vector.broadcast %16 : vector<16x1xf32> to vector<16x32xf32>
    %18 = arith.mulf %8, %17 : vector<16x32xf32>
    %19 = vector.broadcast %1 : vector<1x32xf32> to vector<16x32xf32>
    %20 = arith.mulf %18, %19 : vector<16x32xf32>
    %21 = vector.broadcast %2 : vector<1x32xf32> to vector<16x32xf32>
    %22 = arith.addf %20, %21 : vector<16x32xf32>
    %c0_9 = arith.constant 0 : index
    %c0_10 = arith.constant 0 : index
    %23 = vector.load %arg4[%c0_9, %c0_10] : memref<32x96xbf16, #tpu.memory_space<vmem>>, vector<32x96xbf16>
    %24 = arith.truncf %22 : vector<16x32xf32> to vector<16x32xbf16>
    %cst_11 = arith.constant dense<0.000000e+00> : vector<16x96xf32>
    %25 = tpu.matmul %24, %23, %cst_11 {dimension_numbers = #tpu.dot_dimension_numbers<[1], [0], [0], [1], [0, 0, 1, 1], [], []>} : vector<16x32xbf16>, vector<32x96xbf16>, vector<16x96xf32> -> vector<16x96xf32>
    %c0_12 = arith.constant 0 : index
    %c0_13 = arith.constant 0 : index
    %26 = vector.load %arg5[%c0_12, %c0_13] : memref<1x96xf32, #tpu.memory_space<vmem>>, vector<1x96xf32>
    %27 = vector.broadcast %26 : vector<1x96xf32> to vector<16x96xf32>
    %28 = arith.addf %25, %27 : vector<16x96xf32>
    %29 = arith.truncf %28 : vector<16x96xf32> to vector<16x96xbf16>
    %c0_14 = arith.constant 0 : index
    %c0_15 = arith.constant 0 : index
    %30 = vector.load %arg6[%c0_14, %c0_15] : memref<16x96xbf16, #tpu.memory_space<vmem>>, vector<16x96xbf16>
    tpu.vector_store %arg6[%c0_14, %c0_15], %29 {strides = array<i32>} : memref<16x96xbf16, #tpu.memory_space<vmem>>, vector<16x96xbf16>,
    return
  }
  func.func @transform_0(%arg0: i32) -> (i32, i32) {
    %c0_i32 = arith.constant 0 : i32
    %c0_i32_0 = arith.constant 0 : i32
    return %arg0, %c0_i32 : i32, i32
  }
  func.func @transform_1(%arg0: i32) -> (i32, i32) {
    %c0_i32 = arith.constant 0 : i32
    %c0_i32_0 = arith.constant 0 : i32
    %c0_i32_1 = arith.constant 0 : i32
    return %c0_i32, %c0_i32_0 : i32, i32
  }
  func.func @transform_2(%arg0: i32) -> (i32, i32) {
    %c0_i32 = arith.constant 0 : i32
    %c0_i32_0 = arith.constant 0 : i32
    %c0_i32_1 = arith.constant 0 : i32
    return %c0_i32, %c0_i32_0 : i32, i32
  }
  func.func @transform_3(%arg0: i32) -> (i32, i32) {
    %c0_i32 = arith.constant 0 : i32
    %c0_i32_0 = arith.constant 0 : i32
    %c0_i32_1 = arith.constant 0 : i32
    return %c0_i32, %c0_i32_0 : i32, i32
  }
  func.func @transform_4(%arg0: i32) -> (i32, i32) {
    %c0_i32 = arith.constant 0 : i32
    %c0_i32_0 = arith.constant 0 : i32
    %c0_i32_1 = arith.constant 0 : i32
    return %c0_i32, %c0_i32_0 : i32, i32
  }
  func.func @transform_5(%arg0: i32) -> (i32, i32) {
    %c0_i32 = arith.constant 0 : i32
    %c0_i32_0 = arith.constant 0 : i32
    return %arg0, %c0_i32 : i32, i32
  }
}

module attributes {stable_mosaic.version = 11 : i64} {
  func.func @_ln_linear_kernel(%arg0: i32, %arg1: memref<16x32xf32, #tpu.memory_space<vmem>>, %arg2: memref<1x32xf32, #tpu.memory_space<vmem>>, %arg3: memref<1x32xf32, #tpu.memory_space<vmem>>, %arg4: memref<32x32xbf16, #tpu.memory_space<vmem>>, %arg5: memref<1x32xf32, #tpu.memory_space<vmem>>, %arg6: memref<16x32xbf16, #tpu.memory_space<vmem>>) attributes {dimension_semantics = [#tpu.dimension_semantics<parallel>], iteration_bounds = array<i64: 1>, scalar_prefetch = 0 : i64, scratch_operands = 0 : i64, tpu.core_type = #tpu.core_type<tc>, window_params = [{transform_indices = @transform_0, window_bounds = array<i64: 16, 32>}, {pipeline_mode = #tpu.pipeline_mode<synchronous>, transform_indices = @transform_1, window_bounds = array<i64: 1, 32>}, {pipeline_mode = #tpu.pipeline_mode<synchronous>, transform_indices = @transform_2, window_bounds = array<i64: 1, 32>}, {pipeline_mode = #tpu.pipeline_mode<synchronous>, transform_indices = @transform_3, window_bounds = array<i64: 32, 32>}, {pipeline_mode = #tpu.pipeline_mode<synchronous>, transform_indices = @transform_4, window_bounds = array<i64: 1, 32>}, {transform_indices = @transform_5, window_bounds = array<i64: 16, 32>}]} {
    %c0 = arith.constant 0 : index
    %c0_0 = arith.constant 0 : index
    %0 = vector.load %arg1[%c0, %c0_0] : memref<16x32xf32, #tpu.memory_space<vmem>>, vector<16x32xf32>
    %c0_1 = arith.constant 0 : index
    %c0_2 = arith.constant 0 : index
    %1 = vector.load %arg2[%c0_1, %c0_2] : memref<1x32xf32, #tpu.memory_space<vmem>>, vector<1x32xf32>
    %c0_3 = arith.constant 0 : index
    %c0_4 = arith.constant 0 : index
    %2 = vector.load %arg3[%c0_3, %c0_4] : memref<1x32xf32, #tpu.memory_space<vmem>>, vector<1x32xf32>
    %cst = arith.constant dense<0.000000e+00> : vector<16xf32>
    %3 = vector.multi_reduction <add>, %0, %cst [1] : vector<16x32xf32> to vector<16xf32>
    %4 = vector.shape_cast %3 : vector<16xf32> to vector<16x1xf32>
    %cst_5 = arith.constant 3.200000e+01 : f32
    %5 = vector.broadcast %cst_5 : f32 to vector<16x1xf32>
    %6 = arith.divf %4, %5 : vector<16x1xf32>
    %7 = vector.broadcast %6 : vector<16x1xf32> to vector<16x32xf32>
    %8 = arith.subf %0, %7 : vector<16x32xf32>
    %9 = arith.mulf %8, %8 : vector<16x32xf32>
    %cst_6 = arith.constant dense<0.000000e+00> : vector<16xf32>
    %10 = vector.multi_reduction <add>, %9, %cst_6 [1] : vector<16x32xf32> to vector<16xf32>
    %11 = vector.shape_cast %10 : vector<16xf32> to vector<16x1xf32>
    %cst_7 = arith.constant 3.200000e+01 : f32
    %12 = vector.broadcast %cst_7 : f32 to vector<16x1xf32>
    %13 = arith.divf %11, %12 : vector<16x1xf32>
    %cst_8 = arith.constant 9.99999974E-6 : f32
    %14 = vector.broadcast %cst_8 : f32 to vector<16x1xf32>
    %15 = arith.addf %13, %14 : vector<16x1xf32>
    %16 = math.rsqrt %15 : vector<16x1xf32>
    %17 = vector.broadcast %16 : vector<16x1xf32> to vector<16x32xf32>
    %18 = arith.mulf %8, %17 : vector<16x32xf32>
    %19 = vector.broadcast %1 : vector<1x32xf32> to vector<16x32xf32>
    %20 = arith.mulf %18, %19 : vector<16x32xf32>
    %21 = vector.broadcast %2 : vector<1x32xf32> to vector<16x32xf32>
    %22 = arith.addf %20, %21 : vector<16x32xf32>
    %c0_9 = arith.constant 0 : index
    %c0_10 = arith.constant 0 : index
    %23 = vector.load %arg4[%c0_9, %c0_10] : memref<32x32xbf16, #tpu.memory_space<vmem>>, vector<32x32xbf16>
    %24 = arith.truncf %22 : vector<16x32xf32> to vector<16x32xbf16>
    %cst_11 = arith.constant dense<0.000000e+00> : vector<16x32xf32>
    %25 = tpu.matmul %24, %23, %cst_11 {dimension_numbers = #tpu.dot_dimension_numbers<[1], [0], [0], [1], [0, 0, 1, 1], [], []>} : vector<16x32xbf16>, vector<32x32xbf16>, vector<16x32xf32> -> vector<16x32xf32>
    %c0_12 = arith.constant 0 : index
    %c0_13 = arith.constant 0 : index
    %26 = vector.load %arg5[%c0_12, %c0_13] : memref<1x32xf32, #tpu.memory_space<vmem>>, vector<1x32xf32>
    %27 = vector.broadcast %26 : vector<1x32xf32> to vector<16x32xf32>
    %28 = arith.addf %25, %27 : vector<16x32xf32>
    %29 = arith.truncf %28 : vector<16x32xf32> to vector<16x32xbf16>
    %c0_14 = arith.constant 0 : index
    %c0_15 = arith.constant 0 : index
    %30 = vector.load %arg6[%c0_14, %c0_15] : memref<16x32xbf16, #tpu.memory_space<vmem>>, vector<16x32xbf16>
    tpu.vector_store %arg6[%c0_14, %c0_15], %29 {strides = array<i32>} : memref<16x32xbf16, #tpu.memory_space<vmem>>, vector<16x32xbf16>,
    return
  }
  func.func @transform_0(%arg0: i32) -> (i32, i32) {
    %c0_i32 = arith.constant 0 : i32
    %c0_i32_0 = arith.constant 0 : i32
    return %arg0, %c0_i32 : i32, i32
  }
  func.func @transform_1(%arg0: i32) -> (i32, i32) {
    %c0_i32 = arith.constant 0 : i32
    %c0_i32_0 = arith.constant 0 : i32
    %c0_i32_1 = arith.constant 0 : i32
    return %c0_i32, %c0_i32_0 : i32, i32
  }
  func.func @transform_2(%arg0: i32) -> (i32, i32) {
    %c0_i32 = arith.constant 0 : i32
    %c0_i32_0 = arith.constant 0 : i32
    %c0_i32_1 = arith.constant 0 : i32
    return %c0_i32, %c0_i32_0 : i32, i32
  }
  func.func @transform_3(%arg0: i32) -> (i32, i32) {
    %c0_i32 = arith.constant 0 : i32
    %c0_i32_0 = arith.constant 0 : i32
    %c0_i32_1 = arith.constant 0 : i32
    return %c0_i32, %c0_i32_0 : i32, i32
  }
  func.func @transform_4(%arg0: i32) -> (i32, i32) {
    %c0_i32 = arith.constant 0 : i32
    %c0_i32_0 = arith.constant 0 : i32
    %c0_i32_1 = arith.constant 0 : i32
    return %c0_i32, %c0_i32_0 : i32, i32
  }
  func.func @transform_5(%arg0: i32) -> (i32, i32) {
    %c0_i32 = arith.constant 0 : i32
    %c0_i32_0 = arith.constant 0 : i32
    return %arg0, %c0_i32 : i32, i32
  }
}

module attributes {stable_mosaic.version = 11 : i64} {
  func.func @_linear_residual_kernel(%arg0: i32, %arg1: memref<16x32xbf16, #tpu.memory_space<vmem>>, %arg2: memref<32x32xbf16, #tpu.memory_space<vmem>>, %arg3: memref<1x32xf32, #tpu.memory_space<vmem>>, %arg4: memref<16x32xf32, #tpu.memory_space<vmem>>, %arg5: memref<1xf32, #tpu.memory_space<smem>>, %arg6: memref<16x32xf32, #tpu.memory_space<vmem>>) attributes {dimension_semantics = [#tpu.dimension_semantics<parallel>], iteration_bounds = array<i64: 1>, scalar_prefetch = 0 : i64, scratch_operands = 0 : i64, tpu.core_type = #tpu.core_type<tc>, window_params = [{transform_indices = @transform_0, window_bounds = array<i64: 16, 32>}, {pipeline_mode = #tpu.pipeline_mode<synchronous>, transform_indices = @transform_1, window_bounds = array<i64: 32, 32>}, {pipeline_mode = #tpu.pipeline_mode<synchronous>, transform_indices = @transform_2, window_bounds = array<i64: 1, 32>}, {transform_indices = @transform_3, window_bounds = array<i64: 16, 32>}, {transform_indices = @transform_4, window_bounds = array<i64: 1>}, {transform_indices = @transform_5, window_bounds = array<i64: 16, 32>}]} {
    %c0 = arith.constant 0 : index
    %c0_0 = arith.constant 0 : index
    %0 = vector.load %arg1[%c0, %c0_0] : memref<16x32xbf16, #tpu.memory_space<vmem>>, vector<16x32xbf16>
    %c0_1 = arith.constant 0 : index
    %c0_2 = arith.constant 0 : index
    %1 = vector.load %arg2[%c0_1, %c0_2] : memref<32x32xbf16, #tpu.memory_space<vmem>>, vector<32x32xbf16>
    %cst = arith.constant dense<0.000000e+00> : vector<16x32xf32>
    %2 = tpu.matmul %0, %1, %cst {dimension_numbers = #tpu.dot_dimension_numbers<[1], [0], [0], [1], [0, 0, 1, 1], [], []>} : vector<16x32xbf16>, vector<32x32xbf16>, vector<16x32xf32> -> vector<16x32xf32>
    %c0_3 = arith.constant 0 : index
    %c0_4 = arith.constant 0 : index
    %3 = vector.load %arg3[%c0_3, %c0_4] : memref<1x32xf32, #tpu.memory_space<vmem>>, vector<1x32xf32>
    %4 = vector.broadcast %3 : vector<1x32xf32> to vector<16x32xf32>
    %5 = arith.addf %2, %4 : vector<16x32xf32>
    %c0_5 = arith.constant 0 : index
    %c0_6 = arith.constant 0 : index
    %6 = vector.load %arg4[%c0_5, %c0_6] : memref<16x32xf32, #tpu.memory_space<vmem>>, vector<16x32xf32>
    %c0_7 = arith.constant 0 : index
    %7 = memref.load %arg5[%c0_7] : memref<1xf32, #tpu.memory_space<smem>>
    %8 = vector.broadcast %7 : f32 to vector<16x32xf32>
    %9 = arith.mulf %8, %5 : vector<16x32xf32>
    %10 = arith.addf %6, %9 : vector<16x32xf32>
    %c0_8 = arith.constant 0 : index
    %c0_9 = arith.constant 0 : index
    %11 = vector.load %arg6[%c0_8, %c0_9] : memref<16x32xf32, #tpu.memory_space<vmem>>, vector<16x32xf32>
    tpu.vector_store %arg6[%c0_8, %c0_9], %10 {strides = array<i32>} : memref<16x32xf32, #tpu.memory_space<vmem>>, vector<16x32xf32>,
    return
  }
  func.func @transform_0(%arg0: i32) -> (i32, i32) {
    %c0_i32 = arith.constant 0 : i32
    %c0_i32_0 = arith.constant 0 : i32
    return %arg0, %c0_i32 : i32, i32
  }
  func.func @transform_1(%arg0: i32) -> (i32, i32) {
    %c0_i32 = arith.constant 0 : i32
    %c0_i32_0 = arith.constant 0 : i32
    %c0_i32_1 = arith.constant 0 : i32
    return %c0_i32, %c0_i32_0 : i32, i32
  }
  func.func @transform_2(%arg0: i32) -> (i32, i32) {
    %c0_i32 = arith.constant 0 : i32
    %c0_i32_0 = arith.constant 0 : i32
    %c0_i32_1 = arith.constant 0 : i32
    return %c0_i32, %c0_i32_0 : i32, i32
  }
  func.func @transform_3(%arg0: i32) -> (i32, i32) {
    %c0_i32 = arith.constant 0 : i32
    %c0_i32_0 = arith.constant 0 : i32
    return %arg0, %c0_i32 : i32, i32
  }
  func.func @transform_4(%arg0: i32) -> i32 {
    %c0_i32 = arith.constant 0 : i32
    %c0_i32_0 = arith.constant 0 : i32
    return %c0_i32 : i32
  }
  func.func @transform_5(%arg0: i32) -> (i32, i32) {
    %c0_i32 = arith.constant 0 : i32
    %c0_i32_0 = arith.constant 0 : i32
    return %arg0, %c0_i32 : i32, i32
  }
}

module attributes {stable_mosaic.version = 11 : i64} {
  func.func @_linear_kernel(%arg0: i32, %arg1: memref<32x32xf32, #tpu.memory_space<vmem>>, %arg2: memref<32x64xbf16, #tpu.memory_space<vmem>>, %arg3: memref<1x64xf32, #tpu.memory_space<vmem>>, %arg4: memref<32x64xbf16, #tpu.memory_space<vmem>>) attributes {dimension_semantics = [#tpu.dimension_semantics<parallel>], iteration_bounds = array<i64: 1>, scalar_prefetch = 0 : i64, scratch_operands = 0 : i64, tpu.core_type = #tpu.core_type<tc>, window_params = [{transform_indices = @transform_0, window_bounds = array<i64: 32, 32>}, {pipeline_mode = #tpu.pipeline_mode<synchronous>, transform_indices = @transform_1, window_bounds = array<i64: 32, 64>}, {pipeline_mode = #tpu.pipeline_mode<synchronous>, transform_indices = @transform_2, window_bounds = array<i64: 1, 64>}, {transform_indices = @transform_3, window_bounds = array<i64: 32, 64>}]} {
    %c0 = arith.constant 0 : index
    %c0_0 = arith.constant 0 : index
    %0 = vector.load %arg1[%c0, %c0_0] : memref<32x32xf32, #tpu.memory_space<vmem>>, vector<32x32xf32>
    %c0_1 = arith.constant 0 : index
    %c0_2 = arith.constant 0 : index
    %1 = vector.load %arg2[%c0_1, %c0_2] : memref<32x64xbf16, #tpu.memory_space<vmem>>, vector<32x64xbf16>
    %2 = arith.truncf %0 : vector<32x32xf32> to vector<32x32xbf16>
    %cst = arith.constant dense<0.000000e+00> : vector<32x64xf32>
    %3 = tpu.matmul %2, %1, %cst {dimension_numbers = #tpu.dot_dimension_numbers<[1], [0], [0], [1], [0, 0, 1, 1], [], []>} : vector<32x32xbf16>, vector<32x64xbf16>, vector<32x64xf32> -> vector<32x64xf32>
    %c0_3 = arith.constant 0 : index
    %c0_4 = arith.constant 0 : index
    %4 = vector.load %arg3[%c0_3, %c0_4] : memref<1x64xf32, #tpu.memory_space<vmem>>, vector<1x64xf32>
    %5 = vector.broadcast %4 : vector<1x64xf32> to vector<32x64xf32>
    %6 = arith.addf %3, %5 : vector<32x64xf32>
    %7 = arith.truncf %6 : vector<32x64xf32> to vector<32x64xbf16>
    %c0_5 = arith.constant 0 : index
    %c0_6 = arith.constant 0 : index
    %8 = vector.load %arg4[%c0_5, %c0_6] : memref<32x64xbf16, #tpu.memory_space<vmem>>, vector<32x64xbf16>
    tpu.vector_store %arg4[%c0_5, %c0_6], %7 {strides = array<i32>} : memref<32x64xbf16, #tpu.memory_space<vmem>>, vector<32x64xbf16>,
    return
  }
  func.func @transform_0(%arg0: i32) -> (i32, i32) {
    %c0_i32 = arith.constant 0 : i32
    %c0_i32_0 = arith.constant 0 : i32
    return %arg0, %c0_i32 : i32, i32
  }
  func.func @transform_1(%arg0: i32) -> (i32, i32) {
    %c0_i32 = arith.constant 0 : i32
    %c0_i32_0 = arith.constant 0 : i32
    %c0_i32_1 = arith.constant 0 : i32
    return %c0_i32, %c0_i32_0 : i32, i32
  }
  func.func @transform_2(%arg0: i32) -> (i32, i32) {
    %c0_i32 = arith.constant 0 : i32
    %c0_i32_0 = arith.constant 0 : i32
    %c0_i32_1 = arith.constant 0 : i32
    return %c0_i32, %c0_i32_0 : i32, i32
  }
  func.func @transform_3(%arg0: i32) -> (i32, i32) {
    %c0_i32 = arith.constant 0 : i32
    %c0_i32_0 = arith.constant 0 : i32
    return %arg0, %c0_i32 : i32, i32
  }
}

module attributes {stable_mosaic.version = 11 : i64} {
  func.func @_cross_attn_kernel(%arg0: i32, %arg1: memref<1x8x32xbf16, #tpu.memory_space<vmem>>, %arg2: memref<1x16x64xbf16, #tpu.memory_space<vmem>>, %arg3: memref<1x8x32xbf16, #tpu.memory_space<vmem>>) attributes {dimension_semantics = [#tpu.dimension_semantics<parallel>], iteration_bounds = array<i64: 2>, scalar_prefetch = 0 : i64, scratch_operands = 0 : i64, tpu.core_type = #tpu.core_type<tc>, window_params = [{transform_indices = @transform_0, window_bounds = array<i64: 1, 8, 32>}, {transform_indices = @transform_1, window_bounds = array<i64: 1, 16, 64>}, {transform_indices = @transform_2, window_bounds = array<i64: 1, 8, 32>}]} {
    %c0 = arith.constant 0 : index
    %c0_0 = arith.constant 0 : index
    %c0_1 = arith.constant 0 : index
    %0 = vector.load %arg1[%c0, %c0_0, %c0_1] : memref<1x8x32xbf16, #tpu.memory_space<vmem>>, vector<1x8x8xbf16>
    %1 = vector.shape_cast %0 : vector<1x8x8xbf16> to vector<8x8xbf16>
    %c0_2 = arith.constant 0 : index
    %c0_3 = arith.constant 0 : index
    %c0_4 = arith.constant 0 : index
    %2 = vector.load %arg2[%c0_2, %c0_3, %c0_4] : memref<1x16x64xbf16, #tpu.memory_space<vmem>>, vector<1x16x8xbf16>
    %3 = vector.shape_cast %2 : vector<1x16x8xbf16> to vector<16x8xbf16>
    %c0_5 = arith.constant 0 : index
    %c0_6 = arith.constant 0 : index
    %c32 = arith.constant 32 : index
    %4 = vector.load %arg2[%c0_5, %c0_6, %c32] : memref<1x16x64xbf16, #tpu.memory_space<vmem>>, vector<1x16x8xbf16>
    %5 = vector.shape_cast %4 : vector<1x16x8xbf16> to vector<16x8xbf16>
    %cst = arith.constant dense<0.000000e+00> : vector<8x16xf32>
    %6 = tpu.matmul %1, %3, %cst {dimension_numbers = #tpu.dot_dimension_numbers<[1], [1], [0], [0], [0, 0, 1, 0], [], []>} : vector<8x8xbf16>, vector<16x8xbf16>, vector<8x16xf32> -> vector<8x16xf32>
    %cst_7 = arith.constant 0.353553385 : f32
    %7 = vector.broadcast %cst_7 : f32 to vector<8x16xf32>
    %8 = arith.mulf %6, %7 : vector<8x16xf32>
    %cst_8 = arith.constant dense<0xFF800000> : vector<8xf32>
    %9 = vector.multi_reduction <maximumf>, %8, %cst_8 [1] : vector<8x16xf32> to vector<8xf32>
    %10 = vector.shape_cast %9 : vector<8xf32> to vector<8x1xf32>
    %11 = vector.broadcast %10 : vector<8x1xf32> to vector<8x16xf32>
    %12 = arith.subf %8, %11 : vector<8x16xf32>
    %13 = math.exp %12 : vector<8x16xf32>
    %cst_9 = arith.constant dense<0.000000e+00> : vector<8xf32>
    %14 = vector.multi_reduction <add>, %13, %cst_9 [1] : vector<8x16xf32> to vector<8xf32>
    %15 = vector.shape_cast %14 : vector<8xf32> to vector<8x1xf32>
    %16 = tpu.reciprocal %15 {approx = true} : vector<8x1xf32> -> vector<8x1xf32>
    %17 = vector.broadcast %16 : vector<8x1xf32> to vector<8x16xf32>
    %18 = arith.mulf %13, %17 : vector<8x16xf32>
    %19 = arith.truncf %18 : vector<8x16xf32> to vector<8x16xbf16>
    %cst_10 = arith.constant dense<0.000000e+00> : vector<8x8xf32>
    %20 = tpu.matmul %19, %5, %cst_10 {dimension_numbers = #tpu.dot_dimension_numbers<[1], [0], [0], [1], [0, 0, 1, 1], [], []>} : vector<8x16xbf16>, vector<16x8xbf16>, vector<8x8xf32> -> vector<8x8xf32>
    %21 = arith.truncf %20 : vector<8x8xf32> to vector<8x8xbf16>
    %c0_11 = arith.constant 0 : index
    %c0_12 = arith.constant 0 : index
    %c0_13 = arith.constant 0 : index
    %22 = vector.load %arg3[%c0_11, %c0_12, %c0_13] : memref<1x8x32xbf16, #tpu.memory_space<vmem>>, vector<1x8x8xbf16>
    %23 = vector.shape_cast %22 : vector<1x8x8xbf16> to vector<8x8xbf16>
    %24 = vector.shape_cast %21 : vector<8x8xbf16> to vector<1x8x8xbf16>
    tpu.vector_store %arg3[%c0_11, %c0_12, %c0_13], %24 {strides = array<i32>} : memref<1x8x32xbf16, #tpu.memory_space<vmem>>, vector<1x8x8xbf16>,
    %c0_14 = arith.constant 0 : index
    %c0_15 = arith.constant 0 : index
    %c8 = arith.constant 8 : index
    %25 = vector.load %arg1[%c0_14, %c0_15, %c8] : memref<1x8x32xbf16, #tpu.memory_space<vmem>>, vector<1x8x8xbf16>
    %26 = vector.shape_cast %25 : vector<1x8x8xbf16> to vector<8x8xbf16>
    %c0_16 = arith.constant 0 : index
    %c0_17 = arith.constant 0 : index
    %c8_18 = arith.constant 8 : index
    %27 = vector.load %arg2[%c0_16, %c0_17, %c8_18] : memref<1x16x64xbf16, #tpu.memory_space<vmem>>, vector<1x16x8xbf16>
    %28 = vector.shape_cast %27 : vector<1x16x8xbf16> to vector<16x8xbf16>
    %c0_19 = arith.constant 0 : index
    %c0_20 = arith.constant 0 : index
    %c40 = arith.constant 40 : index
    %29 = vector.load %arg2[%c0_19, %c0_20, %c40] : memref<1x16x64xbf16, #tpu.memory_space<vmem>>, vector<1x16x8xbf16>
    %30 = vector.shape_cast %29 : vector<1x16x8xbf16> to vector<16x8xbf16>
    %cst_21 = arith.constant dense<0.000000e+00> : vector<8x16xf32>
    %31 = tpu.matmul %26, %28, %cst_21 {dimension_numbers = #tpu.dot_dimension_numbers<[1], [1], [0], [0], [0, 0, 1, 0], [], []>} : vector<8x8xbf16>, vector<16x8xbf16>, vector<8x16xf32> -> vector<8x16xf32>
    %cst_22 = arith.constant 0.353553385 : f32
    %32 = vector.broadcast %cst_22 : f32 to vector<8x16xf32>
    %33 = arith.mulf %31, %32 : vector<8x16xf32>
    %cst_23 = arith.constant dense<0xFF800000> : vector<8xf32>
    %34 = vector.multi_reduction <maximumf>, %33, %cst_23 [1] : vector<8x16xf32> to vector<8xf32>
    %35 = vector.shape_cast %34 : vector<8xf32> to vector<8x1xf32>
    %36 = vector.broadcast %35 : vector<8x1xf32> to vector<8x16xf32>
    %37 = arith.subf %33, %36 : vector<8x16xf32>
    %38 = math.exp %37 : vector<8x16xf32>
    %cst_24 = arith.constant dense<0.000000e+00> : vector<8xf32>
    %39 = vector.multi_reduction <add>, %38, %cst_24 [1] : vector<8x16xf32> to vector<8xf32>
    %40 = vector.shape_cast %39 : vector<8xf32> to vector<8x1xf32>
    %41 = tpu.reciprocal %40 {approx = true} : vector<8x1xf32> -> vector<8x1xf32>
    %42 = vector.broadcast %41 : vector<8x1xf32> to vector<8x16xf32>
    %43 = arith.mulf %38, %42 : vector<8x16xf32>
    %44 = arith.truncf %43 : vector<8x16xf32> to vector<8x16xbf16>
    %cst_25 = arith.constant dense<0.000000e+00> : vector<8x8xf32>
    %45 = tpu.matmul %44, %30, %cst_25 {dimension_numbers = #tpu.dot_dimension_numbers<[1], [0], [0], [1], [0, 0, 1, 1], [], []>} : vector<8x16xbf16>, vector<16x8xbf16>, vector<8x8xf32> -> vector<8x8xf32>
    %46 = arith.truncf %45 : vector<8x8xf32> to vector<8x8xbf16>
    %c0_26 = arith.constant 0 : index
    %c0_27 = arith.constant 0 : index
    %c8_28 = arith.constant 8 : index
    %47 = vector.load %arg3[%c0_26, %c0_27, %c8_28] : memref<1x8x32xbf16, #tpu.memory_space<vmem>>, vector<1x8x8xbf16>
    %48 = vector.shape_cast %47 : vector<1x8x8xbf16> to vector<8x8xbf16>
    %49 = vector.shape_cast %46 : vector<8x8xbf16> to vector<1x8x8xbf16>
    tpu.vector_store %arg3[%c0_26, %c0_27, %c8_28], %49 {strides = array<i32>} : memref<1x8x32xbf16, #tpu.memory_space<vmem>>, vector<1x8x8xbf16>,
    %c0_29 = arith.constant 0 : index
    %c0_30 = arith.constant 0 : index
    %c16 = arith.constant 16 : index
    %50 = vector.load %arg1[%c0_29, %c0_30, %c16] : memref<1x8x32xbf16, #tpu.memory_space<vmem>>, vector<1x8x8xbf16>
    %51 = vector.shape_cast %50 : vector<1x8x8xbf16> to vector<8x8xbf16>
    %c0_31 = arith.constant 0 : index
    %c0_32 = arith.constant 0 : index
    %c16_33 = arith.constant 16 : index
    %52 = vector.load %arg2[%c0_31, %c0_32, %c16_33] : memref<1x16x64xbf16, #tpu.memory_space<vmem>>, vector<1x16x8xbf16>
    %53 = vector.shape_cast %52 : vector<1x16x8xbf16> to vector<16x8xbf16>
    %c0_34 = arith.constant 0 : index
    %c0_35 = arith.constant 0 : index
    %c48 = arith.constant 48 : index
    %54 = vector.load %arg2[%c0_34, %c0_35, %c48] : memref<1x16x64xbf16, #tpu.memory_space<vmem>>, vector<1x16x8xbf16>
    %55 = vector.shape_cast %54 : vector<1x16x8xbf16> to vector<16x8xbf16>
    %cst_36 = arith.constant dense<0.000000e+00> : vector<8x16xf32>
    %56 = tpu.matmul %51, %53, %cst_36 {dimension_numbers = #tpu.dot_dimension_numbers<[1], [1], [0], [0], [0, 0, 1, 0], [], []>} : vector<8x8xbf16>, vector<16x8xbf16>, vector<8x16xf32> -> vector<8x16xf32>
    %cst_37 = arith.constant 0.353553385 : f32
    %57 = vector.broadcast %cst_37 : f32 to vector<8x16xf32>
    %58 = arith.mulf %56, %57 : vector<8x16xf32>
    %cst_38 = arith.constant dense<0xFF800000> : vector<8xf32>
    %59 = vector.multi_reduction <maximumf>, %58, %cst_38 [1] : vector<8x16xf32> to vector<8xf32>
    %60 = vector.shape_cast %59 : vector<8xf32> to vector<8x1xf32>
    %61 = vector.broadcast %60 : vector<8x1xf32> to vector<8x16xf32>
    %62 = arith.subf %58, %61 : vector<8x16xf32>
    %63 = math.exp %62 : vector<8x16xf32>
    %cst_39 = arith.constant dense<0.000000e+00> : vector<8xf32>
    %64 = vector.multi_reduction <add>, %63, %cst_39 [1] : vector<8x16xf32> to vector<8xf32>
    %65 = vector.shape_cast %64 : vector<8xf32> to vector<8x1xf32>
    %66 = tpu.reciprocal %65 {approx = true} : vector<8x1xf32> -> vector<8x1xf32>
    %67 = vector.broadcast %66 : vector<8x1xf32> to vector<8x16xf32>
    %68 = arith.mulf %63, %67 : vector<8x16xf32>
    %69 = arith.truncf %68 : vector<8x16xf32> to vector<8x16xbf16>
    %cst_40 = arith.constant dense<0.000000e+00> : vector<8x8xf32>
    %70 = tpu.matmul %69, %55, %cst_40 {dimension_numbers = #tpu.dot_dimension_numbers<[1], [0], [0], [1], [0, 0, 1, 1], [], []>} : vector<8x16xbf16>, vector<16x8xbf16>, vector<8x8xf32> -> vector<8x8xf32>
    %71 = arith.truncf %70 : vector<8x8xf32> to vector<8x8xbf16>
    %c0_41 = arith.constant 0 : index
    %c0_42 = arith.constant 0 : index
    %c16_43 = arith.constant 16 : index
    %72 = vector.load %arg3[%c0_41, %c0_42, %c16_43] : memref<1x8x32xbf16, #tpu.memory_space<vmem>>, vector<1x8x8xbf16>
    %73 = vector.shape_cast %72 : vector<1x8x8xbf16> to vector<8x8xbf16>
    %74 = vector.shape_cast %71 : vector<8x8xbf16> to vector<1x8x8xbf16>
    tpu.vector_store %arg3[%c0_41, %c0_42, %c16_43], %74 {strides = array<i32>} : memref<1x8x32xbf16, #tpu.memory_space<vmem>>, vector<1x8x8xbf16>,
    %c0_44 = arith.constant 0 : index
    %c0_45 = arith.constant 0 : index
    %c24 = arith.constant 24 : index
    %75 = vector.load %arg1[%c0_44, %c0_45, %c24] : memref<1x8x32xbf16, #tpu.memory_space<vmem>>, vector<1x8x8xbf16>
    %76 = vector.shape_cast %75 : vector<1x8x8xbf16> to vector<8x8xbf16>
    %c0_46 = arith.constant 0 : index
    %c0_47 = arith.constant 0 : index
    %c24_48 = arith.constant 24 : index
    %77 = vector.load %arg2[%c0_46, %c0_47, %c24_48] : memref<1x16x64xbf16, #tpu.memory_space<vmem>>, vector<1x16x8xbf16>
    %78 = vector.shape_cast %77 : vector<1x16x8xbf16> to vector<16x8xbf16>
    %c0_49 = arith.constant 0 : index
    %c0_50 = arith.constant 0 : index
    %c56 = arith.constant 56 : index
    %79 = vector.load %arg2[%c0_49, %c0_50, %c56] : memref<1x16x64xbf16, #tpu.memory_space<vmem>>, vector<1x16x8xbf16>
    %80 = vector.shape_cast %79 : vector<1x16x8xbf16> to vector<16x8xbf16>
    %cst_51 = arith.constant dense<0.000000e+00> : vector<8x16xf32>
    %81 = tpu.matmul %76, %78, %cst_51 {dimension_numbers = #tpu.dot_dimension_numbers<[1], [1], [0], [0], [0, 0, 1, 0], [], []>} : vector<8x8xbf16>, vector<16x8xbf16>, vector<8x16xf32> -> vector<8x16xf32>
    %cst_52 = arith.constant 0.353553385 : f32
    %82 = vector.broadcast %cst_52 : f32 to vector<8x16xf32>
    %83 = arith.mulf %81, %82 : vector<8x16xf32>
    %cst_53 = arith.constant dense<0xFF800000> : vector<8xf32>
    %84 = vector.multi_reduction <maximumf>, %83, %cst_53 [1] : vector<8x16xf32> to vector<8xf32>
    %85 = vector.shape_cast %84 : vector<8xf32> to vector<8x1xf32>
    %86 = vector.broadcast %85 : vector<8x1xf32> to vector<8x16xf32>
    %87 = arith.subf %83, %86 : vector<8x16xf32>
    %88 = math.exp %87 : vector<8x16xf32>
    %cst_54 = arith.constant dense<0.000000e+00> : vector<8xf32>
    %89 = vector.multi_reduction <add>, %88, %cst_54 [1] : vector<8x16xf32> to vector<8xf32>
    %90 = vector.shape_cast %89 : vector<8xf32> to vector<8x1xf32>
    %91 = tpu.reciprocal %90 {approx = true} : vector<8x1xf32> -> vector<8x1xf32>
    %92 = vector.broadcast %91 : vector<8x1xf32> to vector<8x16xf32>
    %93 = arith.mulf %88, %92 : vector<8x16xf32>
    %94 = arith.truncf %93 : vector<8x16xf32> to vector<8x16xbf16>
    %cst_55 = arith.constant dense<0.000000e+00> : vector<8x8xf32>
    %95 = tpu.matmul %94, %80, %cst_55 {dimension_numbers = #tpu.dot_dimension_numbers<[1], [0], [0], [1], [0, 0, 1, 1], [], []>} : vector<8x16xbf16>, vector<16x8xbf16>, vector<8x8xf32> -> vector<8x8xf32>
    %96 = arith.truncf %95 : vector<8x8xf32> to vector<8x8xbf16>
    %c0_56 = arith.constant 0 : index
    %c0_57 = arith.constant 0 : index
    %c24_58 = arith.constant 24 : index
    %97 = vector.load %arg3[%c0_56, %c0_57, %c24_58] : memref<1x8x32xbf16, #tpu.memory_space<vmem>>, vector<1x8x8xbf16>
    %98 = vector.shape_cast %97 : vector<1x8x8xbf16> to vector<8x8xbf16>
    %99 = vector.shape_cast %96 : vector<8x8xbf16> to vector<1x8x8xbf16>
    tpu.vector_store %arg3[%c0_56, %c0_57, %c24_58], %99 {strides = array<i32>} : memref<1x8x32xbf16, #tpu.memory_space<vmem>>, vector<1x8x8xbf16>,
    return
  }
  func.func @transform_0(%arg0: i32) -> (i32, i32, i32) {
    %c0_i32 = arith.constant 0 : i32
    %c0_i32_0 = arith.constant 0 : i32
    %c0_i32_1 = arith.constant 0 : i32
    return %arg0, %c0_i32, %c0_i32_0 : i32, i32, i32
  }
  func.func @transform_1(%arg0: i32) -> (i32, i32, i32) {
    %c0_i32 = arith.constant 0 : i32
    %c0_i32_0 = arith.constant 0 : i32
    %c0_i32_1 = arith.constant 0 : i32
    return %arg0, %c0_i32, %c0_i32_0 : i32, i32, i32
  }
  func.func @transform_2(%arg0: i32) -> (i32, i32, i32) {
    %c0_i32 = arith.constant 0 : i32
    %c0_i32_0 = arith.constant 0 : i32
    %c0_i32_1 = arith.constant 0 : i32
    return %arg0, %c0_i32, %c0_i32_0 : i32, i32, i32
  }
}

module attributes {stable_mosaic.version = 11 : i64} {
  func.func @_ff_kernel(%arg0: i32, %arg1: i32, %arg2: memref<16x32xf32, #tpu.memory_space<vmem>>, %arg3: memref<1x32xf32, #tpu.memory_space<vmem>>, %arg4: memref<1x32xf32, #tpu.memory_space<vmem>>, %arg5: memref<32x128xbf16, #tpu.memory_space<vmem>>, %arg6: memref<1x128xf32, #tpu.memory_space<vmem>>, %arg7: memref<128x32xbf16, #tpu.memory_space<vmem>>, %arg8: memref<1x32xf32, #tpu.memory_space<vmem>>, %arg9: memref<1xf32, #tpu.memory_space<smem>>, %arg10: memref<16x32xf32, #tpu.memory_space<vmem>>, %arg11: memref<16x32xf32, #tpu.memory_space<vmem>>) attributes {dimension_semantics = [#tpu.dimension_semantics<parallel>, #tpu.dimension_semantics<arbitrary>], iteration_bounds = array<i64: 1, 1>, scalar_prefetch = 0 : i64, scratch_operands = 1 : i64, tpu.core_type = #tpu.core_type<tc>, window_params = [{transform_indices = @transform_0, window_bounds = array<i64: 16, 32>}, {pipeline_mode = #tpu.pipeline_mode<synchronous>, transform_indices = @transform_1, window_bounds = array<i64: 1, 32>}, {pipeline_mode = #tpu.pipeline_mode<synchronous>, transform_indices = @transform_2, window_bounds = array<i64: 1, 32>}, {pipeline_mode = #tpu.pipeline_mode<synchronous>, transform_indices = @transform_3, window_bounds = array<i64: 32, 128>}, {pipeline_mode = #tpu.pipeline_mode<synchronous>, transform_indices = @transform_4, window_bounds = array<i64: 1, 128>}, {pipeline_mode = #tpu.pipeline_mode<synchronous>, transform_indices = @transform_5, window_bounds = array<i64: 128, 32>}, {pipeline_mode = #tpu.pipeline_mode<synchronous>, transform_indices = @transform_6, window_bounds = array<i64: 1, 32>}, {transform_indices = @transform_7, window_bounds = array<i64: 1>}, {transform_indices = @transform_8, window_bounds = array<i64: 16, 32>}]} {
    %c0_i32 = arith.constant 0 : i32
    %0 = arith.cmpi eq, %arg1, %c0_i32 : i32
    %1 = arith.extui %0 : i1 to i32
    %c0_i32_0 = arith.constant 0 : i32
    %2 = arith.cmpi ne, %1, %c0_i32_0 : i32
    scf.if %2 {
      %cst_27 = arith.constant 0.000000e+00 : f32
      %49 = vector.broadcast %cst_27 : f32 to vector<16x32xf32>
      %c0_28 = arith.constant 0 : index
      %c0_29 = arith.constant 0 : index
      %50 = vector.load %arg11[%c0_28, %c0_29] : memref<16x32xf32, #tpu.memory_space<vmem>>, vector<16x32xf32>
      tpu.vector_store %arg11[%c0_28, %c0_29], %49 {strides = array<i32>} : memref<16x32xf32, #tpu.memory_space<vmem>>, vector<16x32xf32>,
    } else {
    }
    %c0 = arith.constant 0 : index
    %c0_1 = arith.constant 0 : index
    %3 = vector.load %arg2[%c0, %c0_1] : memref<16x32xf32, #tpu.memory_space<vmem>>, vector<16x32xf32>
    %c0_2 = arith.constant 0 : index
    %c0_3 = arith.constant 0 : index
    %4 = vector.load %arg3[%c0_2, %c0_3] : memref<1x32xf32, #tpu.memory_space<vmem>>, vector<1x32xf32>
    %c0_4 = arith.constant 0 : index
    %c0_5 = arith.constant 0 : index
    %5 = vector.load %arg4[%c0_4, %c0_5] : memref<1x32xf32, #tpu.memory_space<vmem>>, vector<1x32xf32>
    %cst = arith.constant dense<0.000000e+00> : vector<16xf32>
    %6 = vector.multi_reduction <add>, %3, %cst [1] : vector<16x32xf32> to vector<16xf32>
    %7 = vector.shape_cast %6 : vector<16xf32> to vector<16x1xf32>
    %cst_6 = arith.constant 3.200000e+01 : f32
    %8 = vector.broadcast %cst_6 : f32 to vector<16x1xf32>
    %9 = arith.divf %7, %8 : vector<16x1xf32>
    %10 = vector.broadcast %9 : vector<16x1xf32> to vector<16x32xf32>
    %11 = arith.subf %3, %10 : vector<16x32xf32>
    %12 = arith.mulf %11, %11 : vector<16x32xf32>
    %cst_7 = arith.constant dense<0.000000e+00> : vector<16xf32>
    %13 = vector.multi_reduction <add>, %12, %cst_7 [1] : vector<16x32xf32> to vector<16xf32>
    %14 = vector.shape_cast %13 : vector<16xf32> to vector<16x1xf32>
    %cst_8 = arith.constant 3.200000e+01 : f32
    %15 = vector.broadcast %cst_8 : f32 to vector<16x1xf32>
    %16 = arith.divf %14, %15 : vector<16x1xf32>
    %cst_9 = arith.constant 9.99999974E-6 : f32
    %17 = vector.broadcast %cst_9 : f32 to vector<16x1xf32>
    %18 = arith.addf %16, %17 : vector<16x1xf32>
    %19 = math.rsqrt %18 : vector<16x1xf32>
    %20 = vector.broadcast %19 : vector<16x1xf32> to vector<16x32xf32>
    %21 = arith.mulf %11, %20 : vector<16x32xf32>
    %22 = vector.broadcast %4 : vector<1x32xf32> to vector<16x32xf32>
    %23 = arith.mulf %21, %22 : vector<16x32xf32>
    %24 = vector.broadcast %5 : vector<1x32xf32> to vector<16x32xf32>
    %25 = arith.addf %23, %24 : vector<16x32xf32>
    %c0_10 = arith.constant 0 : index
    %c0_11 = arith.constant 0 : index
    %26 = vector.load %arg5[%c0_10, %c0_11] : memref<32x128xbf16, #tpu.memory_space<vmem>>, vector<32x128xbf16>
    %27 = arith.truncf %25 : vector<16x32xf32> to vector<16x32xbf16>
    %cst_12 = arith.constant dense<0.000000e+00> : vector<16x128xf32>
    %28 = tpu.matmul %27, %26, %cst_12 {dimension_numbers = #tpu.dot_dimension_numbers<[1], [0], [0], [1], [0, 0, 1, 1], [], []>} : vector<16x32xbf16>, vector<32x128xbf16>, vector<16x128xf32> -> vector<16x128xf32>
    %c0_13 = arith.constant 0 : index
    %c0_14 = arith.constant 0 : index
    %29 = vector.load %arg6[%c0_13, %c0_14] : memref<1x128xf32, #tpu.memory_space<vmem>>, vector<1x128xf32>
    %30 = vector.broadcast %29 : vector<1x128xf32> to vector<16x128xf32>
    %31 = arith.addf %28, %30 : vector<16x128xf32>
    %cst_15 = arith.constant 5.000000e-01 : f32
    %32 = vector.broadcast %cst_15 : f32 to vector<16x128xf32>
    %33 = arith.mulf %32, %31 : vector<16x128xf32>
    %cst_16 = arith.constant 1.41421354 : f32
    %34 = vector.broadcast %cst_16 : f32 to vector<16x128xf32>
    %35 = arith.divf %31, %34 : vector<16x128xf32>
    %36 = math.erf %35 : vector<16x128xf32>
    %cst_17 = arith.constant 1.000000e+00 : f32
    %37 = vector.broadcast %cst_17 : f32 to vector<16x128xf32>
    %38 = arith.addf %37, %36 : vector<16x128xf32>
    %39 = arith.mulf %33, %38 : vector<16x128xf32>
    %c0_18 = arith.constant 0 : index
    %c0_19 = arith.constant 0 : index
    %40 = vector.load %arg11[%c0_18, %c0_19] : memref<16x32xf32, #tpu.memory_space<vmem>>, vector<16x32xf32>
    %c0_20 = arith.constant 0 : index
    %c0_21 = arith.constant 0 : index
    %41 = vector.load %arg7[%c0_20, %c0_21] : memref<128x32xbf16, #tpu.memory_space<vmem>>, vector<128x32xbf16>
    %42 = arith.truncf %39 : vector<16x128xf32> to vector<16x128xbf16>
    %cst_22 = arith.constant dense<0.000000e+00> : vector<16x32xf32>
    %43 = tpu.matmul %42, %41, %cst_22 {dimension_numbers = #tpu.dot_dimension_numbers<[1], [0], [0], [1], [0, 0, 1, 1], [], []>} : vector<16x128xbf16>, vector<128x32xbf16>, vector<16x32xf32> -> vector<16x32xf32>
    %44 = arith.addf %40, %43 : vector<16x32xf32>
    %c0_23 = arith.constant 0 : index
    %c0_24 = arith.constant 0 : index
    %45 = vector.load %arg11[%c0_23, %c0_24] : memref<16x32xf32, #tpu.memory_space<vmem>>, vector<16x32xf32>
    tpu.vector_store %arg11[%c0_23, %c0_24], %44 {strides = array<i32>} : memref<16x32xf32, #tpu.memory_space<vmem>>, vector<16x32xf32>,
    %c0_i32_25 = arith.constant 0 : i32
    %46 = arith.cmpi eq, %arg1, %c0_i32_25 : i32
    %47 = arith.extui %46 : i1 to i32
    %c0_i32_26 = arith.constant 0 : i32
    %48 = arith.cmpi ne, %47, %c0_i32_26 : i32
    scf.if %48 {
      %c0_27 = arith.constant 0 : index
      %c0_28 = arith.constant 0 : index
      %49 = vector.load %arg11[%c0_27, %c0_28] : memref<16x32xf32, #tpu.memory_space<vmem>>, vector<16x32xf32>
      %c0_29 = arith.constant 0 : index
      %c0_30 = arith.constant 0 : index
      %50 = vector.load %arg8[%c0_29, %c0_30] : memref<1x32xf32, #tpu.memory_space<vmem>>, vector<1x32xf32>
      %51 = vector.broadcast %50 : vector<1x32xf32> to vector<16x32xf32>
      %52 = arith.addf %49, %51 : vector<16x32xf32>
      %cst_31 = arith.constant 5.000000e-01 : f32
      %53 = vector.broadcast %cst_31 : f32 to vector<16x32xf32>
      %54 = arith.mulf %53, %52 : vector<16x32xf32>
      %cst_32 = arith.constant 1.41421354 : f32
      %55 = vector.broadcast %cst_32 : f32 to vector<16x32xf32>
      %56 = arith.divf %52, %55 : vector<16x32xf32>
      %57 = math.erf %56 : vector<16x32xf32>
      %cst_33 = arith.constant 1.000000e+00 : f32
      %58 = vector.broadcast %cst_33 : f32 to vector<16x32xf32>
      %59 = arith.addf %58, %57 : vector<16x32xf32>
      %60 = arith.mulf %54, %59 : vector<16x32xf32>
      %c0_34 = arith.constant 0 : index
      %c0_35 = arith.constant 0 : index
      %61 = vector.load %arg2[%c0_34, %c0_35] : memref<16x32xf32, #tpu.memory_space<vmem>>, vector<16x32xf32>
      %c0_36 = arith.constant 0 : index
      %62 = memref.load %arg9[%c0_36] : memref<1xf32, #tpu.memory_space<smem>>
      %63 = vector.broadcast %62 : f32 to vector<16x32xf32>
      %64 = arith.mulf %63, %60 : vector<16x32xf32>
      %65 = arith.addf %61, %64 : vector<16x32xf32>
      %c0_37 = arith.constant 0 : index
      %c0_38 = arith.constant 0 : index
      %66 = vector.load %arg10[%c0_37, %c0_38] : memref<16x32xf32, #tpu.memory_space<vmem>>, vector<16x32xf32>
      tpu.vector_store %arg10[%c0_37, %c0_38], %65 {strides = array<i32>} : memref<16x32xf32, #tpu.memory_space<vmem>>, vector<16x32xf32>,
    } else {
    }
    return
  }
  func.func @transform_0(%arg0: i32, %arg1: i32) -> (i32, i32) {
    %c0_i32 = arith.constant 0 : i32
    %c0_i32_0 = arith.constant 0 : i32
    return %arg0, %c0_i32 : i32, i32
  }
  func.func @transform_1(%arg0: i32, %arg1: i32) -> (i32, i32) {
    %c0_i32 = arith.constant 0 : i32
    %c0_i32_0 = arith.constant 0 : i32
    %c0_i32_1 = arith.constant 0 : i32
    return %c0_i32, %c0_i32_0 : i32, i32
  }
  func.func @transform_2(%arg0: i32, %arg1: i32) -> (i32, i32) {
    %c0_i32 = arith.constant 0 : i32
    %c0_i32_0 = arith.constant 0 : i32
    %c0_i32_1 = arith.constant 0 : i32
    return %c0_i32, %c0_i32_0 : i32, i32
  }
  func.func @transform_3(%arg0: i32, %arg1: i32) -> (i32, i32) {
    %c0_i32 = arith.constant 0 : i32
    %c0_i32_0 = arith.constant 0 : i32
    return %c0_i32, %arg1 : i32, i32
  }
  func.func @transform_4(%arg0: i32, %arg1: i32) -> (i32, i32) {
    %c0_i32 = arith.constant 0 : i32
    %c0_i32_0 = arith.constant 0 : i32
    return %c0_i32, %arg1 : i32, i32
  }
  func.func @transform_5(%arg0: i32, %arg1: i32) -> (i32, i32) {
    %c0_i32 = arith.constant 0 : i32
    %c0_i32_0 = arith.constant 0 : i32
    return %arg1, %c0_i32 : i32, i32
  }
  func.func @transform_6(%arg0: i32, %arg1: i32) -> (i32, i32) {
    %c0_i32 = arith.constant 0 : i32
    %c0_i32_0 = arith.constant 0 : i32
    %c0_i32_1 = arith.constant 0 : i32
    return %c0_i32, %c0_i32_0 : i32, i32
  }
  func.func @transform_7(%arg0: i32, %arg1: i32) -> i32 {
    %c0_i32 = arith.constant 0 : i32
    %c0_i32_0 = arith.constant 0 : i32
    return %c0_i32 : i32
  }
  func.func @transform_8(%arg0: i32, %arg1: i32) -> (i32, i32) {
    %c0_i32 = arith.constant 0 : i32
    %c0_i32_0 = arith.constant 0 : i32
    return %arg0, %c0_i32 : i32, i32
  }
}

module attributes {stable_mosaic.version = 11 : i64} {
  func.func @_linear_kernel(%arg0: i32, %arg1: memref<16x32xf32, #tpu.memory_space<vmem>>, %arg2: memref<32x128xbf16, #tpu.memory_space<vmem>>, %arg3: memref<1x128xf32, #tpu.memory_space<vmem>>, %arg4: memref<16x128xf32, #tpu.memory_space<vmem>>) attributes {dimension_semantics = [#tpu.dimension_semantics<parallel>], iteration_bounds = array<i64: 1>, scalar_prefetch = 0 : i64, scratch_operands = 0 : i64, tpu.core_type = #tpu.core_type<tc>, window_params = [{transform_indices = @transform_0, window_bounds = array<i64: 16, 32>}, {pipeline_mode = #tpu.pipeline_mode<synchronous>, transform_indices = @transform_1, window_bounds = array<i64: 32, 128>}, {pipeline_mode = #tpu.pipeline_mode<synchronous>, transform_indices = @transform_2, window_bounds = array<i64: 1, 128>}, {transform_indices = @transform_3, window_bounds = array<i64: 16, 128>}]} {
    %c0 = arith.constant 0 : index
    %c0_0 = arith.constant 0 : index
    %0 = vector.load %arg1[%c0, %c0_0] : memref<16x32xf32, #tpu.memory_space<vmem>>, vector<16x32xf32>
    %c0_1 = arith.constant 0 : index
    %c0_2 = arith.constant 0 : index
    %1 = vector.load %arg2[%c0_1, %c0_2] : memref<32x128xbf16, #tpu.memory_space<vmem>>, vector<32x128xbf16>
    %2 = arith.truncf %0 : vector<16x32xf32> to vector<16x32xbf16>
    %cst = arith.constant dense<0.000000e+00> : vector<16x128xf32>
    %3 = tpu.matmul %2, %1, %cst {dimension_numbers = #tpu.dot_dimension_numbers<[1], [0], [0], [1], [0, 0, 1, 1], [], []>} : vector<16x32xbf16>, vector<32x128xbf16>, vector<16x128xf32> -> vector<16x128xf32>
    %c0_3 = arith.constant 0 : index
    %c0_4 = arith.constant 0 : index
    %4 = vector.load %arg3[%c0_3, %c0_4] : memref<1x128xf32, #tpu.memory_space<vmem>>, vector<1x128xf32>
    %5 = vector.broadcast %4 : vector<1x128xf32> to vector<16x128xf32>
    %6 = arith.addf %3, %5 : vector<16x128xf32>
    %c0_5 = arith.constant 0 : index
    %c0_6 = arith.constant 0 : index
    %7 = vector.load %arg4[%c0_5, %c0_6] : memref<16x128xf32, #tpu.memory_space<vmem>>, vector<16x128xf32>
    tpu.vector_store %arg4[%c0_5, %c0_6], %6 {strides = array<i32>} : memref<16x128xf32, #tpu.memory_space<vmem>>, vector<16x128xf32>,
    return
  }
  func.func @transform_0(%arg0: i32) -> (i32, i32) {
    %c0_i32 = arith.constant 0 : i32
    %c0_i32_0 = arith.constant 0 : i32
    return %arg0, %c0_i32 : i32, i32
  }
  func.func @transform_1(%arg0: i32) -> (i32, i32) {
    %c0_i32 = arith.constant 0 : i32
    %c0_i32_0 = arith.constant 0 : i32
    %c0_i32_1 = arith.constant 0 : i32
    return %c0_i32, %c0_i32_0 : i32, i32
  }
  func.func @transform_2(%arg0: i32) -> (i32, i32) {
    %c0_i32 = arith.constant 0 : i32
    %c0_i32_0 = arith.constant 0 : i32
    %c0_i32_1 = arith.constant 0 : i32
    return %c0_i32, %c0_i32_0 : i32, i32
  }
  func.func @transform_3(%arg0: i32) -> (i32, i32) {
    %c0_i32 = arith.constant 0 : i32
    %c0_i32_0 = arith.constant 0 : i32
    return %arg0, %c0_i32 : i32, i32
  }
}

</mosaic_0001>

<llo_original>
// kernel: decoder_forward.17
$region0: #{decoder_forward.17}
  #allocation0 [shape = 'u32[]', space=smem, size = 0x4, offset = 0x4, fixed_abs, tag = 'smem constant byte address 0x4 - core index']
  #allocation1 [shape = 'u32[144,128]{1,0:T(1,128)}', space=vmem, size = 0x12000, scoped, tag = 'internal scratch']
  %s0 = inlined_call_operand.vmem [shape: f32[16,32], index: 0, kind: input, shape index: {}]
  %s1 = inlined_call_operand.vmem [shape: f32[1,32], index: 1, kind: input, shape index: {}]
  %s2 = inlined_call_operand.vmem [shape: f32[1,32], index: 2, kind: input, shape index: {}]
  %s3 = inlined_call_operand.vmem [shape: bf16[32,96], index: 3, kind: input, shape index: {}]
  %s4 = inlined_call_operand.vmem [shape: f32[1,96], index: 4, kind: input, shape index: {}]
  %s5 = inlined_call_operand.vmem [shape: bf16[16,96], index: 5, kind: output, shape index: {}]
  %s6 = sld [smem:[#allocation0]]
  $region30: #{decoder_forward.17} parent=0
    _
  %s8 = ssub.s32 1, %s6
  %s9 = scalar_select 0, %s8, %s6
  // Predicated region
  $region2: #{decoder_forward.17} parent=0 // pred_check
    _
  $region3: #{decoder_forward.17} parent=0 // pred_check_branch
    %11 = sbr.rel (0) target = $region5
  $region4: #{decoder_forward.17} parent=0 // pred_region
    _
  $region5: #{decoder_forward.17} parent=0 // pred_fallthru
    _
  // Predicated region
  $region6: #{decoder_forward.17} parent=0 // pred_check
    _
  $region7: #{decoder_forward.17} parent=0 // pred_check_branch
    %13 = sbr.rel (0) target = $region9
  $region8: #{decoder_forward.17} parent=0 // pred_region
    _
  $region9: #{decoder_forward.17} parent=0 // pred_fallthru
    _
  // Predicated region
  $region10: #{decoder_forward.17} parent=0 // pred_check
    _
  $region11: #{decoder_forward.17} parent=0 // pred_check_branch
    %15 = sbr.rel (0) target = $region13
  $region12: #{decoder_forward.17} parent=0 // pred_region
    _
  $region13: #{decoder_forward.17} parent=0 // pred_fallthru
    _
  // Predicated region
  $region14: #{decoder_forward.17} parent=0 // pred_check
    _
  $region15: #{decoder_forward.17} parent=0 // pred_check_branch
    %17 = sbr.rel (0) target = $region17
  $region16: #{decoder_forward.17} parent=0 // pred_region
    _
  $region17: #{decoder_forward.17} parent=0 // pred_fallthru
    _
  // Predicated region
  $region18: #{decoder_forward.17} parent=0 // pred_check
    _
  $region19: #{decoder_forward.17} parent=0 // pred_check_branch
    %19 = sbr.rel (0) target = $region21
  $region20: #{decoder_forward.17} parent=0 // pred_region
    _
  $region21: #{decoder_forward.17} parent=0 // pred_fallthru
    _
  %v21 = vld [vmem:[%s0] sm:$0xff]
  %v22 = vld [vmem:[%s0 + $0x8] sm:$0xff]
  %v23 = vld [vmem:[%s1] sm:$0x1]
  %v24 = vld [vmem:[%s2] sm:$0x1]
  %vm25 = vcmask 261120
  %v26 = vsel %vm25, %v21, 0.0
  %27 = vadd.xlane.f32.xlu0 %v26
  %v28 = vpop.xlane.xlu0 %27
  %v29 = vsel %vm25, %v22, 0.0
  %30 = vadd.xlane.f32.xlu0 %v29
  %v31 = vpop.xlane.xlu0 %30
  %v32 = vrcp.pop 32.0
  %v33 = vmul.f32 %v28, %v32
  %v34 = vmul.f32 %v31, %v32
  %v35 = vsub.f32 %v21, %v33
  %v36 = vsub.f32 %v22, %v34
  %v37 = vmul.f32 %v35, %v35
  %v38 = vmul.f32 %v36, %v36
  %v39 = vsel %vm25, %v37, 0.0
  %40 = vadd.xlane.f32.xlu0 %v39
  %v41 = vpop.xlane.xlu0 %40
  %v42 = vsel %vm25, %v38, 0.0
  %43 = vadd.xlane.f32.xlu0 %v42
  %v44 = vpop.xlane.xlu0 %43
  %v45 = vmul.f32 %v41, %v32
  %v46 = vmul.f32 %v44, %v32
  %v47 = vadd.f32 %v45, 1e-05
  %v48 = vadd.f32 %v46, 1e-05
  %v49 = vrsqrt.pop %v47
  %v50 = vrsqrt.pop %v48
  %v51 = vmul.f32 %v35, %v49
  %v52 = vmul.f32 %v36, %v50
  %v54 = vlaneseq
  %v55 = vshrl.u32 %v54, 7
  %v56 = vsub.s32 0, %v55
  %v57 = vrot.slane %v23, %v56
  %v59 = vmul.f32 %v51, %v57
  %v60 = vmul.f32 %v52, %v57
  %v62 = vlaneseq
  %v63 = vshrl.u32 %v62, 7
  %v64 = vsub.s32 0, %v63
  %v65 = vrot.slane %v24, %v64
  %v67 = vadd.f32 %v59, %v65
  %v68 = vadd.f32 %v60, %v65
  %v69 = vld [vmem:[%s3] sm:$0xf]
  %v70 = vld [vmem:[%s3 + $0x4] sm:$0xf]
  %v71 = vld [vmem:[%s3 + $0x8] sm:$0xf]
  %v72 = vld [vmem:[%s3 + $0xc] sm:$0xf]
  %v73 = vpack.c.bf16 %v68, %v67
  %v74 = vld [vmem:[%s4] sm:$0x1]
  %v76 = vlaneseq
  %v77 = vshrl.u32 %v76, 7
  %v78 = vsub.s32 0, %v77
  %v79 = vrot.slane %v74, %v78
  %v85 = vunpack.c.l.b16 %v69
  %v86 = vunpack.c.l.b16 %v70
  %v87 = vunpack.c.l.b16 %v71
  %v88 = vunpack.c.l.b16 %v72
  %v89 = vpack.c.b16 %v86, %v85
  %v90 = vpack.c.b16 %v88, %v87
  %v94 = vsel %vm25, %v73, 0
  %96 = vmatprep.subr.bf16.mxu0 0
  %97 = vmatpush1.bf16.msra.mxu0 0
  %98 = vmatprep.subr.bf16.mxu0 0
  %99 = vmatpush1.bf16.msra.mxu0 0
  %100 = vmatprep.subr.bf16.mxu0 0
  %101 = vmatpush1.bf16.msra.mxu0 0
  %102 = vmatprep.subr.bf16.mxu0 0
  %103 = vmatpush1.bf16.msra.mxu0 0
  %104 = vmatprep.subr.bf16.mxu0 0
  %105 = vmatpush1.bf16.msra.mxu0 0
  %106 = vmatprep.subr.bf16.mxu0 0
  %107 = vmatpush1.bf16.msra.mxu0 0
  %108 = vmatprep.subr.bf16.mxu0 0
  %109 = vmatpush1.bf16.msra.mxu0 %v90
  %110 = vmatprep.subr.bf16.mxu0 0
  %111 = vmatpush1.bf16.msra.mxu0 %v89
  %112 = vmatprep.subr.bf16.mxu0 0
  %113 = vmatpush2.bf16.msra.mxu0 0
  %114 = vmatprep.subr.bf16.mxu0 0
  %115 = vmatpush2.bf16.msra.mxu0 0
  %116 = vmatprep.subr.bf16.mxu0 0
  %117 = vmatpush2.bf16.msra.mxu0 0
  %118 = vmatprep.subr.bf16.mxu0 0
  %119 = vmatpush2.bf16.msra.mxu0 0
  %120 = vmatprep.subr.bf16.mxu0 0
  %121 = vmatpush2.bf16.msra.mxu0 0
  %122 = vmatprep.subr.bf16.mxu0 0
  %123 = vmatpush2.bf16.msra.mxu0 0
  %124 = vmatprep.subr.bf16.mxu0 0
  %125 = vmatpush2.bf16.msra.mxu0 0
  %126 = vmatprep.subr.bf16.mxu0 0
  %127 = vmatpush2.bf16.msra.mxu0 0
  %128 = vmatprep.mubr.bf16.mxu0 0
  %129 = vmatmul.mubr.bf16.gmra.mxu0 %v94
  %v130 = vpop.f32.mrf.mxu0
  %v131 = vadd.f32 %v79, %v130
  %v132 = vpop.f32.mrf.mxu0
  %v133 = vpop.f32.mrf.mxu0
  %v134 = vadd.f32 %v79, %v133
  %v135 = vpop.f32.mrf.mxu0
  %136 = vdwg.mxu0
  %v137 = vpack.c.bf16 %v134, %v131
  %v139 = vunpack.c.l.b16 %v137
  %v140 = vunpack.c.h.b16 %v137
  %v141 = vpack.c.b16 %v139, %v139
  %v142 = vpack.c.b16 %v140, %v140
  %vm145 = vcmask 781312
  %146 = vst.msk [vmem:[%s5] sm:$0xf] %vm145, %v141
  %147 = vst.msk [vmem:[%s5 + $0x4] sm:$0xf] %vm145, %v142
  // Predicated region
  $region22: #{decoder_forward.17} parent=0 // pred_check
    _
  $region23: #{decoder_forward.17} parent=0 // pred_check_branch
    %149 = sbr.rel (0) target = $region25
  $region24: #{decoder_forward.17} parent=0 // pred_region
    _
  $region25: #{decoder_forward.17} parent=0 // pred_fallthru
    _
  // Predicated region
  $region26: #{decoder_forward.17} parent=0 // pred_check
    _
  $region27: #{decoder_forward.17} parent=0 // pred_check_branch
    %151 = sbr.rel (0) target = $region29
  $region28: #{decoder_forward.17} parent=0 // pred_region
    _
  $region29: #{decoder_forward.17} parent=0 // pred_fallthru
    _

// kernel: decoder_forward.19
$region0: #{decoder_forward.19}
  #allocation0 [shape = 'u32[]', space=smem, size = 0x4, offset = 0x4, fixed_abs, tag = 'smem constant byte address 0x4 - core index']
  #allocation1 [shape = 'u32[144,128]{1,0:T(1,128)}', space=vmem, size = 0x12000, scoped, tag = 'internal scratch']
  #allocation2 [shape = 'f32[1]{0:T(128)S(6)}', space=smem, size = 0x200, scoped, tag = 'scoped memory for decoder_forward.19']
  %s0 = inlined_call_operand.vmem [shape: bf16[16,32], index: 0, kind: input, shape index: {}]
  %s1 = inlined_call_operand.vmem [shape: bf16[32,32], index: 1, kind: input, shape index: {}]
  %s2 = inlined_call_operand.vmem [shape: f32[1,32], index: 2, kind: input, shape index: {}]
  %s3 = inlined_call_operand.vmem [shape: f32[16,32], index: 3, kind: input, shape index: {}]
  %s4 = inlined_call_operand.<no memory space> [shape: f32[1], index: 4, kind: input, shape index: {}]
  %s5 = inlined_call_operand.vmem [shape: f32[16,32], index: 5, kind: output, shape index: {}]
  %s6 = sld [smem:[#allocation0]]
  $region30: #{decoder_forward.19} parent=0
    _
  %s8 = ssub.s32 1, %s6
  %s9 = scalar_select 0, %s8, %s6
  %10 = sst [smem:[#allocation2]] %s4
  // Predicated region
  $region2: #{decoder_forward.19} parent=0 // pred_check
    _
  $region3: #{decoder_forward.19} parent=0 // pred_check_branch
    %12 = sbr.rel (0) target = $region5
  $region4: #{decoder_forward.19} parent=0 // pred_region
    _
  $region5: #{decoder_forward.19} parent=0 // pred_fallthru
    _
  // Predicated region
  $region6: #{decoder_forward.19} parent=0 // pred_check
    _
  $region7: #{decoder_forward.19} parent=0 // pred_check_branch
    %14 = sbr.rel (0) target = $region9
  $region8: #{decoder_forward.19} parent=0 // pred_region
    _
  $region9: #{decoder_forward.19} parent=0 // pred_fallthru
    _
  // Predicated region
  $region10: #{decoder_forward.19} parent=0 // pred_check
    _
  $region11: #{decoder_forward.19} parent=0 // pred_check_branch
    %16 = sbr.rel (0) target = $region13
  $region12: #{decoder_forward.19} parent=0 // pred_region
    _
  $region13: #{decoder_forward.19} parent=0 // pred_fallthru
    _
  // Predicated region
  $region14: #{decoder_forward.19} parent=0 // pred_check
    _
  $region15: #{decoder_forward.19} parent=0 // pred_check_branch
    %18 = sbr.rel (0) target = $region17
  $region16: #{decoder_forward.19} parent=0 // pred_region
    _
  $region17: #{decoder_forward.19} parent=0 // pred_fallthru
    _
  // Predicated region
  $region18: #{decoder_forward.19} parent=0 // pred_check
    _
  $region19: #{decoder_forward.19} parent=0 // pred_check_branch
    %20 = sbr.rel (0) target = $region21
  $region20: #{decoder_forward.19} parent=0 // pred_region
    _
  $region21: #{decoder_forward.19} parent=0 // pred_fallthru
    _
  %v22 = vld [vmem:[%s0] sm:$0xf]
  %v23 = vld [vmem:[%s0 + $0x4] sm:$0xf]
  %v24 = vld [vmem:[%s1] sm:$0xf]
  %v25 = vld [vmem:[%s1 + $0x4] sm:$0xf]
  %v26 = vld [vmem:[%s1 + $0x8] sm:$0xf]
  %v27 = vld [vmem:[%s1 + $0xc] sm:$0xf]
  %v28 = vld [vmem:[%s2] sm:$0x1]
  %v30 = vlaneseq
  %v31 = vshrl.u32 %v30, 7
  %v32 = vsub.s32 0, %v31
  %v33 = vrot.slane %v28, %v32
  %v37 = vunpack.c.l.b16 %v22
  %v38 = vunpack.c.l.b16 %v23
  %v39 = vpack.c.b16 %v38, %v37
  %v44 = vunpack.c.l.b16 %v24
  %v45 = vunpack.c.l.b16 %v25
  %v46 = vunpack.c.l.b16 %v26
  %v47 = vunpack.c.l.b16 %v27
  %v48 = vpack.c.b16 %v45, %v44
  %v49 = vpack.c.b16 %v47, %v46
  %vm52 = vcmask 261120
  %v54 = vsel %vm52, %v39, 0
  %56 = vmatprep.subr.bf16.mxu0 0
  %57 = vmatpush1.bf16.msra.mxu0 0
  %58 = vmatprep.subr.bf16.mxu0 0
  %59 = vmatpush1.bf16.msra.mxu0 0
  %60 = vmatprep.subr.bf16.mxu0 0
  %61 = vmatpush1.bf16.msra.mxu0 0
  %62 = vmatprep.subr.bf16.mxu0 0
  %63 = vmatpush1.bf16.msra.mxu0 0
  %64 = vmatprep.subr.bf16.mxu0 0
  %65 = vmatpush1.bf16.msra.mxu0 0
  %66 = vmatprep.subr.bf16.mxu0 0
  %67 = vmatpush1.bf16.msra.mxu0 0
  %68 = vmatprep.subr.bf16.mxu0 0
  %69 = vmatpush1.bf16.msra.mxu0 %v49
  %70 = vmatprep.subr.bf16.mxu0 0
  %71 = vmatpush1.bf16.msra.mxu0 %v48
  %72 = vmatprep.subr.bf16.mxu0 0
  %73 = vmatpush2.bf16.msra.mxu0 0
  %74 = vmatprep.subr.bf16.mxu0 0
  %75 = vmatpush2.bf16.msra.mxu0 0
  %76 = vmatprep.subr.bf16.mxu0 0
  %77 = vmatpush2.bf16.msra.mxu0 0
  %78 = vmatprep.subr.bf16.mxu0 0
  %79 = vmatpush2.bf16.msra.mxu0 0
  %80 = vmatprep.subr.bf16.mxu0 0
  %81 = vmatpush2.bf16.msra.mxu0 0
  %82 = vmatprep.subr.bf16.mxu0 0
  %83 = vmatpush2.bf16.msra.mxu0 0
  %84 = vmatprep.subr.bf16.mxu0 0
  %85 = vmatpush2.bf16.msra.mxu0 0
  %86 = vmatprep.subr.bf16.mxu0 0
  %87 = vmatpush2.bf16.msra.mxu0 0
  %88 = vmatprep.mubr.bf16.mxu0 0
  %89 = vmatmul.mubr.bf16.gmra.mxu0 %v54
  %v90 = vpop.f32.mrf.mxu0
  %v91 = vadd.f32 %v33, %v90
  %v92 = vpop.f32.mrf.mxu0
  %v93 = vpop.f32.mrf.mxu0
  %v94 = vadd.f32 %v33, %v93
  %v95 = vpop.f32.mrf.mxu0
  %96 = vdwg.mxu0
  %v97 = vld [vmem:[%s3] sm:$0xff]
  %v98 = vld [vmem:[%s3 + $0x8] sm:$0xff]
  %s99 = sld [smem:[#allocation2]]
  %v100 = vstv %s99
  %v101 = vmul.f32 %v100, %v91
  %v102 = vmul.f32 %v100, %v94
  %v103 = vadd.f32 %v97, %v101
  %v104 = vadd.f32 %v98, %v102
  %105 = vst.msk [vmem:[%s5] sm:$0xff] %vm52, %v103
  %106 = vst.msk [vmem:[%s5 + $0x8] sm:$0xff] %vm52, %v104
  // Predicated region
  $region22: #{decoder_forward.19} parent=0 // pred_check
    _
  $region23: #{decoder_forward.19} parent=0 // pred_check_branch
    %108 = sbr.rel (0) target = $region25
  $region24: #{decoder_forward.19} parent=0 // pred_region
    _
  $region25: #{decoder_forward.19} parent=0 // pred_fallthru
    _
  // Predicated region
  $region26: #{decoder_forward.19} parent=0 // pred_check
    _
  $region27: #{decoder_forward.19} parent=0 // pred_check_branch
    %110 = sbr.rel (0) target = $region29
  $region28: #{decoder_forward.19} parent=0 // pred_region
    _
  $region29: #{decoder_forward.19} parent=0 // pred_fallthru
    _

// kernel: decoder_forward.20
$region0: #{decoder_forward.20}
  #allocation0 [shape = 'u32[]', space=smem, size = 0x4, offset = 0x4, fixed_abs, tag = 'smem constant byte address 0x4 - core index']
  #allocation1 [shape = 'u32[144,128]{1,0:T(1,128)}', space=vmem, size = 0x12000, scoped, tag = 'internal scratch']
  %s0 = inlined_call_operand.vmem [shape: f32[16,32], index: 0, kind: input, shape index: {}]
  %s1 = inlined_call_operand.vmem [shape: f32[1,32], index: 1, kind: input, shape index: {}]
  %s2 = inlined_call_operand.vmem [shape: f32[1,32], index: 2, kind: input, shape index: {}]
  %s3 = inlined_call_operand.vmem [shape: bf16[32,32], index: 3, kind: input, shape index: {}]
  %s4 = inlined_call_operand.vmem [shape: f32[1,32], index: 4, kind: input, shape index: {}]
  %s5 = inlined_call_operand.vmem [shape: bf16[16,32], index: 5, kind: output, shape index: {}]
  %s6 = sld [smem:[#allocation0]]
  $region30: #{decoder_forward.20} parent=0
    _
  %s8 = ssub.s32 1, %s6
  %s9 = scalar_select 0, %s8, %s6
  // Predicated region
  $region2: #{decoder_forward.20} parent=0 // pred_check
    _
  $region3: #{decoder_forward.20} parent=0 // pred_check_branch
    %11 = sbr.rel (0) target = $region5
  $region4: #{decoder_forward.20} parent=0 // pred_region
    _
  $region5: #{decoder_forward.20} parent=0 // pred_fallthru
    _
  // Predicated region
  $region6: #{decoder_forward.20} parent=0 // pred_check
    _
  $region7: #{decoder_forward.20} parent=0 // pred_check_branch
    %13 = sbr.rel (0) target = $region9
  $region8: #{decoder_forward.20} parent=0 // pred_region
    _
  $region9: #{decoder_forward.20} parent=0 // pred_fallthru
    _
  // Predicated region
  $region10: #{decoder_forward.20} parent=0 // pred_check
    _
  $region11: #{decoder_forward.20} parent=0 // pred_check_branch
    %15 = sbr.rel (0) target = $region13
  $region12: #{decoder_forward.20} parent=0 // pred_region
    _
  $region13: #{decoder_forward.20} parent=0 // pred_fallthru
    _
  // Predicated region
  $region14: #{decoder_forward.20} parent=0 // pred_check
    _
  $region15: #{decoder_forward.20} parent=0 // pred_check_branch
    %17 = sbr.rel (0) target = $region17
  $region16: #{decoder_forward.20} parent=0 // pred_region
    _
  $region17: #{decoder_forward.20} parent=0 // pred_fallthru
    _
  // Predicated region
  $region18: #{decoder_forward.20} parent=0 // pred_check
    _
  $region19: #{decoder_forward.20} parent=0 // pred_check_branch
    %19 = sbr.rel (0) target = $region21
  $region20: #{decoder_forward.20} parent=0 // pred_region
    _
  $region21: #{decoder_forward.20} parent=0 // pred_fallthru
    _
  %v21 = vld [vmem:[%s0] sm:$0xff]
  %v22 = vld [vmem:[%s0 + $0x8] sm:$0xff]
  %v23 = vld [vmem:[%s1] sm:$0x1]
  %v24 = vld [vmem:[%s2] sm:$0x1]
  %vm25 = vcmask 261120
  %v26 = vsel %vm25, %v21, 0.0
  %27 = vadd.xlane.f32.xlu0 %v26
  %v28 = vpop.xlane.xlu0 %27
  %v29 = vsel %vm25, %v22, 0.0
  %30 = vadd.xlane.f32.xlu0 %v29
  %v31 = vpop.xlane.xlu0 %30
  %v32 = vrcp.pop 32.0
  %v33 = vmul.f32 %v28, %v32
  %v34 = vmul.f32 %v31, %v32
  %v35 = vsub.f32 %v21, %v33
  %v36 = vsub.f32 %v22, %v34
  %v37 = vmul.f32 %v35, %v35
  %v38 = vmul.f32 %v36, %v36
  %v39 = vsel %vm25, %v37, 0.0
  %40 = vadd.xlane.f32.xlu0 %v39
  %v41 = vpop.xlane.xlu0 %40
  %v42 = vsel %vm25, %v38, 0.0
  %43 = vadd.xlane.f32.xlu0 %v42
  %v44 = vpop.xlane.xlu0 %43
  %v45 = vmul.f32 %v41, %v32
  %v46 = vmul.f32 %v44, %v32
  %v47 = vadd.f32 %v45, 1e-05
  %v48 = vadd.f32 %v46, 1e-05
  %v49 = vrsqrt.pop %v47
  %v50 = vrsqrt.pop %v48
  %v51 = vmul.f32 %v35, %v49
  %v52 = vmul.f32 %v36, %v50
  %v54 = vlaneseq
  %v55 = vshrl.u32 %v54, 7
  %v56 = vsub.s32 0, %v55
  %v57 = vrot.slane %v23, %v56
  %v59 = vmul.f32 %v51, %v57
  %v60 = vmul.f32 %v52, %v57
  %v62 = vlaneseq
  %v63 = vshrl.u32 %v62, 7
  %v64 = vsub.s32 0, %v63
  %v65 = vrot.slane %v24, %v64
  %v67 = vadd.f32 %v59, %v65
  %v68 = vadd.f32 %v60, %v65
  %v69 = vld [vmem:[%s3] sm:$0xf]
  %v70 = vld [vmem:[%s3 + $0x4] sm:$0xf]
  %v71 = vld [vmem:[%s3 + $0x8] sm:$0xf]
  %v72 = vld [vmem:[%s3 + $0xc] sm:$0xf]
  %v73 = vpack.c.bf16 %v68, %v67
  %v74 = vld [vmem:[%s4] sm:$0x1]
  %v76 = vlaneseq
  %v77 = vshrl.u32 %v76, 7
  %v78 = vsub.s32 0, %v77
  %v79 = vrot.slane %v74, %v78
  %v85 = vunpack.c.l.b16 %v69
  %v86 = vunpack.c.l.b16 %v70
  %v87 = vunpack.c.l.b16 %v71
  %v88 = vunpack.c.l.b16 %v72
  %v89 = vpack.c.b16 %v86, %v85
  %v90 = vpack.c.b16 %v88, %v87
  %v94 = vsel %vm25, %v73, 0
  %96 = vmatprep.subr.bf16.mxu0 0
  %97 = vmatpush1.bf16.msra.mxu0 0
  %98 = vmatprep.subr.bf16.mxu0 0
  %99 = vmatpush1.bf16.msra.mxu0 0
  %100 = vmatprep.subr.bf16.mxu0 0
  %101 = vmatpush1.bf16.msra.mxu0 0
  %102 = vmatprep.subr.bf16.mxu0 0
  %103 = vmatpush1.bf16.msra.mxu0 0
  %104 = vmatprep.subr.bf16.mxu0 0
  %105 = vmatpush1.bf16.msra.mxu0 0
  %106 = vmatprep.subr.bf16.mxu0 0
  %107 = vmatpush1.bf16.msra.mxu0 0
  %108 = vmatprep.subr.bf16.mxu0 0
  %109 = vmatpush1.bf16.msra.mxu0 %v90
  %110 = vmatprep.subr.bf16.mxu0 0
  %111 = vmatpush1.bf16.msra.mxu0 %v89
  %112 = vmatprep.subr.bf16.mxu0 0
  %113 = vmatpush2.bf16.msra.mxu0 0
  %114 = vmatprep.subr.bf16.mxu0 0
  %115 = vmatpush2.bf16.msra.mxu0 0
  %116 = vmatprep.subr.bf16.mxu0 0
  %117 = vmatpush2.bf16.msra.mxu0 0
  %118 = vmatprep.subr.bf16.mxu0 0
  %119 = vmatpush2.bf16.msra.mxu0 0
  %120 = vmatprep.subr.bf16.mxu0 0
  %121 = vmatpush2.bf16.msra.mxu0 0
  %122 = vmatprep.subr.bf16.mxu0 0
  %123 = vmatpush2.bf16.msra.mxu0 0
  %124 = vmatprep.subr.bf16.mxu0 0
  %125 = vmatpush2.bf16.msra.mxu0 0
  %126 = vmatprep.subr.bf16.mxu0 0
  %127 = vmatpush2.bf16.msra.mxu0 0
  %128 = vmatprep.mubr.bf16.mxu0 0
  %129 = vmatmul.mubr.bf16.gmra.mxu0 %v94
  %v130 = vpop.f32.mrf.mxu0
  %v131 = vadd.f32 %v79, %v130
  %v132 = vpop.f32.mrf.mxu0
  %v133 = vpop.f32.mrf.mxu0
  %v134 = vadd.f32 %v79, %v133
  %v135 = vpop.f32.mrf.mxu0
  %136 = vdwg.mxu0
  %v137 = vpack.c.bf16 %v134, %v131
  %v139 = vunpack.c.l.b16 %v137
  %v140 = vunpack.c.h.b16 %v137
  %v141 = vpack.c.b16 %v139, %v139
  %v142 = vpack.c.b16 %v140, %v140
  %vm145 = vcmask 257024
  %146 = vst.msk [vmem:[%s5] sm:$0xf] %vm145, %v141
  %147 = vst.msk [vmem:[%s5 + $0x4] sm:$0xf] %vm145, %v142
  // Predicated region
  $region22: #{decoder_forward.20} parent=0 // pred_check
    _
  $region23: #{decoder_forward.20} parent=0 // pred_check_branch
    %149 = sbr.rel (0) target = $region25
  $region24: #{decoder_forward.20} parent=0 // pred_region
    _
  $region25: #{decoder_forward.20} parent=0 // pred_fallthru
    _
  // Predicated region
  $region26: #{decoder_forward.20} parent=0 // pred_check
    _
  $region27: #{decoder_forward.20} parent=0 // pred_check_branch
    %151 = sbr.rel (0) target = $region29
  $region28: #{decoder_forward.20} parent=0 // pred_region
    _
  $region29: #{decoder_forward.20} parent=0 // pred_fallthru
    _

// kernel: decoder_forward.18
$region0: #{decoder_forward.18}
  #allocation0 [shape = 'u32[]', space=smem, size = 0x4, offset = 0x4, fixed_abs, tag = 'smem constant byte address 0x4 - core index']
  #allocation1 [shape = 'u32[144,128]{1,0:T(1,128)}', space=vmem, size = 0x12000, scoped, tag = 'internal scratch']
  %s0 = inlined_call_operand.vmem [shape: bf16[2,8,96], index: 0, kind: input, shape index: {}]
  %s1 = inlined_call_operand.vmem [shape: bf16[2,8,32], index: 1, kind: output, shape index: {}]
  %s2 = sld [smem:[#allocation0]]
  $region37: #{decoder_forward.18} parent=0
    _
  %s4 = ssub.s32 1, %s2
  %s5 = scalar_select 0, %s4, %s2
  loop: start=0, step=1, limit=4
  $region2: #{decoder_forward.18} parent=0 // loop_pre_header
    _
  $region3: #{decoder_forward.18} parent=0 // loop_header
    %s7 = sphi 0, %s11
    %p8 = scmp.ge.s32.totalorder %s7, 4
    %s17 = sphi 0, %s19
    %s20 = sphi 0, %s17
    %s21 = sphi 0, %s20
    %s37 = sphi 0, %s21
    %s43 = sphi 0, %s45
    %s46 = sphi 0, %s43
    %s47 = sphi 0, %s46
    %s63 = sphi 0, %s47
  $region4: #{decoder_forward.18} parent=0 // loop_header_branch
    %10 = sbr.rel (%p8) target = $region8
  $region5: #{decoder_forward.18} parent=0 // loop_body
    %s12 = ssub.s32 %s7, 1
    %s13 = ssub.s32 %s7, 2
    %s14 = sadd.s32 %s7, 1
    %s15 = ssub.s32 %s7, %s14
    %p16 = scmp.eq.s32.totalorder %s15, 0
    %s18 = sadd.s32 %s17, 1
    %s19 = scalar_select %p16, %s17, %s18
    %p22 = pneg %p16
    %p23 = scmp.eq.s32.totalorder %s7, 1
    %p24 = por %p22, %p23
    %p25 = scmp.ne.s32.totalorder %s17, %s20
    %p26 = scmp.eq.s32.totalorder %s7, 0
    %p27 = por %p25, %p26
    %p28 = scmp.ne.s32.totalorder %s17, %s20
    %p29 = scmp.eq.s32.totalorder %s12, 1
    %p30 = por %p28, %p29
    %p31 = scmp.ne.s32.totalorder %s20, %s21
    %p32 = scmp.eq.s32.totalorder %s12, 0
    %p33 = por %p31, %p32
    %p34 = scmp.ne.s32.totalorder %s20, %s21
    %p35 = scmp.eq.s32.totalorder %s13, 1
    %p36 = por %p34, %p35
    %p38 = scmp.ne.s32.totalorder %s21, %s37
    %p39 = scmp.eq.s32.totalorder %s13, 0
    %p40 = por %p38, %p39
    %s41 = ssub.s32 %s7, %s14
    %p42 = scmp.eq.s32.totalorder %s41, 0
    %s44 = sadd.s32 %s43, 1
    %s45 = scalar_select %p42, %s43, %s44
    %p48 = pneg %p42
    %p49 = scmp.eq.s32.totalorder %s7, 1
    %p50 = por %p48, %p49
    %p51 = scmp.ne.s32.totalorder %s43, %s46
    %p52 = scmp.eq.s32.totalorder %s7, 0
    %p53 = por %p51, %p52
    %p54 = scmp.ne.s32.totalorder %s43, %s46
    %p55 = scmp.eq.s32.totalorder %s12, 1
    %p56 = por %p54, %p55
    %p57 = scmp.ne.s32.totalorder %s46, %s47
    %p58 = scmp.eq.s32.totalorder %s12, 0
    %p59 = por %p57, %p58
    %p60 = scmp.ne.s32.totalorder %s46, %s47
    %p61 = scmp.eq.s32.totalorder %s13, 1
    %p62 = por %p60, %p61
    %p64 = scmp.ne.s32.totalorder %s47, %s63
    %p65 = scmp.eq.s32.totalorder %s13, 0
    %p66 = por %p64, %p65
    %p67 = scmp.le.s32.totalorder 1, %s7
    %p68 = scmp.lt.s32.totalorder %s7, 3
    %p69 = pnand %p67, %p68
    %p70 = pneg %p69
    // Predicated region
    $region9: #{decoder_forward.18} parent=5 // pred_check
      _
    $region10: #{decoder_forward.18} parent=5 // pred_check_branch
      %72 = sbr.rel (%p69) target = $region12
    $region11: #{decoder_forward.18} parent=5 // pred_region
      %s73 = ssub.s32 %s7, 1
    $region12: #{decoder_forward.18} parent=5 // pred_fallthru
      _
    %p74 = scmp.lt.s32.totalorder %s7, 2
    // Predicated region
    $region13: #{decoder_forward.18} parent=5 // pred_check
      %p75 = pneg %p74
    $region14: #{decoder_forward.18} parent=5 // pred_check_branch
      %77 = sbr.rel (%p75) target = $region16
    $region15: #{decoder_forward.18} parent=5 // pred_region
      // Predicated region
      $region17: #{decoder_forward.18} parent=15 // pred_check
        %p78 = pneg %p27
      $region18: #{decoder_forward.18} parent=15 // pred_check_branch
        %80 = sbr.rel (%p78) target = $region20
      $region19: #{decoder_forward.18} parent=15 // pred_region
        %p81 = scmp.lt.s32.totalorder %s7, 1
        %s82 = scalar_select %p81, %s7, 1
        %s83 = smul.addr %s82, 4
        %s84 = scalar_lea.vmem %s0, %s83
      $region20: #{decoder_forward.18} parent=15 // pred_fallthru
        _
    $region16: #{decoder_forward.18} parent=5 // pred_fallthru
      _
    %p85 = scmp.le.s32.totalorder 1, %s7
    %p86 = scmp.lt.s32.totalorder %s7, 3
    %p87 = pnand %p85, %p86
    %p88 = pneg %p87
    // Predicated region
    $region21: #{decoder_forward.18} parent=5 // pred_check
      _
    $region22: #{decoder_forward.18} parent=5 // pred_check_branch
      %90 = sbr.rel (%p87) target = $region24
    $region23: #{decoder_forward.18} parent=5 // pred_region
      %s91 = ssub.s32 %s7, 1
      %p92 = scmp.lt.s32.totalorder %s12, 1
      %s93 = scalar_select %p92, %s12, 1
      %s94 = smul.addr %s93, 4
      %s95 = scalar_lea.vmem %s0, %s94
      %p96 = pneg %p33
      %p97 = pneg %p30
      %p98 = pneg %p59
      %p99 = pneg %p56
      %p100 = scmp.lt.s32.totalorder %s12, 1
      %s101 = scalar_select %p100, %s12, 1
      %s102 = smul.addr %s101, 4
      %s103 = scalar_lea.vmem %s1, %s102
      %p104 = scmp.lt.s32.totalorder %s12, 1
      %s105 = scalar_select %p104, %s12, 1
      %s106 = smul.addr %s105, 4
      %s107 = scalar_lea.vmem %s0, %s106
      %p108 = scmp.lt.s32.totalorder %s12, 1
      %s109 = scalar_select %p108, %s12, 1
      %s110 = smul.addr %s109, 4
      %s111 = scalar_lea.vmem %s1, %s110
      %v113 = vld [vmem:[%s107] sm:$0xf]
      %v115 = vunpack.c.l.b16 %v113
      %v116 = vpack.c.b16 %v115, %v115
      %117 = vrot.lane.b32.xlu0 %v116, 96
      %v118 = vpop.permute.xlu0 %117
      %vm119 = vcmask 64512
      %v121 = vsel %vm119, %v113, 0
      %v124 = vsel %vm119, %v118, 0
      %126 = vmatprep.subr.bf16.mxu0 0
      %127 = vmatpush1.bf16.xpose.msra.mxu0 0
      %128 = vmatprep.subr.bf16.mxu0 0
      %129 = vmatpush1.bf16.xpose.msra.mxu0 0
      %130 = vmatprep.subr.bf16.mxu0 0
      %131 = vmatpush1.bf16.xpose.msra.mxu0 0
      %132 = vmatprep.subr.bf16.mxu0 0
      %133 = vmatpush1.bf16.xpose.msra.mxu0 0
      %134 = vmatprep.subr.bf16.mxu0 0
      %135 = vmatpush1.bf16.xpose.msra.mxu0 0
      %136 = vmatprep.subr.bf16.mxu0 0
      %137 = vmatpush1.bf16.xpose.msra.mxu0 0
      %138 = vmatprep.subr.bf16.mxu0 0
      %139 = vmatpush1.bf16.xpose.msra.mxu0 0
      %140 = vmatprep.subr.bf16.mxu0 0
      %141 = vmatpush1.bf16.xpose.msra.mxu0 %v124
      %142 = vmatprep.subr.bf16.mxu0 0
      %143 = vmatpush2.bf16.xpose.msra.mxu0 0
      %144 = vmatprep.subr.bf16.mxu0 0
      %145 = vmatpush2.bf16.xpose.msra.mxu0 0
      %146 = vmatprep.subr.bf16.mxu0 0
      %147 = vmatpush2.bf16.xpose.msra.mxu0 0
      %148 = vmatprep.subr.bf16.mxu0 0
      %149 = vmatpush2.bf16.xpose.msra.mxu0 0
      %150 = vmatprep.subr.bf16.mxu0 0
      %151 = vmatpush2.bf16.xpose.msra.mxu0 0
      %152 = vmatprep.subr.bf16.mxu0 0
      %153 = vmatpush2.bf16.xpose.msra.mxu0 0
      %154 = vmatprep.subr.bf16.mxu0 0
      %155 = vmatpush2.bf16.xpose.msra.mxu0 0
      %156 = vmatprep.subr.bf16.mxu0 0
      %157 = vmatpush2.bf16.xpose.msra.mxu0 0
      %158 = vmatprep.mubr.bf16.mxu0 0
      %159 = vmatmul.mubr.bf16.gmra.mxu0 %v121
      %v160 = vpop.f32.mrf.mxu0
      %v161 = vadd.f32 0.0, %v160
      %v162 = vpop.f32.mrf.mxu0
      %v163 = vpop.f32.mrf.mxu0
      %v164 = vpop.f32.mrf.mxu0
      %165 = vdwg.mxu0
      %v166 = vmul.f32 %v161, 0.35355338
      %v167 = vlaneseq
      %v168 = vshrl.u32 %v167, 7
      %v169 = vlaneseq
      %v170 = vand.u32 %v169, 127
      %vm171 = vcmp.le.s32.totalorder %v170, %v168
      %v172 = vsel %vm171, %v166, -1e+30
      %v173 = vsel %vm119, %v172, -inf
      %174 = vmax.xlane.f32.xlu0 %v173
      %v175 = vpop.xlane.xlu0 %174
      %v176 = vsub.f32 %v172, %v175
      %v177 = vmul.f32 %v176, 1.442695
      %v178 = vpow.pop %v177
      %v179 = vsel %vm119, %v178, 0.0
      %180 = vadd.xlane.f32.xlu0 %v179
      %v181 = vpop.xlane.xlu0 %180
      %v182 = vrcp.pop %v181
      %v183 = vmul.f32 %v178, %v182
      %v184 = vpack.c.bf16 %v183, %v183
      %185 = vrot.lane.b32.xlu0 %v116, 64
      %v186 = vpop.permute.xlu0 %185
      %v188 = vsel %vm119, %v184, 0
      %vm190 = vcmask 1043456
      %v192 = vsel %vm190, %v186, 0
      %194 = vmatprep.subr.bf16.mxu0 0
      %195 = vmatpush1.bf16.msra.mxu0 0
      %196 = vmatprep.subr.bf16.mxu0 0
      %197 = vmatpush1.bf16.msra.mxu0 0
      %198 = vmatprep.subr.bf16.mxu0 0
      %199 = vmatpush1.bf16.msra.mxu0 0
      %200 = vmatprep.subr.bf16.mxu0 0
      %201 = vmatpush1.bf16.msra.mxu0 0
      %202 = vmatprep.subr.bf16.mxu0 0
      %203 = vmatpush1.bf16.msra.mxu0 0
      %204 = vmatprep.subr.bf16.mxu0 0
      %205 = vmatpush1.bf16.msra.mxu0 0
      %206 = vmatprep.subr.bf16.mxu0 0
      %207 = vmatpush1.bf16.msra.mxu0 0
      %208 = vmatprep.subr.bf16.mxu0 0
      %209 = vmatpush1.bf16.msra.mxu0 %v192
      %210 = vmatprep.subr.bf16.mxu0 0
      %211 = vmatpush2.bf16.msra.mxu0 0
      %212 = vmatprep.subr.bf16.mxu0 0
      %213 = vmatpush2.bf16.msra.mxu0 0
      %214 = vmatprep.subr.bf16.mxu0 0
      %215 = vmatpush2.bf16.msra.mxu0 0
      %216 = vmatprep.subr.bf16.mxu0 0
      %217 = vmatpush2.bf16.msra.mxu0 0
      %218 = vmatprep.subr.bf16.mxu0 0
      %219 = vmatpush2.bf16.msra.mxu0 0
      %220 = vmatprep.subr.bf16.mxu0 0
      %221 = vmatpush2.bf16.msra.mxu0 0
      %222 = vmatprep.subr.bf16.mxu0 0
      %223 = vmatpush2.bf16.msra.mxu0 0
      %224 = vmatprep.subr.bf16.mxu0 0
      %225 = vmatpush2.bf16.msra.mxu0 0
      %226 = vmatprep.mubr.bf16.mxu0 0
      %227 = vmatmul.mubr.bf16.gmra.mxu0 %v188
      %v228 = vpop.f32.mrf.mxu0
      %v229 = vadd.f32 0.0, %v228
      %v230 = vpop.f32.mrf.mxu0
      %v231 = vpop.f32.mrf.mxu0
      %v232 = vpop.f32.mrf.mxu0
      %233 = vdwg.mxu0
      %v234 = vpack.c.bf16 %v229, %v229
      %vm235 = vcmask 60416
      %236 = vst.msk [vmem:[%s111] sm:$0xf] %vm235, %v234
      %v237 = vld [vmem:[%s107] sm:$0xf]
      %v239 = vunpack.c.l.b16 %v237
      %v240 = vpack.c.b16 %v239, %v239
      %241 = vrot.lane.b32.xlu0 %v240, 120
      %v242 = vpop.permute.xlu0 %241
      %243 = vrot.lane.b32.xlu0 %v240, 88
      %v244 = vpop.permute.xlu0 %243
      %v246 = vsel %vm119, %v242, 0
      %v249 = vsel %vm119, %v244, 0
      %251 = vmatprep.subr.bf16.mxu0 0
      %252 = vmatpush1.bf16.xpose.msra.mxu0 0
      %253 = vmatprep.subr.bf16.mxu0 0
      %254 = vmatpush1.bf16.xpose.msra.mxu0 0
      %255 = vmatprep.subr.bf16.mxu0 0
      %256 = vmatpush1.bf16.xpose.msra.mxu0 0
      %257 = vmatprep.subr.bf16.mxu0 0
      %258 = vmatpush1.bf16.xpose.msra.mxu0 0
      %259 = vmatprep.subr.bf16.mxu0 0
      %260 = vmatpush1.bf16.xpose.msra.mxu0 0
      %261 = vmatprep.subr.bf16.mxu0 0
      %262 = vmatpush1.bf16.xpose.msra.mxu0 0
      %263 = vmatprep.subr.bf16.mxu0 0
      %264 = vmatpush1.bf16.xpose.msra.mxu0 0
      %265 = vmatprep.subr.bf16.mxu0 0
      %266 = vmatpush1.bf16.xpose.msra.mxu0 %v249
      %267 = vmatprep.subr.bf16.mxu0 0
      %268 = vmatpush2.bf16.xpose.msra.mxu0 0
      %269 = vmatprep.subr.bf16.mxu0 0
      %270 = vmatpush2.bf16.xpose.msra.mxu0 0
      %271 = vmatprep.subr.bf16.mxu0 0
      %272 = vmatpush2.bf16.xpose.msra.mxu0 0
      %273 = vmatprep.subr.bf16.mxu0 0
      %274 = vmatpush2.bf16.xpose.msra.mxu0 0
      %275 = vmatprep.subr.bf16.mxu0 0
      %276 = vmatpush2.bf16.xpose.msra.mxu0 0
      %277 = vmatprep.subr.bf16.mxu0 0
      %278 = vmatpush2.bf16.xpose.msra.mxu0 0
      %279 = vmatprep.subr.bf16.mxu0 0
      %280 = vmatpush2.bf16.xpose.msra.mxu0 0
      %281 = vmatprep.subr.bf16.mxu0 0
      %282 = vmatpush2.bf16.xpose.msra.mxu0 0
      %283 = vmatprep.mubr.bf16.mxu0 0
      %284 = vmatmul.mubr.bf16.gmra.mxu0 %v246
      %v285 = vpop.f32.mrf.mxu0
      %v286 = vadd.f32 0.0, %v285
      %v287 = vpop.f32.mrf.mxu0
      %v288 = vpop.f32.mrf.mxu0
      %v289 = vpop.f32.mrf.mxu0
      %290 = vdwg.mxu0
      %v291 = vmul.f32 %v286, 0.35355338
      %v292 = vsel %vm171, %v291, -1e+30
      %v293 = vsel %vm119, %v292, -inf
      %294 = vmax.xlane.f32.xlu0 %v293
      %v295 = vpop.xlane.xlu0 %294
      %v296 = vsub.f32 %v292, %v295
      %v297 = vmul.f32 %v296, 1.442695
      %v298 = vpow.pop %v297
      %v299 = vsel %vm119, %v298, 0.0
      %300 = vadd.xlane.f32.xlu0 %v299
      %v301 = vpop.xlane.xlu0 %300
      %v302 = vrcp.pop %v301
      %v303 = vmul.f32 %v298, %v302
      %v304 = vpack.c.bf16 %v303, %v303
      %305 = vrot.lane.b32.xlu0 %v240, 56
      %v306 = vpop.permute.xlu0 %305
      %v308 = vsel %vm119, %v304, 0
      %v311 = vsel %vm190, %v306, 0
      %313 = vmatprep.subr.bf16.mxu0 0
      %314 = vmatpush1.bf16.msra.mxu0 0
      %315 = vmatprep.subr.bf16.mxu0 0
      %316 = vmatpush1.bf16.msra.mxu0 0
      %317 = vmatprep.subr.bf16.mxu0 0
      %318 = vmatpush1.bf16.msra.mxu0 0
      %319 = vmatprep.subr.bf16.mxu0 0
      %320 = vmatpush1.bf16.msra.mxu0 0
      %321 = vmatprep.subr.bf16.mxu0 0
      %322 = vmatpush1.bf16.msra.mxu0 0
      %323 = vmatprep.subr.bf16.mxu0 0
      %324 = vmatpush1.bf16.msra.mxu0 0
      %325 = vmatprep.subr.bf16.mxu0 0
      %326 = vmatpush1.bf16.msra.mxu0 0
      %327 = vmatprep.subr.bf16.mxu0 0
      %328 = vmatpush1.bf16.msra.mxu0 %v311
      %329 = vmatprep.subr.bf16.mxu0 0
      %330 = vmatpush2.bf16.msra.mxu0 0
      %331 = vmatprep.subr.bf16.mxu0 0
      %332 = vmatpush2.bf16.msra.mxu0 0
      %333 = vmatprep.subr.bf16.mxu0 0
      %334 = vmatpush2.bf16.msra.mxu0 0
      %335 = vmatprep.subr.bf16.mxu0 0
      %336 = vmatpush2.bf16.msra.mxu0 0
      %337 = vmatprep.subr.bf16.mxu0 0
      %338 = vmatpush2.bf16.msra.mxu0 0
      %339 = vmatprep.subr.bf16.mxu0 0
      %340 = vmatpush2.bf16.msra.mxu0 0
      %341 = vmatprep.subr.bf16.mxu0 0
      %342 = vmatpush2.bf16.msra.mxu0 0
      %343 = vmatprep.subr.bf16.mxu0 0
      %344 = vmatpush2.bf16.msra.mxu0 0
      %345 = vmatprep.mubr.bf16.mxu0 0
      %346 = vmatmul.mubr.bf16.gmra.mxu0 %v308
      %v347 = vpop.f32.mrf.mxu0
      %v348 = vadd.f32 0.0, %v347
      %v349 = vpop.f32.mrf.mxu0
      %v350 = vpop.f32.mrf.mxu0
      %v351 = vpop.f32.mrf.mxu0
      %352 = vdwg.mxu0
      %v353 = vpack.c.bf16 %v348, %v348
      %v355 = vunpack.c.l.b16 %v353
      %v356 = vpack.c.b16 %v355, %v355
      %357 = vrot.lane.b32.xlu0 %v356, 8
      %v358 = vpop.permute.xlu0 %357
      %vm360 = vcmask 126016
      %361 = vst.msk [vmem:[%s111] sm:$0xf] %vm360, %v358
      %v362 = vld [vmem:[%s107] sm:$0xf]
      %v364 = vunpack.c.l.b16 %v362
      %v365 = vpack.c.b16 %v364, %v364
      %366 = vrot.lane.b32.xlu0 %v365, 112
      %v367 = vpop.permute.xlu0 %366
      %368 = vrot.lane.b32.xlu0 %v365, 80
      %v369 = vpop.permute.xlu0 %368
      %v371 = vsel %vm119, %v367, 0
      %v374 = vsel %vm119, %v369, 0
      %376 = vmatprep.subr.bf16.mxu0 0
      %377 = vmatpush1.bf16.xpose.msra.mxu0 0
      %378 = vmatprep.subr.bf16.mxu0 0
      %379 = vmatpush1.bf16.xpose.msra.mxu0 0
      %380 = vmatprep.subr.bf16.mxu0 0
      %381 = vmatpush1.bf16.xpose.msra.mxu0 0
      %382 = vmatprep.subr.bf16.mxu0 0
      %383 = vmatpush1.bf16.xpose.msra.mxu0 0
      %384 = vmatprep.subr.bf16.mxu0 0
      %385 = vmatpush1.bf16.xpose.msra.mxu0 0
      %386 = vmatprep.subr.bf16.mxu0 0
      %387 = vmatpush1.bf16.xpose.msra.mxu0 0
      %388 = vmatprep.subr.bf16.mxu0 0
      %389 = vmatpush1.bf16.xpose.msra.mxu0 0
      %390 = vmatprep.subr.bf16.mxu0 0
      %391 = vmatpush1.bf16.xpose.msra.mxu0 %v374
      %392 = vmatprep.subr.bf16.mxu0 0
      %393 = vmatpush2.bf16.xpose.msra.mxu0 0
      %394 = vmatprep.subr.bf16.mxu0 0
      %395 = vmatpush2.bf16.xpose.msra.mxu0 0
      %396 = vmatprep.subr.bf16.mxu0 0
      %397 = vmatpush2.bf16.xpose.msra.mxu0 0
      %398 = vmatprep.subr.bf16.mxu0 0
      %399 = vmatpush2.bf16.xpose.msra.mxu0 0
      %400 = vmatprep.subr.bf16.mxu0 0
      %401 = vmatpush2.bf16.xpose.msra.mxu0 0
      %402 = vmatprep.subr.bf16.mxu0 0
      %403 = vmatpush2.bf16.xpose.msra.mxu0 0
      %404 = vmatprep.subr.bf16.mxu0 0
      %405 = vmatpush2.bf16.xpose.msra.mxu0 0
      %406 = vmatprep.subr.bf16.mxu0 0
      %407 = vmatpush2.bf16.xpose.msra.mxu0 0
      %408 = vmatprep.mubr.bf16.mxu0 0
      %409 = vmatmul.mubr.bf16.gmra.mxu0 %v371
      %v410 = vpop.f32.mrf.mxu0
      %v411 = vadd.f32 0.0, %v410
      %v412 = vpop.f32.mrf.mxu0
      %v413 = vpop.f32.mrf.mxu0
      %v414 = vpop.f32.mrf.mxu0
      %415 = vdwg.mxu0
      %v416 = vmul.f32 %v411, 0.35355338
      %v417 = vsel %vm171, %v416, -1e+30
      %v418 = vsel %vm119, %v417, -inf
      %419 = vmax.xlane.f32.xlu0 %v418
      %v420 = vpop.xlane.xlu0 %419
      %v421 = vsub.f32 %v417, %v420
      %v422 = vmul.f32 %v421, 1.442695
      %v423 = vpow.pop %v422
      %v424 = vsel %vm119, %v423, 0.0
      %425 = vadd.xlane.f32.xlu0 %v424
      %v426 = vpop.xlane.xlu0 %425
      %v427 = vrcp.pop %v426
      %v428 = vmul.f32 %v423, %v427
      %v429 = vpack.c.bf16 %v428, %v428
      %430 = vrot.lane.b32.xlu0 %v365, 48
      %v431 = vpop.permute.xlu0 %430
      %v433 = vsel %vm119, %v429, 0
      %v436 = vsel %vm190, %v431, 0
      %438 = vmatprep.subr.bf16.mxu0 0
      %439 = vmatpush1.bf16.msra.mxu0 0
      %440 = vmatprep.subr.bf16.mxu0 0
      %441 = vmatpush1.bf16.msra.mxu0 0
      %442 = vmatprep.subr.bf16.mxu0 0
      %443 = vmatpush1.bf16.msra.mxu0 0
      %444 = vmatprep.subr.bf16.mxu0 0
      %445 = vmatpush1.bf16.msra.mxu0 0
      %446 = vmatprep.subr.bf16.mxu0 0
      %447 = vmatpush1.bf16.msra.mxu0 0
      %448 = vmatprep.subr.bf16.mxu0 0
      %449 = vmatpush1.bf16.msra.mxu0 0
      %450 = vmatprep.subr.bf16.mxu0 0
      %451 = vmatpush1.bf16.msra.mxu0 0
      %452 = vmatprep.subr.bf16.mxu0 0
      %453 = vmatpush1.bf16.msra.mxu0 %v436
      %454 = vmatprep.subr.bf16.mxu0 0
      %455 = vmatpush2.bf16.msra.mxu0 0
      %456 = vmatprep.subr.bf16.mxu0 0
      %457 = vmatpush2.bf16.msra.mxu0 0
      %458 = vmatprep.subr.bf16.mxu0 0
      %459 = vmatpush2.bf16.msra.mxu0 0
      %460 = vmatprep.subr.bf16.mxu0 0
      %461 = vmatpush2.bf16.msra.mxu0 0
      %462 = vmatprep.subr.bf16.mxu0 0
      %463 = vmatpush2.bf16.msra.mxu0 0
      %464 = vmatprep.subr.bf16.mxu0 0
      %465 = vmatpush2.bf16.msra.mxu0 0
      %466 = vmatprep.subr.bf16.mxu0 0
      %467 = vmatpush2.bf16.msra.mxu0 0
      %468 = vmatprep.subr.bf16.mxu0 0
      %469 = vmatpush2.bf16.msra.mxu0 0
      %470 = vmatprep.mubr.bf16.mxu0 0
      %471 = vmatmul.mubr.bf16.gmra.mxu0 %v433
      %v472 = vpop.f32.mrf.mxu0
      %v473 = vadd.f32 0.0, %v472
      %v474 = vpop.f32.mrf.mxu0
      %v475 = vpop.f32.mrf.mxu0
      %v476 = vpop.f32.mrf.mxu0
      %477 = vdwg.mxu0
      %v478 = vpack.c.bf16 %v473, %v473
      %v480 = vunpack.c.l.b16 %v478
      %v481 = vpack.c.b16 %v480, %v480
      %482 = vrot.lane.b32.xlu0 %v481, 16
      %v483 = vpop.permute.xlu0 %482
      %vm485 = vcmask 191616
      %486 = vst.msk [vmem:[%s111] sm:$0xf] %vm485, %v483
      %v487 = vld [vmem:[%s107] sm:$0xf]
      %v489 = vunpack.c.l.b16 %v487
      %v490 = vpack.c.b16 %v489, %v489
      %491 = vrot.lane.b32.xlu0 %v490, 104
      %v492 = vpop.permute.xlu0 %491
      %493 = vrot.lane.b32.xlu0 %v490, 72
      %v494 = vpop.permute.xlu0 %493
      %v496 = vsel %vm119, %v492, 0
      %v499 = vsel %vm119, %v494, 0
      %501 = vmatprep.subr.bf16.mxu0 0
      %502 = vmatpush1.bf16.xpose.msra.mxu0 0
      %503 = vmatprep.subr.bf16.mxu0 0
      %504 = vmatpush1.bf16.xpose.msra.mxu0 0
      %505 = vmatprep.subr.bf16.mxu0 0
      %506 = vmatpush1.bf16.xpose.msra.mxu0 0
      %507 = vmatprep.subr.bf16.mxu0 0
      %508 = vmatpush1.bf16.xpose.msra.mxu0 0
      %509 = vmatprep.subr.bf16.mxu0 0
      %510 = vmatpush1.bf16.xpose.msra.mxu0 0
      %511 = vmatprep.subr.bf16.mxu0 0
      %512 = vmatpush1.bf16.xpose.msra.mxu0 0
      %513 = vmatprep.subr.bf16.mxu0 0
      %514 = vmatpush1.bf16.xpose.msra.mxu0 0
      %515 = vmatprep.subr.bf16.mxu0 0
      %516 = vmatpush1.bf16.xpose.msra.mxu0 %v499
      %517 = vmatprep.subr.bf16.mxu0 0
      %518 = vmatpush2.bf16.xpose.msra.mxu0 0
      %519 = vmatprep.subr.bf16.mxu0 0
      %520 = vmatpush2.bf16.xpose.msra.mxu0 0
      %521 = vmatprep.subr.bf16.mxu0 0
      %522 = vmatpush2.bf16.xpose.msra.mxu0 0
      %523 = vmatprep.subr.bf16.mxu0 0
      %524 = vmatpush2.bf16.xpose.msra.mxu0 0
      %525 = vmatprep.subr.bf16.mxu0 0
      %526 = vmatpush2.bf16.xpose.msra.mxu0 0
      %527 = vmatprep.subr.bf16.mxu0 0
      %528 = vmatpush2.bf16.xpose.msra.mxu0 0
      %529 = vmatprep.subr.bf16.mxu0 0
      %530 = vmatpush2.bf16.xpose.msra.mxu0 0
      %531 = vmatprep.subr.bf16.mxu0 0
      %532 = vmatpush2.bf16.xpose.msra.mxu0 0
      %533 = vmatprep.mubr.bf16.mxu0 0
      %534 = vmatmul.mubr.bf16.gmra.mxu0 %v496
      %v535 = vpop.f32.mrf.mxu0
      %v536 = vadd.f32 0.0, %v535
      %v537 = vpop.f32.mrf.mxu0
      %v538 = vpop.f32.mrf.mxu0
      %v539 = vpop.f32.mrf.mxu0
      %540 = vdwg.mxu0
      %v541 = vmul.f32 %v536, 0.35355338
      %v542 = vsel %vm171, %v541, -1e+30
      %v543 = vsel %vm119, %v542, -inf
      %544 = vmax.xlane.f32.xlu0 %v543
      %v545 = vpop.xlane.xlu0 %544
      %v546 = vsub.f32 %v542, %v545
      %v547 = vmul.f32 %v546, 1.442695
      %v548 = vpow.pop %v547
      %v549 = vsel %vm119, %v548, 0.0
      %550 = vadd.xlane.f32.xlu0 %v549
      %v551 = vpop.xlane.xlu0 %550
      %v552 = vrcp.pop %v551
      %v553 = vmul.f32 %v548, %v552
      %v554 = vpack.c.bf16 %v553, %v553
      %555 = vrot.lane.b32.xlu0 %v490, 40
      %v556 = vpop.permute.xlu0 %555
      %v558 = vsel %vm119, %v554, 0
      %v561 = vsel %vm190, %v556, 0
      %563 = vmatprep.subr.bf16.mxu0 0
      %564 = vmatpush1.bf16.msra.mxu0 0
      %565 = vmatprep.subr.bf16.mxu0 0
      %566 = vmatpush1.bf16.msra.mxu0 0
      %567 = vmatprep.subr.bf16.mxu0 0
      %568 = vmatpush1.bf16.msra.mxu0 0
      %569 = vmatprep.subr.bf16.mxu0 0
      %570 = vmatpush1.bf16.msra.mxu0 0
      %571 = vmatprep.subr.bf16.mxu0 0
      %572 = vmatpush1.bf16.msra.mxu0 0
      %573 = vmatprep.subr.bf16.mxu0 0
      %574 = vmatpush1.bf16.msra.mxu0 0
      %575 = vmatprep.subr.bf16.mxu0 0
      %576 = vmatpush1.bf16.msra.mxu0 0
      %577 = vmatprep.subr.bf16.mxu0 0
      %578 = vmatpush1.bf16.msra.mxu0 %v561
      %579 = vmatprep.subr.bf16.mxu0 0
      %580 = vmatpush2.bf16.msra.mxu0 0
      %581 = vmatprep.subr.bf16.mxu0 0
      %582 = vmatpush2.bf16.msra.mxu0 0
      %583 = vmatprep.subr.bf16.mxu0 0
      %584 = vmatpush2.bf16.msra.mxu0 0
      %585 = vmatprep.subr.bf16.mxu0 0
      %586 = vmatpush2.bf16.msra.mxu0 0
      %587 = vmatprep.subr.bf16.mxu0 0
      %588 = vmatpush2.bf16.msra.mxu0 0
      %589 = vmatprep.subr.bf16.mxu0 0
      %590 = vmatpush2.bf16.msra.mxu0 0
      %591 = vmatprep.subr.bf16.mxu0 0
      %592 = vmatpush2.bf16.msra.mxu0 0
      %593 = vmatprep.subr.bf16.mxu0 0
      %594 = vmatpush2.bf16.msra.mxu0 0
      %595 = vmatprep.mubr.bf16.mxu0 0
      %596 = vmatmul.mubr.bf16.gmra.mxu0 %v558
      %v597 = vpop.f32.mrf.mxu0
      %v598 = vadd.f32 0.0, %v597
      %v599 = vpop.f32.mrf.mxu0
      %v600 = vpop.f32.mrf.mxu0
      %v601 = vpop.f32.mrf.mxu0
      %602 = vdwg.mxu0
      %v603 = vpack.c.bf16 %v598, %v598
      %v605 = vunpack.c.l.b16 %v603
      %v606 = vpack.c.b16 %v605, %v605
      %607 = vrot.lane.b32.xlu0 %v606, 24
      %v608 = vpop.permute.xlu0 %607
      %vm610 = vcmask 257216
      %611 = vst.msk [vmem:[%s111] sm:$0xf] %vm610, %v608
      %p612 = scmp.lt.s32.totalorder %s12, 1
      %s613 = scalar_select %p612, %s12, 1
      %s614 = smul.addr %s613, 4
      %s615 = scalar_lea.vmem %s1, %s614
      // Predicated region
      $region25: #{decoder_forward.18} parent=23 // pred_check
        %p616 = pneg %p56
      $region26: #{decoder_forward.18} parent=23 // pred_check_branch
        %618 = sbr.rel (%p616) target = $region28
      $region27: #{decoder_forward.18} parent=23 // pred_region
        _
      $region28: #{decoder_forward.18} parent=23 // pred_fallthru
        _
    $region24: #{decoder_forward.18} parent=5 // pred_fallthru
      _
    %p619 = scmp.le.s32.totalorder 2, %s7
    // Predicated region
    $region29: #{decoder_forward.18} parent=5 // pred_check
      %p620 = pneg %p619
    $region30: #{decoder_forward.18} parent=5 // pred_check_branch
      %622 = sbr.rel (%p620) target = $region32
    $region31: #{decoder_forward.18} parent=5 // pred_region
      %s623 = ssub.s32 %s7, 2
      // Predicated region
      $region33: #{decoder_forward.18} parent=31 // pred_check
        %p624 = pneg %p62
      $region34: #{decoder_forward.18} parent=31 // pred_check_branch
        %626 = sbr.rel (%p624) target = $region36
      $region35: #{decoder_forward.18} parent=31 // pred_region
        %p627 = scmp.lt.s32.totalorder %s13, 1
        %s628 = scalar_select %p627, %s13, 1
        %s629 = smul.addr %s628, 4
        %s630 = scalar_lea.vmem %s1, %s629
      $region36: #{decoder_forward.18} parent=31 // pred_fallthru
        _
    $region32: #{decoder_forward.18} parent=5 // pred_fallthru
      _
  $region6: #{decoder_forward.18} parent=0 // loop_footer
    %s11 = sadd.s32 1, %s7
  $region7: #{decoder_forward.18} parent=0 // loop_footer_branch
    %6 = sbr.rel target = $region3
  $region8: #{decoder_forward.18} parent=0 // loop_exit
    _

// kernel: decoder_forward.21
$region0: #{decoder_forward.21}
  #allocation0 [shape = 'u32[]', space=smem, size = 0x4, offset = 0x4, fixed_abs, tag = 'smem constant byte address 0x4 - core index']
  #allocation1 [shape = 'u32[144,128]{1,0:T(1,128)}', space=vmem, size = 0x12000, scoped, tag = 'internal scratch']
  %s0 = inlined_call_operand.vmem [shape: f32[32,32], index: 0, kind: input, shape index: {}]
  %s1 = inlined_call_operand.vmem [shape: bf16[32,64], index: 1, kind: input, shape index: {}]
  %s2 = inlined_call_operand.vmem [shape: f32[1,64], index: 2, kind: input, shape index: {}]
  %s3 = inlined_call_operand.vmem [shape: bf16[32,64], index: 3, kind: output, shape index: {}]
  %s4 = sld [smem:[#allocation0]]
  $region22: #{decoder_forward.21} parent=0
    _
  %s6 = ssub.s32 1, %s4
  %s7 = scalar_select 0, %s6, %s4
  // Predicated region
  $region2: #{decoder_forward.21} parent=0 // pred_check
    _
  $region3: #{decoder_forward.21} parent=0 // pred_check_branch
    %9 = sbr.rel (0) target = $region5
  $region4: #{decoder_forward.21} parent=0 // pred_region
    _
  $region5: #{decoder_forward.21} parent=0 // pred_fallthru
    _
  // Predicated region
  $region6: #{decoder_forward.21} parent=0 // pred_check
    _
  $region7: #{decoder_forward.21} parent=0 // pred_check_branch
    %11 = sbr.rel (0) target = $region9
  $region8: #{decoder_forward.21} parent=0 // pred_region
    _
  $region9: #{decoder_forward.21} parent=0 // pred_fallthru
    _
  // Predicated region
  $region10: #{decoder_forward.21} parent=0 // pred_check
    _
  $region11: #{decoder_forward.21} parent=0 // pred_check_branch
    %13 = sbr.rel (0) target = $region13
  $region12: #{decoder_forward.21} parent=0 // pred_region
    _
  $region13: #{decoder_forward.21} parent=0 // pred_fallthru
    _
  %v15 = vld [vmem:[%s0] sm:$0xff]
  %v16 = vld [vmem:[%s0 + $0x8] sm:$0xff]
  %v17 = vld [vmem:[%s0 + $0x10] sm:$0xff]
  %v18 = vld [vmem:[%s0 + $0x18] sm:$0xff]
  %v19 = vld [vmem:[%s1] sm:$0xf]
  %v20 = vld [vmem:[%s1 + $0x4] sm:$0xf]
  %v21 = vld [vmem:[%s1 + $0x8] sm:$0xf]
  %v22 = vld [vmem:[%s1 + $0xc] sm:$0xf]
  %v23 = vpack.c.bf16 %v16, %v15
  %v24 = vpack.c.bf16 %v18, %v17
  %v25 = vld [vmem:[%s2] sm:$0x1]
  %v27 = vlaneseq
  %v28 = vshrl.u32 %v27, 7
  %v29 = vsub.s32 0, %v28
  %v30 = vrot.slane %v25, %v29
  %v36 = vunpack.c.l.b16 %v19
  %v37 = vunpack.c.l.b16 %v20
  %v38 = vunpack.c.l.b16 %v21
  %v39 = vunpack.c.l.b16 %v22
  %v40 = vpack.c.b16 %v37, %v36
  %v41 = vpack.c.b16 %v39, %v38
  %vm44 = vcmask 261120
  %v46 = vsel %vm44, %v23, 0
  %v49 = vsel %vm44, %v24, 0
  %51 = vmatprep.subr.bf16.mxu0 0
  %52 = vmatpush1.bf16.msra.mxu0 0
  %53 = vmatprep.subr.bf16.mxu0 0
  %54 = vmatpush1.bf16.msra.mxu0 0
  %55 = vmatprep.subr.bf16.mxu0 0
  %56 = vmatpush1.bf16.msra.mxu0 0
  %57 = vmatprep.subr.bf16.mxu0 0
  %58 = vmatpush1.bf16.msra.mxu0 0
  %59 = vmatprep.subr.bf16.mxu0 0
  %60 = vmatpush1.bf16.msra.mxu0 0
  %61 = vmatprep.subr.bf16.mxu0 0
  %62 = vmatpush1.bf16.msra.mxu0 0
  %63 = vmatprep.subr.bf16.mxu0 0
  %64 = vmatpush1.bf16.msra.mxu0 %v41
  %65 = vmatprep.subr.bf16.mxu0 0
  %66 = vmatpush1.bf16.msra.mxu0 %v40
  %67 = vmatprep.subr.bf16.mxu0 0
  %68 = vmatpush2.bf16.msra.mxu0 0
  %69 = vmatprep.subr.bf16.mxu0 0
  %70 = vmatpush2.bf16.msra.mxu0 0
  %71 = vmatprep.subr.bf16.mxu0 0
  %72 = vmatpush2.bf16.msra.mxu0 0
  %73 = vmatprep.subr.bf16.mxu0 0
  %74 = vmatpush2.bf16.msra.mxu0 0
  %75 = vmatprep.subr.bf16.mxu0 0
  %76 = vmatpush2.bf16.msra.mxu0 0
  %77 = vmatprep.subr.bf16.mxu0 0
  %78 = vmatpush2.bf16.msra.mxu0 0
  %79 = vmatprep.subr.bf16.mxu0 0
  %80 = vmatpush2.bf16.msra.mxu0 0
  %81 = vmatprep.subr.bf16.mxu0 0
  %82 = vmatpush2.bf16.msra.mxu0 0
  %83 = vmatprep.mubr.bf16.mxu0 0
  %84 = vmatmul.mubr.bf16.gmra.mxu0 %v46
  %v85 = vpop.f32.mrf.mxu0
  %v86 = vadd.f32 %v30, %v85
  %v87 = vpop.f32.mrf.mxu0
  %v88 = vpop.f32.mrf.mxu0
  %v89 = vadd.f32 %v30, %v88
  %v90 = vpop.f32.mrf.mxu0
  %91 = vmatprep.mubr.bf16.mxu0 0
  %92 = vmatmul.mubr.bf16.gmra.mxu0 %v49
  %v93 = vpop.f32.mrf.mxu0
  %v94 = vadd.f32 %v30, %v93
  %v95 = vpop.f32.mrf.mxu0
  %v96 = vpop.f32.mrf.mxu0
  %v97 = vadd.f32 %v30, %v96
  %v98 = vpop.f32.mrf.mxu0
  %99 = vdwg.mxu0
  %v100 = vpack.c.bf16 %v89, %v86
  %v101 = vpack.c.bf16 %v97, %v94
  %v104 = vunpack.c.l.b16 %v100
  %v105 = vunpack.c.h.b16 %v100
  %v106 = vunpack.c.l.b16 %v101
  %v107 = vunpack.c.h.b16 %v101
  %v108 = vpack.c.b16 %v104, %v104
  %v109 = vpack.c.b16 %v105, %v105
  %v110 = vpack.c.b16 %v106, %v106
  %v111 = vpack.c.b16 %v107, %v107
  %vm116 = vcmask 519168
  %117 = vst.msk [vmem:[%s3] sm:$0xf] %vm116, %v108
  %118 = vst.msk [vmem:[%s3 + $0x4] sm:$0xf] %vm116, %v109
  %119 = vst.msk [vmem:[%s3 + $0x8] sm:$0xf] %vm116, %v110
  %120 = vst.msk [vmem:[%s3 + $0xc] sm:$0xf] %vm116, %v111
  // Predicated region
  $region14: #{decoder_forward.21} parent=0 // pred_check
    _
  $region15: #{decoder_forward.21} parent=0 // pred_check_branch
    %122 = sbr.rel (0) target = $region17
  $region16: #{decoder_forward.21} parent=0 // pred_region
    _
  $region17: #{decoder_forward.21} parent=0 // pred_fallthru
    _
  // Predicated region
  $region18: #{decoder_forward.21} parent=0 // pred_check
    _
  $region19: #{decoder_forward.21} parent=0 // pred_check_branch
    %124 = sbr.rel (0) target = $region21
  $region20: #{decoder_forward.21} parent=0 // pred_region
    _
  $region21: #{decoder_forward.21} parent=0 // pred_fallthru
    _

// kernel: decoder_forward.33
$region0: #{decoder_forward.33}
  #allocation0 [shape = 'u32[]', space=smem, size = 0x4, offset = 0x4, fixed_abs, tag = 'smem constant byte address 0x4 - core index']
  #allocation1 [shape = 'u32[144,128]{1,0:T(1,128)}', space=vmem, size = 0x12000, scoped, tag = 'internal scratch']
  %s0 = inlined_call_operand.vmem [shape: f32[16,32], index: 0, kind: input, shape index: {}]
  %s1 = inlined_call_operand.vmem [shape: bf16[32,128], index: 1, kind: input, shape index: {}]
  %s2 = inlined_call_operand.vmem [shape: f32[1,128], index: 2, kind: input, shape index: {}]
  %s3 = inlined_call_operand.vmem [shape: f32[16,128], index: 3, kind: output, shape index: {}]
  %s4 = sld [smem:[#allocation0]]
  $region22: #{decoder_forward.33} parent=0
    _
  %s6 = ssub.s32 1, %s4
  %s7 = scalar_select 0, %s6, %s4
  // Predicated region
  $region2: #{decoder_forward.33} parent=0 // pred_check
    _
  $region3: #{decoder_forward.33} parent=0 // pred_check_branch
    %9 = sbr.rel (0) target = $region5
  $region4: #{decoder_forward.33} parent=0 // pred_region
    _
  $region5: #{decoder_forward.33} parent=0 // pred_fallthru
    _
  // Predicated region
  $region6: #{decoder_forward.33} parent=0 // pred_check
    _
  $region7: #{decoder_forward.33} parent=0 // pred_check_branch
    %11 = sbr.rel (0) target = $region9
  $region8: #{decoder_forward.33} parent=0 // pred_region
    _
  $region9: #{decoder_forward.33} parent=0 // pred_fallthru
    _
  // Predicated region
  $region10: #{decoder_forward.33} parent=0 // pred_check
    _
  $region11: #{decoder_forward.33} parent=0 // pred_check_branch
    %13 = sbr.rel (0) target = $region13
  $region12: #{decoder_forward.33} parent=0 // pred_region
    _
  $region13: #{decoder_forward.33} parent=0 // pred_fallthru
    _
  %v15 = vld [vmem:[%s0] sm:$0xff]
  %v16 = vld [vmem:[%s0 + $0x8] sm:$0xff]
  %v17 = vld [vmem:[%s1] sm:$0xf]
  %v18 = vld [vmem:[%s1 + $0x4] sm:$0xf]
  %v19 = vld [vmem:[%s1 + $0x8] sm:$0xf]
  %v20 = vld [vmem:[%s1 + $0xc] sm:$0xf]
  %v21 = vpack.c.bf16 %v16, %v15
  %v22 = vld [vmem:[%s2] sm:$0x1]
  %v24 = vlaneseq
  %v25 = vshrl.u32 %v24, 7
  %v26 = vsub.s32 0, %v25
  %v27 = vrot.slane %v22, %v26
  %v33 = vunpack.c.l.b16 %v17
  %v34 = vunpack.c.l.b16 %v18
  %v35 = vunpack.c.l.b16 %v19
  %v36 = vunpack.c.l.b16 %v20
  %v37 = vpack.c.b16 %v34, %v33
  %v38 = vpack.c.b16 %v36, %v35
  %vm41 = vcmask 261120
  %v43 = vsel %vm41, %v21, 0
  %45 = vmatprep.subr.bf16.mxu0 0
  %46 = vmatpush1.bf16.msra.mxu0 0
  %47 = vmatprep.subr.bf16.mxu0 0
  %48 = vmatpush1.bf16.msra.mxu0 0
  %49 = vmatprep.subr.bf16.mxu0 0
  %50 = vmatpush1.bf16.msra.mxu0 0
  %51 = vmatprep.subr.bf16.mxu0 0
  %52 = vmatpush1.bf16.msra.mxu0 0
  %53 = vmatprep.subr.bf16.mxu0 0
  %54 = vmatpush1.bf16.msra.mxu0 0
  %55 = vmatprep.subr.bf16.mxu0 0
  %56 = vmatpush1.bf16.msra.mxu0 0
  %57 = vmatprep.subr.bf16.mxu0 0
  %58 = vmatpush1.bf16.msra.mxu0 %v38
  %59 = vmatprep.subr.bf16.mxu0 0
  %60 = vmatpush1.bf16.msra.mxu0 %v37
  %61 = vmatprep.subr.bf16.mxu0 0
  %62 = vmatpush2.bf16.msra.mxu0 0
  %63 = vmatprep.subr.bf16.mxu0 0
  %64 = vmatpush2.bf16.msra.mxu0 0
  %65 = vmatprep.subr.bf16.mxu0 0
  %66 = vmatpush2.bf16.msra.mxu0 0
  %67 = vmatprep.subr.bf16.mxu0 0
  %68 = vmatpush2.bf16.msra.mxu0 0
  %69 = vmatprep.subr.bf16.mxu0 0
  %70 = vmatpush2.bf16.msra.mxu0 0
  %71 = vmatprep.subr.bf16.mxu0 0
  %72 = vmatpush2.bf16.msra.mxu0 0
  %73 = vmatprep.subr.bf16.mxu0 0
  %74 = vmatpush2.bf16.msra.mxu0 0
  %75 = vmatprep.subr.bf16.mxu0 0
  %76 = vmatpush2.bf16.msra.mxu0 0
  %77 = vmatprep.mubr.bf16.mxu0 0
  %78 = vmatmul.mubr.bf16.gmra.mxu0 %v43
  %v79 = vpop.f32.mrf.mxu0
  %v80 = vadd.f32 %v27, %v79
  %v81 = vpop.f32.mrf.mxu0
  %v82 = vpop.f32.mrf.mxu0
  %v83 = vadd.f32 %v27, %v82
  %v84 = vpop.f32.mrf.mxu0
  %85 = vdwg.mxu0
  %86 = vst [vmem:[%s3] sm:$0xff] %v80
  %87 = vst [vmem:[%s3 + $0x8] sm:$0xff] %v83
  // Predicated region
  $region14: #{decoder_forward.33} parent=0 // pred_check
    _
  $region15: #{decoder_forward.33} parent=0 // pred_check_branch
    %89 = sbr.rel (0) target = $region17
  $region16: #{decoder_forward.33} parent=0 // pred_region
    _
  $region17: #{decoder_forward.33} parent=0 // pred_fallthru
    _
  // Predicated region
  $region18: #{decoder_forward.33} parent=0 // pred_check
    _
  $region19: #{decoder_forward.33} parent=0 // pred_check_branch
    %91 = sbr.rel (0) target = $region21
  $region20: #{decoder_forward.33} parent=0 // pred_region
    _
  $region21: #{decoder_forward.33} parent=0 // pred_fallthru
    _

// kernel: decoder_forward.24
$region0: #{decoder_forward.24}
  #allocation0 [shape = 'u32[]', space=smem, size = 0x4, offset = 0x4, fixed_abs, tag = 'smem constant byte address 0x4 - core index']
  #allocation1 [shape = 'u32[144,128]{1,0:T(1,128)}', space=vmem, size = 0x12000, scoped, tag = 'internal scratch']
  #allocation2 [shape = 'f32[16,32]{1,0:T(8,128)}', space=vmem, size = 0x2000, scoped, tag = 'scratch operand']
  #allocation3 [shape = 'f32[1]{0:T(128)S(6)}', space=smem, size = 0x200, scoped, tag = 'scoped memory for decoder_forward.24']
  %s0 = inlined_call_operand.vmem [shape: f32[16,32], index: 0, kind: input, shape index: {}]
  %s1 = inlined_call_operand.vmem [shape: f32[1,32], index: 1, kind: input, shape index: {}]
  %s2 = inlined_call_operand.vmem [shape: f32[1,32], index: 2, kind: input, shape index: {}]
  %s3 = inlined_call_operand.vmem [shape: bf16[32,128], index: 3, kind: input, shape index: {}]
  %s4 = inlined_call_operand.vmem [shape: f32[1,128], index: 4, kind: input, shape index: {}]
  %s5 = inlined_call_operand.vmem [shape: bf16[128,32], index: 5, kind: input, shape index: {}]
  %s6 = inlined_call_operand.vmem [shape: f32[1,32], index: 6, kind: input, shape index: {}]
  %s7 = inlined_call_operand.<no memory space> [shape: f32[1], index: 7, kind: input, shape index: {}]
  %s8 = inlined_call_operand.vmem [shape: f32[16,32], index: 8, kind: output, shape index: {}]
  %s9 = sld [smem:[#allocation0]]
  $region50: #{decoder_forward.24} parent=0
    _
  %s11 = ssub.s32 1, %s9
  %s12 = scalar_select 0, %s11, %s9
  %13 = sst [smem:[#allocation3]] %s7
  // Predicated region
  $region2: #{decoder_forward.24} parent=0 // pred_check
    _
  $region3: #{decoder_forward.24} parent=0 // pred_check_branch
    %15 = sbr.rel (0) target = $region5
  $region4: #{decoder_forward.24} parent=0 // pred_region
    _
  $region5: #{decoder_forward.24} parent=0 // pred_fallthru
    _
  // Predicated region
  $region6: #{decoder_forward.24} parent=0 // pred_check
    _
  $region7: #{decoder_forward.24} parent=0 // pred_check_branch
    %17 = sbr.rel (0) target = $region9
  $region8: #{decoder_forward.24} parent=0 // pred_region
    _
  $region9: #{decoder_forward.24} parent=0 // pred_fallthru
    _
  // Predicated region
  $region10: #{decoder_forward.24} parent=0 // pred_check
    _
  $region11: #{decoder_forward.24} parent=0 // pred_check_branch
    %19 = sbr.rel (0) target = $region13
  $region12: #{decoder_forward.24} parent=0 // pred_region
    _
  $region13: #{decoder_forward.24} parent=0 // pred_fallthru
    _
  // Predicated region
  $region14: #{decoder_forward.24} parent=0 // pred_check
    _
  $region15: #{decoder_forward.24} parent=0 // pred_check_branch
    %21 = sbr.rel (0) target = $region17
  $region16: #{decoder_forward.24} parent=0 // pred_region
    _
  $region17: #{decoder_forward.24} parent=0 // pred_fallthru
    _
  // Predicated region
  $region18: #{decoder_forward.24} parent=0 // pred_check
    _
  $region19: #{decoder_forward.24} parent=0 // pred_check_branch
    %23 = sbr.rel (0) target = $region21
  $region20: #{decoder_forward.24} parent=0 // pred_region
    _
  $region21: #{decoder_forward.24} parent=0 // pred_fallthru
    _
  // Predicated region
  $region22: #{decoder_forward.24} parent=0 // pred_check
    _
  $region23: #{decoder_forward.24} parent=0 // pred_check_branch
    %25 = sbr.rel (0) target = $region25
  $region24: #{decoder_forward.24} parent=0 // pred_region
    _
  $region25: #{decoder_forward.24} parent=0 // pred_fallthru
    _
  // Predicated region
  $region26: #{decoder_forward.24} parent=0 // pred_check
    _
  $region27: #{decoder_forward.24} parent=0 // pred_check_branch
    %27 = sbr.rel (0) target = $region29
  $region28: #{decoder_forward.24} parent=0 // pred_region
    _
  $region29: #{decoder_forward.24} parent=0 // pred_fallthru
    _
  // Predicated region
  $region30: #{decoder_forward.24} parent=0 // pred_check
    _
  $region31: #{decoder_forward.24} parent=0 // pred_check_branch
    %29 = sbr.rel (0) target = $region33
  $region32: #{decoder_forward.24} parent=0 // pred_region
    _
  $region33: #{decoder_forward.24} parent=0 // pred_fallthru
    _
  %p31 = scmp.eq.s32.totalorder 0, 0
  // Predicated region
  $region34: #{decoder_forward.24} parent=0 // pred_check
    %p32 = pneg %p31
  $region35: #{decoder_forward.24} parent=0 // pred_check_branch
    %34 = sbr.rel (%p32) target = $region37
  $region36: #{decoder_forward.24} parent=0 // pred_region
    %vm35 = vcmask 261120
    %36 = vst.msk [vmem:[#allocation2] sm:$0xff] %vm35, 0.0
    %37 = vst.msk [vmem:[#allocation2 + $0x8] sm:$0xff] %vm35, 0.0
  $region37: #{decoder_forward.24} parent=0 // pred_fallthru
    _
  %v38 = vld [vmem:[%s0] sm:$0xff]
  %v39 = vld [vmem:[%s0 + $0x8] sm:$0xff]
  %v40 = vld [vmem:[%s1] sm:$0x1]
  %v41 = vld [vmem:[%s2] sm:$0x1]
  %vm42 = vcmask 261120
  %v43 = vsel %vm42, %v38, 0.0
  %44 = vadd.xlane.f32.xlu0 %v43
  %v45 = vpop.xlane.xlu0 %44
  %v46 = vsel %vm42, %v39, 0.0
  %47 = vadd.xlane.f32.xlu0 %v46
  %v48 = vpop.xlane.xlu0 %47
  %v49 = vrcp.pop 32.0
  %v50 = vmul.f32 %v45, %v49
  %v51 = vmul.f32 %v48, %v49
  %v52 = vsub.f32 %v38, %v50
  %v53 = vsub.f32 %v39, %v51
  %v54 = vmul.f32 %v52, %v52
  %v55 = vmul.f32 %v53, %v53
  %v56 = vsel %vm42, %v54, 0.0
  %57 = vadd.xlane.f32.xlu0 %v56
  %v58 = vpop.xlane.xlu0 %57
  %v59 = vsel %vm42, %v55, 0.0
  %60 = vadd.xlane.f32.xlu0 %v59
  %v61 = vpop.xlane.xlu0 %60
  %v62 = vmul.f32 %v58, %v49
  %v63 = vmul.f32 %v61, %v49
  %v64 = vadd.f32 %v62, 1e-05
  %v65 = vadd.f32 %v63, 1e-05
  %v66 = vrsqrt.pop %v64
  %v67 = vrsqrt.pop %v65
  %v68 = vmul.f32 %v52, %v66
  %v69 = vmul.f32 %v53, %v67
  %v71 = vlaneseq
  %v72 = vshrl.u32 %v71, 7
  %v73 = vsub.s32 0, %v72
  %v74 = vrot.slane %v40, %v73
  %v76 = vmul.f32 %v68, %v74
  %v77 = vmul.f32 %v69, %v74
  %v79 = vlaneseq
  %v80 = vshrl.u32 %v79, 7
  %v81 = vsub.s32 0, %v80
  %v82 = vrot.slane %v41, %v81
  %v84 = vadd.f32 %v76, %v82
  %v85 = vadd.f32 %v77, %v82
  %v86 = vld [vmem:[%s3] sm:$0xf]
  %v87 = vld [vmem:[%s3 + $0x4] sm:$0xf]
  %v88 = vld [vmem:[%s3 + $0x8] sm:$0xf]
  %v89 = vld [vmem:[%s3 + $0xc] sm:$0xf]
  %v90 = vpack.c.bf16 %v85, %v84
  %v91 = vld [vmem:[%s4] sm:$0x1]
  %v93 = vlaneseq
  %v94 = vshrl.u32 %v93, 7
  %v95 = vsub.s32 0, %v94
  %v96 = vrot.slane %v91, %v95
  %v102 = vunpack.c.l.b16 %v86
  %v103 = vunpack.c.l.b16 %v87
  %v104 = vunpack.c.l.b16 %v88
  %v105 = vunpack.c.l.b16 %v89
  %v106 = vpack.c.b16 %v103, %v102
  %v107 = vpack.c.b16 %v105, %v104
  %v111 = vsel %vm42, %v90, 0
  %113 = vmatprep.subr.bf16.mxu0 0
  %114 = vmatpush1.bf16.msra.mxu0 0
  %115 = vmatprep.subr.bf16.mxu0 0
  %116 = vmatpush1.bf16.msra.mxu0 0
  %117 = vmatprep.subr.bf16.mxu0 0
  %118 = vmatpush1.bf16.msra.mxu0 0
  %119 = vmatprep.subr.bf16.mxu0 0
  %120 = vmatpush1.bf16.msra.mxu0 0
  %121 = vmatprep.subr.bf16.mxu0 0
  %122 = vmatpush1.bf16.msra.mxu0 0
  %123 = vmatprep.subr.bf16.mxu0 0
  %124 = vmatpush1.bf16.msra.mxu0 0
  %125 = vmatprep.subr.bf16.mxu0 0
  %126 = vmatpush1.bf16.msra.mxu0 %v107
  %127 = vmatprep.subr.bf16.mxu0 0
  %128 = vmatpush1.bf16.msra.mxu0 %v106
  %129 = vmatprep.subr.bf16.mxu0 0
  %130 = vmatpush2.bf16.msra.mxu0 0
  %131 = vmatprep.subr.bf16.mxu0 0
  %132 = vmatpush2.bf16.msra.mxu0 0
  %133 = vmatprep.subr.bf16.mxu0 0
  %134 = vmatpush2.bf16.msra.mxu0 0
  %135 = vmatprep.subr.bf16.mxu0 0
  %136 = vmatpush2.bf16.msra.mxu0 0
  %137 = vmatprep.subr.bf16.mxu0 0
  %138 = vmatpush2.bf16.msra.mxu0 0
  %139 = vmatprep.subr.bf16.mxu0 0
  %140 = vmatpush2.bf16.msra.mxu0 0
  %141 = vmatprep.subr.bf16.mxu0 0
  %142 = vmatpush2.bf16.msra.mxu0 0
  %143 = vmatprep.subr.bf16.mxu0 0
  %144 = vmatpush2.bf16.msra.mxu0 0
  %145 = vmatprep.mubr.bf16.mxu0 0
  %146 = vmatmul.mubr.bf16.gmra.mxu0 %v111
  %v147 = vpop.f32.mrf.mxu0
  %v148 = vadd.f32 %v96, %v147
  %v149 = vpop.f32.mrf.mxu0
  %v150 = vpop.f32.mrf.mxu0
  %v151 = vadd.f32 %v96, %v150
  %v152 = vpop.f32.mrf.mxu0
  %153 = vdwg.mxu0
  %v154 = vmul.f32 %v148, 0.5
  %v155 = vmul.f32 %v151, 0.5
  %v156 = vrcp.pop 1.4142135
  %v157 = vmul.f32 %v148, %v156
  %v158 = vmul.f32 %v151, %v156
  %v159 = verf.f32.pop %v157
  %v160 = verf.f32.pop %v158
  %v161 = vadd.f32 %v159, 1.0
  %v162 = vadd.f32 %v160, 1.0
  %v163 = vmul.f32 %v154, %v161
  %v164 = vmul.f32 %v155, %v162
  %v165 = vld [vmem:[#allocation2] sm:$0xff]
  %v166 = vld [vmem:[#allocation2 + $0x8] sm:$0xff]
  %v167 = vld [vmem:[%s5] sm:$0xf]
  %v168 = vld [vmem:[%s5 + $0x4] sm:$0xf]
  %v169 = vld [vmem:[%s5 + $0x8] sm:$0xf]
  %v170 = vld [vmem:[%s5 + $0xc] sm:$0xf]
  %v171 = vld [vmem:[%s5 + $0x10] sm:$0xf]
  %v172 = vld [vmem:[%s5 + $0x14] sm:$0xf]
  %v173 = vld [vmem:[%s5 + $0x18] sm:$0xf]
  %v174 = vld [vmem:[%s5 + $0x1c] sm:$0xf]
  %v175 = vld [vmem:[%s5 + $0x20] sm:$0xf]
  %v176 = vld [vmem:[%s5 + $0x24] sm:$0xf]
  %v177 = vld [vmem:[%s5 + $0x28] sm:$0xf]
  %v178 = vld [vmem:[%s5 + $0x2c] sm:$0xf]
  %v179 = vld [vmem:[%s5 + $0x30] sm:$0xf]
  %v180 = vld [vmem:[%s5 + $0x34] sm:$0xf]
  %v181 = vld [vmem:[%s5 + $0x38] sm:$0xf]
  %v182 = vld [vmem:[%s5 + $0x3c] sm:$0xf]
  %v183 = vpack.c.bf16 %v164, %v163
  %v200 = vunpack.c.l.b16 %v167
  %v201 = vunpack.c.l.b16 %v168
  %v202 = vunpack.c.l.b16 %v169
  %v203 = vunpack.c.l.b16 %v170
  %v204 = vunpack.c.l.b16 %v171
  %v205 = vunpack.c.l.b16 %v172
  %v206 = vunpack.c.l.b16 %v173
  %v207 = vunpack.c.l.b16 %v174
  %v208 = vunpack.c.l.b16 %v175
  %v209 = vunpack.c.l.b16 %v176
  %v210 = vunpack.c.l.b16 %v177
  %v211 = vunpack.c.l.b16 %v178
  %v212 = vunpack.c.l.b16 %v179
  %v213 = vunpack.c.l.b16 %v180
  %v214 = vunpack.c.l.b16 %v181
  %v215 = vunpack.c.l.b16 %v182
  %v216 = vpack.c.b16 %v201, %v200
  %v217 = vpack.c.b16 %v203, %v202
  %v218 = vpack.c.b16 %v205, %v204
  %v219 = vpack.c.b16 %v207, %v206
  %v220 = vpack.c.b16 %v209, %v208
  %v221 = vpack.c.b16 %v211, %v210
  %v222 = vpack.c.b16 %v213, %v212
  %v223 = vpack.c.b16 %v215, %v214
  %232 = vmatprep.subr.bf16.mxu0 0
  %233 = vmatpush1.bf16.msra.mxu0 %v223
  %234 = vmatprep.subr.bf16.mxu0 0
  %235 = vmatpush1.bf16.msra.mxu0 %v222
  %236 = vmatprep.subr.bf16.mxu0 0
  %237 = vmatpush1.bf16.msra.mxu0 %v221
  %238 = vmatprep.subr.bf16.mxu0 0
  %239 = vmatpush1.bf16.msra.mxu0 %v220
  %240 = vmatprep.subr.bf16.mxu0 0
  %241 = vmatpush1.bf16.msra.mxu0 %v219
  %242 = vmatprep.subr.bf16.mxu0 0
  %243 = vmatpush1.bf16.msra.mxu0 %v218
  %244 = vmatprep.subr.bf16.mxu0 0
  %245 = vmatpush1.bf16.msra.mxu0 %v217
  %246 = vmatprep.subr.bf16.mxu0 0
  %247 = vmatpush1.bf16.msra.mxu0 %v216
  %248 = vmatprep.subr.bf16.mxu0 0
  %249 = vmatpush2.bf16.msra.mxu0 0
  %250 = vmatprep.subr.bf16.mxu0 0
  %251 = vmatpush2.bf16.msra.mxu0 0
  %252 = vmatprep.subr.bf16.mxu0 0
  %253 = vmatpush2.bf16.msra.mxu0 0
  %254 = vmatprep.subr.bf16.mxu0 0
  %255 = vmatpush2.bf16.msra.mxu0 0
  %256 = vmatprep.subr.bf16.mxu0 0
  %257 = vmatpush2.bf16.msra.mxu0 0
  %258 = vmatprep.subr.bf16.mxu0 0
  %259 = vmatpush2.bf16.msra.mxu0 0
  %260 = vmatprep.subr.bf16.mxu0 0
  %261 = vmatpush2.bf16.msra.mxu0 0
  %262 = vmatprep.subr.bf16.mxu0 0
  %263 = vmatpush2.bf16.msra.mxu0 0
  %264 = vmatprep.mubr.bf16.mxu0 0
  %265 = vmatmul.mubr.bf16.gmra.mxu0 %v183
  %v266 = vpop.f32.mrf.mxu0
  %v267 = vadd.f32 0.0, %v266
  %v268 = vpop.f32.mrf.mxu0
  %v269 = vpop.f32.mrf.mxu0
  %v270 = vadd.f32 0.0, %v269
  %v271 = vpop.f32.mrf.mxu0
  %272 = vdwg.mxu0
  %v273 = vadd.f32 %v165, %v267
  %v274 = vadd.f32 %v166, %v270
  %275 = vst.msk [vmem:[#allocation2] sm:$0xff] %vm42, %v273
  %276 = vst.msk [vmem:[#allocation2 + $0x8] sm:$0xff] %vm42, %v274
  // Predicated region
  $region38: #{decoder_forward.24} parent=0 // pred_check
    %p277 = pneg %p31
  $region39: #{decoder_forward.24} parent=0 // pred_check_branch
    %279 = sbr.rel (%p277) target = $region41
  $region40: #{decoder_forward.24} parent=0 // pred_region
    %v280 = vld [vmem:[#allocation2] sm:$0xff]
    %v281 = vld [vmem:[#allocation2 + $0x8] sm:$0xff]
    %v282 = vld [vmem:[%s6] sm:$0x1]
    %v284 = vlaneseq
    %v285 = vshrl.u32 %v284, 7
    %v286 = vsub.s32 0, %v285
    %v287 = vrot.slane %v282, %v286
    %v289 = vadd.f32 %v280, %v287
    %v290 = vadd.f32 %v281, %v287
    %v291 = vmul.f32 %v289, 0.5
    %v292 = vmul.f32 %v290, 0.5
    %v293 = vmul.f32 %v289, %v156
    %v294 = vmul.f32 %v290, %v156
    %v295 = verf.f32.pop %v293
    %v296 = verf.f32.pop %v294
    %v297 = vadd.f32 %v295, 1.0
    %v298 = vadd.f32 %v296, 1.0
    %v299 = vmul.f32 %v291, %v297
    %v300 = vmul.f32 %v292, %v298
    %v301 = vld [vmem:[%s0] sm:$0xff]
    %v302 = vld [vmem:[%s0 + $0x8] sm:$0xff]
    %s303 = sld [smem:[#allocation3]]
    %v304 = vstv %s303
    %v305 = vmul.f32 %v304, %v299
    %v306 = vmul.f32 %v304, %v300
    %v307 = vadd.f32 %v301, %v305
    %v308 = vadd.f32 %v302, %v306
    %309 = vst.msk [vmem:[%s8] sm:$0xff] %vm42, %v307
    %310 = vst.msk [vmem:[%s8 + $0x8] sm:$0xff] %vm42, %v308
  $region41: #{decoder_forward.24} parent=0 // pred_fallthru
    _
  // Predicated region
  $region42: #{decoder_forward.24} parent=0 // pred_check
    _
  $region43: #{decoder_forward.24} parent=0 // pred_check_branch
    %312 = sbr.rel (0) target = $region45
  $region44: #{decoder_forward.24} parent=0 // pred_region
    _
  $region45: #{decoder_forward.24} parent=0 // pred_fallthru
    _
  // Predicated region
  $region46: #{decoder_forward.24} parent=0 // pred_check
    _
  $region47: #{decoder_forward.24} parent=0 // pred_check_branch
    %314 = sbr.rel (0) target = $region49
  $region48: #{decoder_forward.24} parent=0 // pred_region
    _
  $region49: #{decoder_forward.24} parent=0 // pred_fallthru
    _

// kernel: decoder_forward.22
$region0: #{decoder_forward.22}
  #allocation0 [shape = 'u32[]', space=smem, size = 0x4, offset = 0x4, fixed_abs, tag = 'smem constant byte address 0x4 - core index']
  #allocation1 [shape = 'u32[144,128]{1,0:T(1,128)}', space=vmem, size = 0x12000, scoped, tag = 'internal scratch']
  %s0 = inlined_call_operand.vmem [shape: bf16[2,8,32], index: 0, kind: input, shape index: {}]
  %s1 = inlined_call_operand.vmem [shape: bf16[2,16,64], index: 1, kind: input, shape index: {}]
  %s2 = inlined_call_operand.vmem [shape: bf16[2,8,32], index: 2, kind: output, shape index: {}]
  %s3 = sld [smem:[#allocation0]]
  $region41: #{decoder_forward.22} parent=0
    _
  %s5 = ssub.s32 1, %s3
  %s6 = scalar_select 0, %s5, %s3
  loop: start=0, step=1, limit=4
  $region2: #{decoder_forward.22} parent=0 // loop_pre_header
    _
  $region3: #{decoder_forward.22} parent=0 // loop_header
    %s8 = sphi 0, %s12
    %p9 = scmp.ge.s32.totalorder %s8, 4
    %s18 = sphi 0, %s20
    %s21 = sphi 0, %s18
    %s22 = sphi 0, %s21
    %s38 = sphi 0, %s22
    %s44 = sphi 0, %s46
    %s47 = sphi 0, %s44
    %s48 = sphi 0, %s47
    %s64 = sphi 0, %s48
    %s70 = sphi 0, %s72
    %s73 = sphi 0, %s70
    %s74 = sphi 0, %s73
    %s90 = sphi 0, %s74
  $region4: #{decoder_forward.22} parent=0 // loop_header_branch
    %11 = sbr.rel (%p9) target = $region8
  $region5: #{decoder_forward.22} parent=0 // loop_body
    %s13 = ssub.s32 %s8, 1
    %s14 = ssub.s32 %s8, 2
    %s15 = sadd.s32 %s8, 1
    %s16 = ssub.s32 %s8, %s15
    %p17 = scmp.eq.s32.totalorder %s16, 0
    %s19 = sadd.s32 %s18, 1
    %s20 = scalar_select %p17, %s18, %s19
    %p23 = pneg %p17
    %p24 = scmp.eq.s32.totalorder %s8, 1
    %p25 = por %p23, %p24
    %p26 = scmp.ne.s32.totalorder %s18, %s21
    %p27 = scmp.eq.s32.totalorder %s8, 0
    %p28 = por %p26, %p27
    %p29 = scmp.ne.s32.totalorder %s18, %s21
    %p30 = scmp.eq.s32.totalorder %s13, 1
    %p31 = por %p29, %p30
    %p32 = scmp.ne.s32.totalorder %s21, %s22
    %p33 = scmp.eq.s32.totalorder %s13, 0
    %p34 = por %p32, %p33
    %p35 = scmp.ne.s32.totalorder %s21, %s22
    %p36 = scmp.eq.s32.totalorder %s14, 1
    %p37 = por %p35, %p36
    %p39 = scmp.ne.s32.totalorder %s22, %s38
    %p40 = scmp.eq.s32.totalorder %s14, 0
    %p41 = por %p39, %p40
    %s42 = ssub.s32 %s8, %s15
    %p43 = scmp.eq.s32.totalorder %s42, 0
    %s45 = sadd.s32 %s44, 1
    %s46 = scalar_select %p43, %s44, %s45
    %p49 = pneg %p43
    %p50 = scmp.eq.s32.totalorder %s8, 1
    %p51 = por %p49, %p50
    %p52 = scmp.ne.s32.totalorder %s44, %s47
    %p53 = scmp.eq.s32.totalorder %s8, 0
    %p54 = por %p52, %p53
    %p55 = scmp.ne.s32.totalorder %s44, %s47
    %p56 = scmp.eq.s32.totalorder %s13, 1
    %p57 = por %p55, %p56
    %p58 = scmp.ne.s32.totalorder %s47, %s48
    %p59 = scmp.eq.s32.totalorder %s13, 0
    %p60 = por %p58, %p59
    %p61 = scmp.ne.s32.totalorder %s47, %s48
    %p62 = scmp.eq.s32.totalorder %s14, 1
    %p63 = por %p61, %p62
    %p65 = scmp.ne.s32.totalorder %s48, %s64
    %p66 = scmp.eq.s32.totalorder %s14, 0
    %p67 = por %p65, %p66
    %s68 = ssub.s32 %s8, %s15
    %p69 = scmp.eq.s32.totalorder %s68, 0
    %s71 = sadd.s32 %s70, 1
    %s72 = scalar_select %p69, %s70, %s71
    %p75 = pneg %p69
    %p76 = scmp.eq.s32.totalorder %s8, 1
    %p77 = por %p75, %p76
    %p78 = scmp.ne.s32.totalorder %s70, %s73
    %p79 = scmp.eq.s32.totalorder %s8, 0
    %p80 = por %p78, %p79
    %p81 = scmp.ne.s32.totalorder %s70, %s73
    %p82 = scmp.eq.s32.totalorder %s13, 1
    %p83 = por %p81, %p82
    %p84 = scmp.ne.s32.totalorder %s73, %s74
    %p85 = scmp.eq.s32.totalorder %s13, 0
    %p86 = por %p84, %p85
    %p87 = scmp.ne.s32.totalorder %s73, %s74
    %p88 = scmp.eq.s32.totalorder %s14, 1
    %p89 = por %p87, %p88
    %p91 = scmp.ne.s32.totalorder %s74, %s90
    %p92 = scmp.eq.s32.totalorder %s14, 0
    %p93 = por %p91, %p92
    %p94 = scmp.le.s32.totalorder 1, %s8
    %p95 = scmp.lt.s32.totalorder %s8, 3
    %p96 = pnand %p94, %p95
    %p97 = pneg %p96
    // Predicated region
    $region9: #{decoder_forward.22} parent=5 // pred_check
      _
    $region10: #{decoder_forward.22} parent=5 // pred_check_branch
      %99 = sbr.rel (%p96) target = $region12
    $region11: #{decoder_forward.22} parent=5 // pred_region
      %s100 = ssub.s32 %s8, 1
    $region12: #{decoder_forward.22} parent=5 // pred_fallthru
      _
    %p101 = scmp.lt.s32.totalorder %s8, 2
    // Predicated region
    $region13: #{decoder_forward.22} parent=5 // pred_check
      %p102 = pneg %p101
    $region14: #{decoder_forward.22} parent=5 // pred_check_branch
      %104 = sbr.rel (%p102) target = $region16
    $region15: #{decoder_forward.22} parent=5 // pred_region
      // Predicated region
      $region17: #{decoder_forward.22} parent=15 // pred_check
        %p105 = pneg %p28
      $region18: #{decoder_forward.22} parent=15 // pred_check_branch
        %107 = sbr.rel (%p105) target = $region20
      $region19: #{decoder_forward.22} parent=15 // pred_region
        %p108 = scmp.lt.s32.totalorder %s8, 1
        %s109 = scalar_select %p108, %s8, 1
        %s110 = smul.addr %s109, 4
        %s111 = scalar_lea.vmem %s0, %s110
      $region20: #{decoder_forward.22} parent=15 // pred_fallthru
        _
      // Predicated region
      $region21: #{decoder_forward.22} parent=15 // pred_check
        %p112 = pneg %p54
      $region22: #{decoder_forward.22} parent=15 // pred_check_branch
        %114 = sbr.rel (%p112) target = $region24
      $region23: #{decoder_forward.22} parent=15 // pred_region
        %p115 = scmp.lt.s32.totalorder %s8, 1
        %s116 = scalar_select %p115, %s8, 1
        %s117 = smul.addr %s116, 2
        %s118 = smul.addr %s117, 4
        %s119 = scalar_lea.vmem %s1, %s118
      $region24: #{decoder_forward.22} parent=15 // pred_fallthru
        _
    $region16: #{decoder_forward.22} parent=5 // pred_fallthru
      _
    %p120 = scmp.le.s32.totalorder 1, %s8
    %p121 = scmp.lt.s32.totalorder %s8, 3
    %p122 = pnand %p120, %p121
    %p123 = pneg %p122
    // Predicated region
    $region25: #{decoder_forward.22} parent=5 // pred_check
      _
    $region26: #{decoder_forward.22} parent=5 // pred_check_branch
      %125 = sbr.rel (%p122) target = $region28
    $region27: #{decoder_forward.22} parent=5 // pred_region
      %s126 = ssub.s32 %s8, 1
      %p127 = scmp.lt.s32.totalorder %s13, 1
      %s128 = scalar_select %p127, %s13, 1
      %s129 = smul.addr %s128, 4
      %s130 = scalar_lea.vmem %s0, %s129
      %p131 = pneg %p34
      %p132 = pneg %p31
      %p133 = scmp.lt.s32.totalorder %s13, 1
      %s134 = scalar_select %p133, %s13, 1
      %s135 = smul.addr %s134, 2
      %s136 = smul.addr %s135, 4
      %s137 = scalar_lea.vmem %s1, %s136
      %p138 = pneg %p60
      %p139 = pneg %p57
      %p140 = pneg %p86
      %p141 = pneg %p83
      %p142 = scmp.lt.s32.totalorder %s13, 1
      %s143 = scalar_select %p142, %s13, 1
      %s144 = smul.addr %s143, 4
      %s145 = scalar_lea.vmem %s2, %s144
      %p146 = scmp.lt.s32.totalorder %s13, 1
      %s147 = scalar_select %p146, %s13, 1
      %s148 = smul.addr %s147, 4
      %s149 = scalar_lea.vmem %s0, %s148
      %p150 = scmp.lt.s32.totalorder %s13, 1
      %s151 = scalar_select %p150, %s13, 1
      %s152 = smul.addr %s151, 2
      %s153 = smul.addr %s152, 4
      %s154 = scalar_lea.vmem %s1, %s153
      %p155 = scmp.lt.s32.totalorder %s13, 1
      %s156 = scalar_select %p155, %s13, 1
      %s157 = smul.addr %s156, 4
      %s158 = scalar_lea.vmem %s2, %s157
      %v160 = vld [vmem:[%s149] sm:$0xf]
      %v161 = vld [vmem:[%s154] sm:$0xf]
      %v162 = vld [vmem:[%s154 + $0x4] sm:$0xf]
      %v165 = vunpack.c.l.b16 %v161
      %v166 = vunpack.c.l.b16 %v162
      %v167 = vpack.c.b16 %v166, %v165
      %vm168 = vcmask 64512
      %v170 = vsel %vm168, %v160, 0
      %v173 = vsel %vm168, %v167, 0
      %175 = vmatprep.subr.bf16.mxu0 0
      %176 = vmatpush1.bf16.xpose.msra.mxu0 0
      %177 = vmatprep.subr.bf16.mxu0 0
      %178 = vmatpush1.bf16.xpose.msra.mxu0 0
      %179 = vmatprep.subr.bf16.mxu0 0
      %180 = vmatpush1.bf16.xpose.msra.mxu0 0
      %181 = vmatprep.subr.bf16.mxu0 0
      %182 = vmatpush1.bf16.xpose.msra.mxu0 0
      %183 = vmatprep.subr.bf16.mxu0 0
      %184 = vmatpush1.bf16.xpose.msra.mxu0 0
      %185 = vmatprep.subr.bf16.mxu0 0
      %186 = vmatpush1.bf16.xpose.msra.mxu0 0
      %187 = vmatprep.subr.bf16.mxu0 0
      %188 = vmatpush1.bf16.xpose.msra.mxu0 0
      %189 = vmatprep.subr.bf16.mxu0 0
      %190 = vmatpush1.bf16.xpose.msra.mxu0 %v173
      %191 = vmatprep.subr.bf16.mxu0 0
      %192 = vmatpush2.bf16.xpose.msra.mxu0 0
      %193 = vmatprep.subr.bf16.mxu0 0
      %194 = vmatpush2.bf16.xpose.msra.mxu0 0
      %195 = vmatprep.subr.bf16.mxu0 0
      %196 = vmatpush2.bf16.xpose.msra.mxu0 0
      %197 = vmatprep.subr.bf16.mxu0 0
      %198 = vmatpush2.bf16.xpose.msra.mxu0 0
      %199 = vmatprep.subr.bf16.mxu0 0
      %200 = vmatpush2.bf16.xpose.msra.mxu0 0
      %201 = vmatprep.subr.bf16.mxu0 0
      %202 = vmatpush2.bf16.xpose.msra.mxu0 0
      %203 = vmatprep.subr.bf16.mxu0 0
      %204 = vmatpush2.bf16.xpose.msra.mxu0 0
      %205 = vmatprep.subr.bf16.mxu0 0
      %206 = vmatpush2.bf16.xpose.msra.mxu0 0
      %207 = vmatprep.mubr.bf16.mxu0 0
      %208 = vmatmul.mubr.bf16.gmra.mxu0 %v170
      %v209 = vpop.f32.mrf.mxu0
      %v210 = vadd.f32 0.0, %v209
      %v211 = vpop.f32.mrf.mxu0
      %v212 = vpop.f32.mrf.mxu0
      %v213 = vpop.f32.mrf.mxu0
      %214 = vdwg.mxu0
      %v215 = vmul.f32 %v210, 0.35355338
      %vm216 = vcmask 130048
      %v217 = vsel %vm216, %v215, -inf
      %218 = vmax.xlane.f32.xlu0 %v217
      %v219 = vpop.xlane.xlu0 %218
      %v220 = vsub.f32 %v215, %v219
      %v221 = vmul.f32 %v220, 1.442695
      %v222 = vpow.pop %v221
      %v223 = vsel %vm216, %v222, 0.0
      %224 = vadd.xlane.f32.xlu0 %v223
      %v225 = vpop.xlane.xlu0 %224
      %v226 = vrcp.pop %v225
      %v227 = vmul.f32 %v222, %v226
      %v228 = vpack.c.bf16 %v227, %v227
      %229 = vrot.lane.b32.xlu0 %v167, 96
      %v230 = vpop.permute.xlu0 %229
      %v233 = vsel %vm216, %v228, 0
      %235 = vmatprep.subr.bf16.mxu0 0
      %236 = vmatpush1.bf16.msra.mxu0 0
      %237 = vmatprep.subr.bf16.mxu0 0
      %238 = vmatpush1.bf16.msra.mxu0 0
      %239 = vmatprep.subr.bf16.mxu0 0
      %240 = vmatpush1.bf16.msra.mxu0 0
      %241 = vmatprep.subr.bf16.mxu0 0
      %242 = vmatpush1.bf16.msra.mxu0 0
      %243 = vmatprep.subr.bf16.mxu0 0
      %244 = vmatpush1.bf16.msra.mxu0 0
      %245 = vmatprep.subr.bf16.mxu0 0
      %246 = vmatpush1.bf16.msra.mxu0 0
      %247 = vmatprep.subr.bf16.mxu0 0
      %248 = vmatpush1.bf16.msra.mxu0 0
      %249 = vmatprep.subr.bf16.mxu0 0
      %250 = vmatpush1.bf16.msra.mxu0 %v230
      %251 = vmatprep.subr.bf16.mxu0 0
      %252 = vmatpush2.bf16.msra.mxu0 0
      %253 = vmatprep.subr.bf16.mxu0 0
      %254 = vmatpush2.bf16.msra.mxu0 0
      %255 = vmatprep.subr.bf16.mxu0 0
      %256 = vmatpush2.bf16.msra.mxu0 0
      %257 = vmatprep.subr.bf16.mxu0 0
      %258 = vmatpush2.bf16.msra.mxu0 0
      %259 = vmatprep.subr.bf16.mxu0 0
      %260 = vmatpush2.bf16.msra.mxu0 0
      %261 = vmatprep.subr.bf16.mxu0 0
      %262 = vmatpush2.bf16.msra.mxu0 0
      %263 = vmatprep.subr.bf16.mxu0 0
      %264 = vmatpush2.bf16.msra.mxu0 0
      %265 = vmatprep.subr.bf16.mxu0 0
      %266 = vmatpush2.bf16.msra.mxu0 0
      %267 = vmatprep.mubr.bf16.mxu0 0
      %268 = vmatmul.mubr.bf16.gmra.mxu0 %v233
      %v269 = vpop.f32.mrf.mxu0
      %v270 = vadd.f32 0.0, %v269
      %v271 = vpop.f32.mrf.mxu0
      %v272 = vpop.f32.mrf.mxu0
      %v273 = vpop.f32.mrf.mxu0
      %274 = vdwg.mxu0
      %v275 = vpack.c.bf16 %v270, %v270
      %vm276 = vcmask 60416
      %277 = vst.msk [vmem:[%s158] sm:$0xf] %vm276, %v275
      %v278 = vld [vmem:[%s149] sm:$0xf]
      %v279 = vld [vmem:[%s154] sm:$0xf]
      %v280 = vld [vmem:[%s154 + $0x4] sm:$0xf]
      %v282 = vunpack.c.l.b16 %v278
      %v283 = vpack.c.b16 %v282, %v282
      %284 = vrot.lane.b32.xlu0 %v283, 120
      %v285 = vpop.permute.xlu0 %284
      %v288 = vunpack.c.l.b16 %v279
      %v289 = vunpack.c.l.b16 %v280
      %v290 = vpack.c.b16 %v289, %v288
      %291 = vrot.lane.b32.xlu0 %v290, 120
      %v292 = vpop.permute.xlu0 %291
      %v294 = vsel %vm168, %v285, 0
      %v297 = vsel %vm168, %v292, 0
      %299 = vmatprep.subr.bf16.mxu0 0
      %300 = vmatpush1.bf16.xpose.msra.mxu0 0
      %301 = vmatprep.subr.bf16.mxu0 0
      %302 = vmatpush1.bf16.xpose.msra.mxu0 0
      %303 = vmatprep.subr.bf16.mxu0 0
      %304 = vmatpush1.bf16.xpose.msra.mxu0 0
      %305 = vmatprep.subr.bf16.mxu0 0
      %306 = vmatpush1.bf16.xpose.msra.mxu0 0
      %307 = vmatprep.subr.bf16.mxu0 0
      %308 = vmatpush1.bf16.xpose.msra.mxu0 0
      %309 = vmatprep.subr.bf16.mxu0 0
      %310 = vmatpush1.bf16.xpose.msra.mxu0 0
      %311 = vmatprep.subr.bf16.mxu0 0
      %312 = vmatpush1.bf16.xpose.msra.mxu0 0
      %313 = vmatprep.subr.bf16.mxu0 0
      %314 = vmatpush1.bf16.xpose.msra.mxu0 %v297
      %315 = vmatprep.subr.bf16.mxu0 0
      %316 = vmatpush2.bf16.xpose.msra.mxu0 0
      %317 = vmatprep.subr.bf16.mxu0 0
      %318 = vmatpush2.bf16.xpose.msra.mxu0 0
      %319 = vmatprep.subr.bf16.mxu0 0
      %320 = vmatpush2.bf16.xpose.msra.mxu0 0
      %321 = vmatprep.subr.bf16.mxu0 0
      %322 = vmatpush2.bf16.xpose.msra.mxu0 0
      %323 = vmatprep.subr.bf16.mxu0 0
      %324 = vmatpush2.bf16.xpose.msra.mxu0 0
      %325 = vmatprep.subr.bf16.mxu0 0
      %326 = vmatpush2.bf16.xpose.msra.mxu0 0
      %327 = vmatprep.subr.bf16.mxu0 0
      %328 = vmatpush2.bf16.xpose.msra.mxu0 0
      %329 = vmatprep.subr.bf16.mxu0 0
      %330 = vmatpush2.bf16.xpose.msra.mxu0 0
      %331 = vmatprep.mubr.bf16.mxu0 0
      %332 = vmatmul.mubr.bf16.gmra.mxu0 %v294
      %v333 = vpop.f32.mrf.mxu0
      %v334 = vadd.f32 0.0, %v333
      %v335 = vpop.f32.mrf.mxu0
      %v336 = vpop.f32.mrf.mxu0
      %v337 = vpop.f32.mrf.mxu0
      %338 = vdwg.mxu0
      %v339 = vmul.f32 %v334, 0.35355338
      %v340 = vsel %vm216, %v339, -inf
      %341 = vmax.xlane.f32.xlu0 %v340
      %v342 = vpop.xlane.xlu0 %341
      %v343 = vsub.f32 %v339, %v342
      %v344 = vmul.f32 %v343, 1.442695
      %v345 = vpow.pop %v344
      %v346 = vsel %vm216, %v345, 0.0
      %347 = vadd.xlane.f32.xlu0 %v346
      %v348 = vpop.xlane.xlu0 %347
      %v349 = vrcp.pop %v348
      %v350 = vmul.f32 %v345, %v349
      %v351 = vpack.c.bf16 %v350, %v350
      %352 = vrot.lane.b32.xlu0 %v290, 88
      %v353 = vpop.permute.xlu0 %352
      %v356 = vsel %vm216, %v351, 0
      %358 = vmatprep.subr.bf16.mxu0 0
      %359 = vmatpush1.bf16.msra.mxu0 0
      %360 = vmatprep.subr.bf16.mxu0 0
      %361 = vmatpush1.bf16.msra.mxu0 0
      %362 = vmatprep.subr.bf16.mxu0 0
      %363 = vmatpush1.bf16.msra.mxu0 0
      %364 = vmatprep.subr.bf16.mxu0 0
      %365 = vmatpush1.bf16.msra.mxu0 0
      %366 = vmatprep.subr.bf16.mxu0 0
      %367 = vmatpush1.bf16.msra.mxu0 0
      %368 = vmatprep.subr.bf16.mxu0 0
      %369 = vmatpush1.bf16.msra.mxu0 0
      %370 = vmatprep.subr.bf16.mxu0 0
      %371 = vmatpush1.bf16.msra.mxu0 0
      %372 = vmatprep.subr.bf16.mxu0 0
      %373 = vmatpush1.bf16.msra.mxu0 %v353
      %374 = vmatprep.subr.bf16.mxu0 0
      %375 = vmatpush2.bf16.msra.mxu0 0
      %376 = vmatprep.subr.bf16.mxu0 0
      %377 = vmatpush2.bf16.msra.mxu0 0
      %378 = vmatprep.subr.bf16.mxu0 0
      %379 = vmatpush2.bf16.msra.mxu0 0
      %380 = vmatprep.subr.bf16.mxu0 0
      %381 = vmatpush2.bf16.msra.mxu0 0
      %382 = vmatprep.subr.bf16.mxu0 0
      %383 = vmatpush2.bf16.msra.mxu0 0
      %384 = vmatprep.subr.bf16.mxu0 0
      %385 = vmatpush2.bf16.msra.mxu0 0
      %386 = vmatprep.subr.bf16.mxu0 0
      %387 = vmatpush2.bf16.msra.mxu0 0
      %388 = vmatprep.subr.bf16.mxu0 0
      %389 = vmatpush2.bf16.msra.mxu0 0
      %390 = vmatprep.mubr.bf16.mxu0 0
      %391 = vmatmul.mubr.bf16.gmra.mxu0 %v356
      %v392 = vpop.f32.mrf.mxu0
      %v393 = vadd.f32 0.0, %v392
      %v394 = vpop.f32.mrf.mxu0
      %v395 = vpop.f32.mrf.mxu0
      %v396 = vpop.f32.mrf.mxu0
      %397 = vdwg.mxu0
      %v398 = vpack.c.bf16 %v393, %v393
      %v400 = vunpack.c.l.b16 %v398
      %v401 = vpack.c.b16 %v400, %v400
      %402 = vrot.lane.b32.xlu0 %v401, 8
      %v403 = vpop.permute.xlu0 %402
      %vm405 = vcmask 126016
      %406 = vst.msk [vmem:[%s158] sm:$0xf] %vm405, %v403
      %v407 = vld [vmem:[%s149] sm:$0xf]
      %v408 = vld [vmem:[%s154] sm:$0xf]
      %v409 = vld [vmem:[%s154 + $0x4] sm:$0xf]
      %v411 = vunpack.c.l.b16 %v407
      %v412 = vpack.c.b16 %v411, %v411
      %413 = vrot.lane.b32.xlu0 %v412, 112
      %v414 = vpop.permute.xlu0 %413
      %v417 = vunpack.c.l.b16 %v408
      %v418 = vunpack.c.l.b16 %v409
      %v419 = vpack.c.b16 %v418, %v417
      %420 = vrot.lane.b32.xlu0 %v419, 112
      %v421 = vpop.permute.xlu0 %420
      %v423 = vsel %vm168, %v414, 0
      %v426 = vsel %vm168, %v421, 0
      %428 = vmatprep.subr.bf16.mxu0 0
      %429 = vmatpush1.bf16.xpose.msra.mxu0 0
      %430 = vmatprep.subr.bf16.mxu0 0
      %431 = vmatpush1.bf16.xpose.msra.mxu0 0
      %432 = vmatprep.subr.bf16.mxu0 0
      %433 = vmatpush1.bf16.xpose.msra.mxu0 0
      %434 = vmatprep.subr.bf16.mxu0 0
      %435 = vmatpush1.bf16.xpose.msra.mxu0 0
      %436 = vmatprep.subr.bf16.mxu0 0
      %437 = vmatpush1.bf16.xpose.msra.mxu0 0
      %438 = vmatprep.subr.bf16.mxu0 0
      %439 = vmatpush1.bf16.xpose.msra.mxu0 0
      %440 = vmatprep.subr.bf16.mxu0 0
      %441 = vmatpush1.bf16.xpose.msra.mxu0 0
      %442 = vmatprep.subr.bf16.mxu0 0
      %443 = vmatpush1.bf16.xpose.msra.mxu0 %v426
      %444 = vmatprep.subr.bf16.mxu0 0
      %445 = vmatpush2.bf16.xpose.msra.mxu0 0
      %446 = vmatprep.subr.bf16.mxu0 0
      %447 = vmatpush2.bf16.xpose.msra.mxu0 0
      %448 = vmatprep.subr.bf16.mxu0 0
      %449 = vmatpush2.bf16.xpose.msra.mxu0 0
      %450 = vmatprep.subr.bf16.mxu0 0
      %451 = vmatpush2.bf16.xpose.msra.mxu0 0
      %452 = vmatprep.subr.bf16.mxu0 0
      %453 = vmatpush2.bf16.xpose.msra.mxu0 0
      %454 = vmatprep.subr.bf16.mxu0 0
      %455 = vmatpush2.bf16.xpose.msra.mxu0 0
      %456 = vmatprep.subr.bf16.mxu0 0
      %457 = vmatpush2.bf16.xpose.msra.mxu0 0
      %458 = vmatprep.subr.bf16.mxu0 0
      %459 = vmatpush2.bf16.xpose.msra.mxu0 0
      %460 = vmatprep.mubr.bf16.mxu0 0
      %461 = vmatmul.mubr.bf16.gmra.mxu0 %v423
      %v462 = vpop.f32.mrf.mxu0
      %v463 = vadd.f32 0.0, %v462
      %v464 = vpop.f32.mrf.mxu0
      %v465 = vpop.f32.mrf.mxu0
      %v466 = vpop.f32.mrf.mxu0
      %467 = vdwg.mxu0
      %v468 = vmul.f32 %v463, 0.35355338
      %v469 = vsel %vm216, %v468, -inf
      %470 = vmax.xlane.f32.xlu0 %v469
      %v471 = vpop.xlane.xlu0 %470
      %v472 = vsub.f32 %v468, %v471
      %v473 = vmul.f32 %v472, 1.442695
      %v474 = vpow.pop %v473
      %v475 = vsel %vm216, %v474, 0.0
      %476 = vadd.xlane.f32.xlu0 %v475
      %v477 = vpop.xlane.xlu0 %476
      %v478 = vrcp.pop %v477
      %v479 = vmul.f32 %v474, %v478
      %v480 = vpack.c.bf16 %v479, %v479
      %481 = vrot.lane.b32.xlu0 %v419, 80
      %v482 = vpop.permute.xlu0 %481
      %v485 = vsel %vm216, %v480, 0
      %487 = vmatprep.subr.bf16.mxu0 0
      %488 = vmatpush1.bf16.msra.mxu0 0
      %489 = vmatprep.subr.bf16.mxu0 0
      %490 = vmatpush1.bf16.msra.mxu0 0
      %491 = vmatprep.subr.bf16.mxu0 0
      %492 = vmatpush1.bf16.msra.mxu0 0
      %493 = vmatprep.subr.bf16.mxu0 0
      %494 = vmatpush1.bf16.msra.mxu0 0
      %495 = vmatprep.subr.bf16.mxu0 0
      %496 = vmatpush1.bf16.msra.mxu0 0
      %497 = vmatprep.subr.bf16.mxu0 0
      %498 = vmatpush1.bf16.msra.mxu0 0
      %499 = vmatprep.subr.bf16.mxu0 0
      %500 = vmatpush1.bf16.msra.mxu0 0
      %501 = vmatprep.subr.bf16.mxu0 0
      %502 = vmatpush1.bf16.msra.mxu0 %v482
      %503 = vmatprep.subr.bf16.mxu0 0
      %504 = vmatpush2.bf16.msra.mxu0 0
      %505 = vmatprep.subr.bf16.mxu0 0
      %506 = vmatpush2.bf16.msra.mxu0 0
      %507 = vmatprep.subr.bf16.mxu0 0
      %508 = vmatpush2.bf16.msra.mxu0 0
      %509 = vmatprep.subr.bf16.mxu0 0
      %510 = vmatpush2.bf16.msra.mxu0 0
      %511 = vmatprep.subr.bf16.mxu0 0
      %512 = vmatpush2.bf16.msra.mxu0 0
      %513 = vmatprep.subr.bf16.mxu0 0
      %514 = vmatpush2.bf16.msra.mxu0 0
      %515 = vmatprep.subr.bf16.mxu0 0
      %516 = vmatpush2.bf16.msra.mxu0 0
      %517 = vmatprep.subr.bf16.mxu0 0
      %518 = vmatpush2.bf16.msra.mxu0 0
      %519 = vmatprep.mubr.bf16.mxu0 0
      %520 = vmatmul.mubr.bf16.gmra.mxu0 %v485
      %v521 = vpop.f32.mrf.mxu0
      %v522 = vadd.f32 0.0, %v521
      %v523 = vpop.f32.mrf.mxu0
      %v524 = vpop.f32.mrf.mxu0
      %v525 = vpop.f32.mrf.mxu0
      %526 = vdwg.mxu0
      %v527 = vpack.c.bf16 %v522, %v522
      %v529 = vunpack.c.l.b16 %v527
      %v530 = vpack.c.b16 %v529, %v529
      %531 = vrot.lane.b32.xlu0 %v530, 16
      %v532 = vpop.permute.xlu0 %531
      %vm534 = vcmask 191616
      %535 = vst.msk [vmem:[%s158] sm:$0xf] %vm534, %v532
      %v536 = vld [vmem:[%s149] sm:$0xf]
      %v537 = vld [vmem:[%s154] sm:$0xf]
      %v538 = vld [vmem:[%s154 + $0x4] sm:$0xf]
      %v540 = vunpack.c.l.b16 %v536
      %v541 = vpack.c.b16 %v540, %v540
      %542 = vrot.lane.b32.xlu0 %v541, 104
      %v543 = vpop.permute.xlu0 %542
      %v546 = vunpack.c.l.b16 %v537
      %v547 = vunpack.c.l.b16 %v538
      %v548 = vpack.c.b16 %v547, %v546
      %549 = vrot.lane.b32.xlu0 %v548, 104
      %v550 = vpop.permute.xlu0 %549
      %v552 = vsel %vm168, %v543, 0
      %v555 = vsel %vm168, %v550, 0
      %557 = vmatprep.subr.bf16.mxu0 0
      %558 = vmatpush1.bf16.xpose.msra.mxu0 0
      %559 = vmatprep.subr.bf16.mxu0 0
      %560 = vmatpush1.bf16.xpose.msra.mxu0 0
      %561 = vmatprep.subr.bf16.mxu0 0
      %562 = vmatpush1.bf16.xpose.msra.mxu0 0
      %563 = vmatprep.subr.bf16.mxu0 0
      %564 = vmatpush1.bf16.xpose.msra.mxu0 0
      %565 = vmatprep.subr.bf16.mxu0 0
      %566 = vmatpush1.bf16.xpose.msra.mxu0 0
      %567 = vmatprep.subr.bf16.mxu0 0
      %568 = vmatpush1.bf16.xpose.msra.mxu0 0
      %569 = vmatprep.subr.bf16.mxu0 0
      %570 = vmatpush1.bf16.xpose.msra.mxu0 0
      %571 = vmatprep.subr.bf16.mxu0 0
      %572 = vmatpush1.bf16.xpose.msra.mxu0 %v555
      %573 = vmatprep.subr.bf16.mxu0 0
      %574 = vmatpush2.bf16.xpose.msra.mxu0 0
      %575 = vmatprep.subr.bf16.mxu0 0
      %576 = vmatpush2.bf16.xpose.msra.mxu0 0
      %577 = vmatprep.subr.bf16.mxu0 0
      %578 = vmatpush2.bf16.xpose.msra.mxu0 0
      %579 = vmatprep.subr.bf16.mxu0 0
      %580 = vmatpush2.bf16.xpose.msra.mxu0 0
      %581 = vmatprep.subr.bf16.mxu0 0
      %582 = vmatpush2.bf16.xpose.msra.mxu0 0
      %583 = vmatprep.subr.bf16.mxu0 0
      %584 = vmatpush2.bf16.xpose.msra.mxu0 0
      %585 = vmatprep.subr.bf16.mxu0 0
      %586 = vmatpush2.bf16.xpose.msra.mxu0 0
      %587 = vmatprep.subr.bf16.mxu0 0
      %588 = vmatpush2.bf16.xpose.msra.mxu0 0
      %589 = vmatprep.mubr.bf16.mxu0 0
      %590 = vmatmul.mubr.bf16.gmra.mxu0 %v552
      %v591 = vpop.f32.mrf.mxu0
      %v592 = vadd.f32 0.0, %v591
      %v593 = vpop.f32.mrf.mxu0
      %v594 = vpop.f32.mrf.mxu0
      %v595 = vpop.f32.mrf.mxu0
      %596 = vdwg.mxu0
      %v597 = vmul.f32 %v592, 0.35355338
      %v598 = vsel %vm216, %v597, -inf
      %599 = vmax.xlane.f32.xlu0 %v598
      %v600 = vpop.xlane.xlu0 %599
      %v601 = vsub.f32 %v597, %v600
      %v602 = vmul.f32 %v601, 1.442695
      %v603 = vpow.pop %v602
      %v604 = vsel %vm216, %v603, 0.0
      %605 = vadd.xlane.f32.xlu0 %v604
      %v606 = vpop.xlane.xlu0 %605
      %v607 = vrcp.pop %v606
      %v608 = vmul.f32 %v603, %v607
      %v609 = vpack.c.bf16 %v608, %v608
      %610 = vrot.lane.b32.xlu0 %v548, 72
      %v611 = vpop.permute.xlu0 %610
      %v614 = vsel %vm216, %v609, 0
      %616 = vmatprep.subr.bf16.mxu0 0
      %617 = vmatpush1.bf16.msra.mxu0 0
      %618 = vmatprep.subr.bf16.mxu0 0
      %619 = vmatpush1.bf16.msra.mxu0 0
      %620 = vmatprep.subr.bf16.mxu0 0
      %621 = vmatpush1.bf16.msra.mxu0 0
      %622 = vmatprep.subr.bf16.mxu0 0
      %623 = vmatpush1.bf16.msra.mxu0 0
      %624 = vmatprep.subr.bf16.mxu0 0
      %625 = vmatpush1.bf16.msra.mxu0 0
      %626 = vmatprep.subr.bf16.mxu0 0
      %627 = vmatpush1.bf16.msra.mxu0 0
      %628 = vmatprep.subr.bf16.mxu0 0
      %629 = vmatpush1.bf16.msra.mxu0 0
      %630 = vmatprep.subr.bf16.mxu0 0
      %631 = vmatpush1.bf16.msra.mxu0 %v611
      %632 = vmatprep.subr.bf16.mxu0 0
      %633 = vmatpush2.bf16.msra.mxu0 0
      %634 = vmatprep.subr.bf16.mxu0 0
      %635 = vmatpush2.bf16.msra.mxu0 0
      %636 = vmatprep.subr.bf16.mxu0 0
      %637 = vmatpush2.bf16.msra.mxu0 0
      %638 = vmatprep.subr.bf16.mxu0 0
      %639 = vmatpush2.bf16.msra.mxu0 0
      %640 = vmatprep.subr.bf16.mxu0 0
      %641 = vmatpush2.bf16.msra.mxu0 0
      %642 = vmatprep.subr.bf16.mxu0 0
      %643 = vmatpush2.bf16.msra.mxu0 0
      %644 = vmatprep.subr.bf16.mxu0 0
      %645 = vmatpush2.bf16.msra.mxu0 0
      %646 = vmatprep.subr.bf16.mxu0 0
      %647 = vmatpush2.bf16.msra.mxu0 0
      %648 = vmatprep.mubr.bf16.mxu0 0
      %649 = vmatmul.mubr.bf16.gmra.mxu0 %v614
      %v650 = vpop.f32.mrf.mxu0
      %v651 = vadd.f32 0.0, %v650
      %v652 = vpop.f32.mrf.mxu0
      %v653 = vpop.f32.mrf.mxu0
      %v654 = vpop.f32.mrf.mxu0
      %655 = vdwg.mxu0
      %v656 = vpack.c.bf16 %v651, %v651
      %v658 = vunpack.c.l.b16 %v656
      %v659 = vpack.c.b16 %v658, %v658
      %660 = vrot.lane.b32.xlu0 %v659, 24
      %v661 = vpop.permute.xlu0 %660
      %vm663 = vcmask 257216
      %664 = vst.msk [vmem:[%s158] sm:$0xf] %vm663, %v661
      %p665 = scmp.lt.s32.totalorder %s13, 1
      %s666 = scalar_select %p665, %s13, 1
      %s667 = smul.addr %s666, 4
      %s668 = scalar_lea.vmem %s2, %s667
      // Predicated region
      $region29: #{decoder_forward.22} parent=27 // pred_check
        %p669 = pneg %p83
      $region30: #{decoder_forward.22} parent=27 // pred_check_branch
        %671 = sbr.rel (%p669) target = $region32
      $region31: #{decoder_forward.22} parent=27 // pred_region
        _
      $region32: #{decoder_forward.22} parent=27 // pred_fallthru
        _
    $region28: #{decoder_forward.22} parent=5 // pred_fallthru
      _
    %p672 = scmp.le.s32.totalorder 2, %s8
    // Predicated region
    $region33: #{decoder_forward.22} parent=5 // pred_check
      %p673 = pneg %p672
    $region34: #{decoder_forward.22} parent=5 // pred_check_branch
      %675 = sbr.rel (%p673) target = $region36
    $region35: #{decoder_forward.22} parent=5 // pred_region
      %s676 = ssub.s32 %s8, 2
      // Predicated region
      $region37: #{decoder_forward.22} parent=35 // pred_check
        %p677 = pneg %p89
      $region38: #{decoder_forward.22} parent=35 // pred_check_branch
        %679 = sbr.rel (%p677) target = $region40
      $region39: #{decoder_forward.22} parent=35 // pred_region
        %p680 = scmp.lt.s32.totalorder %s14, 1
        %s681 = scalar_select %p680, %s14, 1
        %s682 = smul.addr %s681, 4
        %s683 = scalar_lea.vmem %s2, %s682
      $region40: #{decoder_forward.22} parent=35 // pred_fallthru
        _
    $region36: #{decoder_forward.22} parent=5 // pred_fallthru
      _
  $region6: #{decoder_forward.22} parent=0 // loop_footer
    %s12 = sadd.s32 1, %s8
  $region7: #{decoder_forward.22} parent=0 // loop_footer_branch
    %7 = sbr.rel target = $region3
  $region8: #{decoder_forward.22} parent=0 // loop_exit
    _

</llo_original>
